<compile_context>
chip_gen: v7x
topology: tpu7x:2x2x1
jax: 0.10.0
libtpu: 0.0.40
codegen_flags: <defaults>
</compile_context>

<pallas_src>
import functools

import jax
import jax.numpy as jnp
from jax import lax
from jax.experimental import pallas as pl
from jax.experimental.pallas import tpu as pltpu


# Explicit scoped-VMEM budget: comfortably below v7x's 64 MiB physical VMEM and
# above the 32 MiB default, so larger tiles don't trip the default limit.
_VMEM_LIMIT = 48 * 1024 * 1024


def _pick_tile(n, candidates):
    for c in candidates:
        if n % c == 0:
            return c
    return n


def _row_tile(M):
    # Big row tiles (multiple of 8) so grid loops are not per-step-overhead bound;
    # whole-array fallback only for tiny / unaligned M.
    return _pick_tile(M, (512, 256, 128, 64, 32, 16, 8)) if M % 8 == 0 else M


def _col_tile(Cout):
    # Last-dim block must be a multiple of 128 (lane width) or the full dim.
    return _pick_tile(Cout, (512, 384, 256, 128)) if Cout % 128 == 0 else Cout


def _cparams(*sem):
    return pltpu.CompilerParams(dimension_semantics=sem,
                                vmem_limit_bytes=_VMEM_LIMIT)


# ----------------------------------------------------------------------------
# Linear (+ optional fused LayerNorm prologue)
# ----------------------------------------------------------------------------
def _linear_kernel(x_ref, w_ref, b_ref, o_ref):
    x = x_ref[...].astype(jnp.bfloat16)
    acc = jnp.dot(x, w_ref[...], preferred_element_type=jnp.float32)
    o_ref[...] = (acc + b_ref[...].astype(jnp.float32)).astype(o_ref.dtype)


def _ln_linear_kernel(x_ref, g_ref, bt_ref, w_ref, b_ref, o_ref, *, eps):
    # LayerNorm statistics in f32 (v5e has no bf16 VPU/EUP path); matmul in bf16.
    x = x_ref[...].astype(jnp.float32)
    mean = jnp.mean(x, axis=-1, keepdims=True)
    xc = x - mean
    var = jnp.mean(xc * xc, axis=-1, keepdims=True)
    xn = xc * lax.rsqrt(var + eps) * g_ref[...] + bt_ref[...]
    acc = jnp.dot(xn.astype(jnp.bfloat16), w_ref[...],
                  preferred_element_type=jnp.float32)
    o_ref[...] = (acc + b_ref[...].astype(jnp.float32)).astype(o_ref.dtype)


def linear(x2d, w, b, *, ln_gamma=None, ln_beta=None, ln_eps=1e-5,
           out_dtype=jnp.float32):
    M, Cin = x2d.shape
    Cout = w.shape[1]
    tm = _row_tile(M)
    tn = _col_tile(Cout)
    grid = (M // tm, Cout // tn)

    w_bf16 = w.astype(jnp.bfloat16)                    # halves weight HBM/VMEM traffic
    b2d = b.reshape(1, Cout).astype(jnp.float32)

    x_spec = pl.BlockSpec((tm, Cin), lambda i, j: (i, 0))
    w_spec = pl.BlockSpec((Cin, tn), lambda i, j: (0, j))
    b_spec = pl.BlockSpec((1, tn), lambda i, j: (0, j))
    o_spec = pl.BlockSpec((tm, tn), lambda i, j: (i, j))

    if ln_gamma is None:
        return pl.pallas_call(
            _linear_kernel,
            out_shape=jax.ShapeDtypeStruct((M, Cout), out_dtype),
            grid=grid,
            in_specs=[x_spec, w_spec, b_spec],
            out_specs=o_spec,
            compiler_params=_cparams("parallel", "parallel"),
        )(x2d, w_bf16, b2d)

    ln_spec = pl.BlockSpec((1, Cin), lambda i, j: (0, 0))
    return pl.pallas_call(
        functools.partial(_ln_linear_kernel, eps=ln_eps),
        out_shape=jax.ShapeDtypeStruct((M, Cout), out_dtype),
        grid=grid,
        in_specs=[x_spec, ln_spec, ln_spec, w_spec, b_spec],
        out_specs=o_spec,
        compiler_params=_cparams("parallel", "parallel"),
    )(x2d, ln_gamma.reshape(1, Cin).astype(jnp.float32),
      ln_beta.reshape(1, Cin).astype(jnp.float32), w_bf16, b2d)


# Standalone LayerNorm — only used on the (rare) padding path where torch applies
# norm1 BEFORE spatial padding, so it cannot be fused into the qkv matmul.
def _layernorm_kernel(x_ref, g_ref, b_ref, o_ref, *, eps):
    x = x_ref[...].astype(jnp.float32)
    mean = jnp.mean(x, axis=-1, keepdims=True)
    xc = x - mean
    var = jnp.mean(xc * xc, axis=-1, keepdims=True)
    o_ref[...] = (xc * lax.rsqrt(var + eps) * g_ref[...] + b_ref[...]).astype(o_ref.dtype)


def layernorm(x2d, gamma, beta, eps=1e-5):
    M, C = x2d.shape
    tm = _row_tile(M)
    return pl.pallas_call(
        functools.partial(_layernorm_kernel, eps=eps),
        out_shape=jax.ShapeDtypeStruct((M, C), jnp.float32),
        grid=(M // tm,),
        in_specs=[pl.BlockSpec((tm, C), lambda i: (i, 0)),
                  pl.BlockSpec((1, C), lambda i: (0, 0)),
                  pl.BlockSpec((1, C), lambda i: (0, 0))],
        out_specs=pl.BlockSpec((tm, C), lambda i: (i, 0)),
        compiler_params=_cparams("parallel"),
    )(x2d, gamma.reshape(1, C).astype(jnp.float32),
      beta.reshape(1, C).astype(jnp.float32))


# ----------------------------------------------------------------------------
# Neighborhood attention: all heads of one batch element per grid step
# ----------------------------------------------------------------------------
def _nat_attn_kernel(q_ref, k_ref, v_ref, bias_ref, o_ref, *, scale):
    q = q_ref[...].astype(jnp.bfloat16)                  # (NH, S, hd)
    k = k_ref[...].astype(jnp.bfloat16)
    v = v_ref[...].astype(jnp.bfloat16)
    s = jnp.einsum("hqd,hkd->hqk", q, k,
                   preferred_element_type=jnp.float32)   # (NH, S, S)
    s = s * scale + bias_ref[...]                        # rpb + neighborhood mask (f32)
    m = jnp.max(s, axis=-1, keepdims=True)
    p = jnp.exp(s - m)
    l = jnp.sum(p, axis=-1, keepdims=True)
    attn = (p * pl.reciprocal(l, approx=True)).astype(jnp.bfloat16)
    o = jnp.einsum("hqk,hkd->hqd", attn, v, preferred_element_type=jnp.float32)
    o_ref[...] = o.astype(o_ref.dtype)


def nat_attention(q, k, v, bias, scale):
    # q, k, v: (B, heads, S, hd); bias: (heads, S, S) f32
    # TODO(synk): for large H*W the dense (heads,S,S) bias should be replaced by a
    # key-tiled / banded neighborhood (flash-style) kernel; here the bias block index
    # is constant along the batch grid axis so it is DMA'd into VMEM only once.
    B, NH, S, hd = q.shape
    qkv_spec = pl.BlockSpec((None, NH, S, hd), lambda b: (b, 0, 0, 0))
    return pl.pallas_call(
        functools.partial(_nat_attn_kernel, scale=scale),
        out_shape=jax.ShapeDtypeStruct((B, NH, S, hd), jnp.float32),
        grid=(B,),
        in_specs=[qkv_spec, qkv_spec, qkv_spec,
                  pl.BlockSpec((NH, S, S), lambda b: (0, 0, 0))],
        out_specs=pl.BlockSpec((None, NH, S, hd), lambda b: (b, 0, 0, 0)),
        compiler_params=_cparams("parallel"),
    )(q, k, v, bias)


# ----------------------------------------------------------------------------
# Windowed unequal bipartite soft matching + merge (ToMe-style "kth" split)
# ----------------------------------------------------------------------------
def _merge_kernel(ks_ref, kd_ref, xs_ref, xd_ref, o_ref):
    ks = ks_ref[...].astype(jnp.float32)                          # (wb, r, Ck)
    kd = kd_ref[...].astype(jnp.float32)                          # (wb, d, Ck)
    ks = ks * lax.rsqrt(jnp.sum(ks * ks, axis=-1, keepdims=True) + 1e-12)
    kd = kd * lax.rsqrt(jnp.sum(kd * kd, axis=-1, keepdims=True) + 1e-12)
    scores = jnp.einsum("wrc,wdc->wrd",
                        ks.astype(jnp.bfloat16), kd.astype(jnp.bfloat16),
                        preferred_element_type=jnp.float32)       # (wb, r, d)
    wb, r, d = scores.shape
    col = lax.broadcasted_iota(jnp.int32, (r, d), 1)[None]        # (1, r, d)
    row_max = jnp.max(scores, axis=-1, keepdims=True)
    best = jnp.min(jnp.where(scores >= row_max, col, d), axis=-1, keepdims=True)
    one_hot = (col == best).astype(jnp.float32)                   # (wb, r, d)

    xs = xs_ref[...].astype(jnp.float32)                          # (wb, r, C)
    xd = xd_ref[...].astype(jnp.float32)                          # (wb, d, C)
    sums = jnp.einsum("wrd,wrc->wdc",
                      one_hot.astype(jnp.bfloat16), xs.astype(jnp.bfloat16),
                      preferred_element_type=jnp.float32)         # (wb, d, C)
    counts = jnp.sum(one_hot, axis=1)[:, :, None]                 # (wb, d, 1)
    o_ref[...] = ((xd + sums) / (1.0 + counts)).astype(o_ref.dtype)


def windowed_merge(wk, wx, r):
    # TODO(synk): `windowed_unequal_bipartite_soft_matching` source is not provided;
    # implemented as ToMe "kth" unequal bipartite soft matching (dst = every k-th
    # token of each window; remaining r tokens merged by scatter-mean, include_self).
    B, nH, nW, N, Ck = wk.shape
    C = wx.shape[-1]
    d = N - r
    kg = N // d
    assert d * kg == N, "split requires N % (N - r) == 0"
    Wn = B * nH * nW
    wk_g = wk.reshape(Wn, d, kg, Ck)
    wx_g = wx.reshape(Wn, d, kg, C)
    ks = wk_g[:, :, : kg - 1, :].reshape(Wn, r, Ck)
    kd = wk_g[:, :, kg - 1, :]
    xs = wx_g[:, :, : kg - 1, :].reshape(Wn, r, C)
    xd = wx_g[:, :, kg - 1, :]

    wb = _pick_tile(Wn, (64, 32, 16, 8, 4, 2, 1))   # many windows per grid step
    out = pl.pallas_call(
        _merge_kernel,
        out_shape=jax.ShapeDtypeStruct((Wn, d, C), jnp.float32),
        grid=(Wn // wb,),
        in_specs=[pl.BlockSpec((wb, r, Ck), lambda w: (w, 0, 0)),
                  pl.BlockSpec((wb, d, Ck), lambda w: (w, 0, 0)),
                  pl.BlockSpec((wb, r, C), lambda w: (w, 0, 0)),
                  pl.BlockSpec((wb, d, C), lambda w: (w, 0, 0))],
        out_specs=pl.BlockSpec((wb, d, C), lambda w: (w, 0, 0)),
        compiler_params=_cparams("parallel"),
    )(ks, kd, xs, xd)
    return out.reshape(B, nH, nW, d, C)


# ----------------------------------------------------------------------------
# Plain-JAX glue — exact translations of the torch code
# ----------------------------------------------------------------------------
def window_partition(x, window_size):
    B, H, W, C = x.shape
    x = x.reshape(B, H // window_size, W // window_size, window_size, window_size, C)
    x = jnp.transpose(x, (0, 1, 3, 2, 4, 5))
    return x.reshape(B, H // window_size, W // window_size, -1, C)


def window_reverse(windows, window_size, H, W):
    B = windows.shape[0]
    H = windows.shape[1] * window_size
    W = windows.shape[2] * window_size
    x = windows.reshape(B, H // window_size, W // window_size, window_size, window_size, -1)
    x = jnp.transpose(x, (0, 1, 3, 2, 4, 5)).reshape(B, H, W, -1)
    return x


def build_natten_bias(rpb, H, W, K, dilation):
    """Dense (heads, H*W, H*W) additive bias encoding the NATTEN clamped
    neighborhood (non-neighbors = -1e30) plus the relative position bias."""
    assert dilation == 1  # TODO(synk): dilated (dilation > 1) neighborhoods not implemented
    ns = K // 2
    NEG = jnp.float32(-1e30)

    def axis_idx(L):
        i = jnp.arange(L)
        w = jnp.maximum(i - ns, 0) + jnp.where(i + ns >= L, L - i - ns - 1, 0)
        p = ns + jnp.where(i < ns, ns - i, 0) + jnp.where(i + ns >= L, L - i - 1 - ns, 0)
        return w, p

    wi, pi = axis_idx(H)
    wj, pj = axis_idx(W)
    r = jnp.arange(H)
    c = jnp.arange(W)
    ai = r[None, :] - wi[:, None]                      # (H, H) offset of key row in window
    aj = c[None, :] - wj[:, None]                      # (W, W)
    vi = (ai >= 0) & (ai < K)
    vj = (aj >= 0) & (aj < K)
    rii = jnp.clip(pi[:, None] + ai, 0, 2 * K - 2)
    rjj = jnp.clip(pj[:, None] + aj, 0, 2 * K - 2)
    bias = rpb[:, rii[:, None, :, None], rjj[None, :, None, :]]   # (heads, H, W, H, W)
    mask = vi[:, None, :, None] & vj[None, :, None, :]
    bias = jnp.where(mask[None], bias, NEG)
    heads = rpb.shape[0]
    return bias.reshape(heads, H * W, H * W)


# ----------------------------------------------------------------------------
# WinToMeNATReductionBlock forward
# ----------------------------------------------------------------------------
def block_forward(x, params, *, num_heads, kernel_size, dilation, reduction_window_size):
    B, H, W, C = x.shape
    hd = C // num_heads
    scale = hd ** (-0.5)
    shortcut = x

    # ---- WinToMeNeighborhoodAttention2D (return_keys=True); norm1 fused into qkv ----
    window_size = kernel_size * dilation
    Hp, Wp = H, W
    pad_b = max(0, window_size - H)
    pad_r = max(0, window_size - W)
    if pad_b or pad_r:
        # torch applies norm1 BEFORE spatial padding, so fuse is not valid here.
        xn = layernorm(x.reshape(-1, C), params["norm1_g"], params["norm1_b"]).reshape(B, H, W, C)
        xn = jnp.pad(xn, ((0, 0), (0, pad_b), (0, pad_r), (0, 0)))
        _, Ha, Wa, _ = xn.shape
        qkv = linear(xn.reshape(-1, C), params["qkv_w"], params["qkv_b"],
                     out_dtype=jnp.bfloat16)
    else:
        Ha, Wa = H, W
        qkv = linear(x.reshape(-1, C), params["qkv_w"], params["qkv_b"],
                     ln_gamma=params["norm1_g"], ln_beta=params["norm1_b"],
                     out_dtype=jnp.bfloat16)
    S = Ha * Wa

    qkv = qkv.reshape(B, Ha, Wa, 3, num_heads, hd)
    qkv = jnp.transpose(qkv, (3, 0, 4, 1, 2, 5))       # (3, B, heads, Ha, Wa, hd)
    q, k, v = qkv[0], qkv[1], qkv[2]

    bias = build_natten_bias(params["rpb"], Ha, Wa, kernel_size, dilation)
    attn_out = nat_attention(q.reshape(B, num_heads, S, hd),
                             k.reshape(B, num_heads, S, hd),
                             v.reshape(B, num_heads, S, hd),
                             bias, scale)               # (B, heads, S, hd)
    ao = attn_out.reshape(B, num_heads, Ha, Wa, hd)
    ao = jnp.transpose(ao, (0, 2, 3, 1, 4)).reshape(B, Ha, Wa, C)
    if pad_b or pad_r:
        ao = ao[:, :Hp, :Wp, :]
        k = k[:, :, :Hp, :Wp, :]
    x_attn = linear(ao.reshape(-1, C), params["proj_w"], params["proj_b"]).reshape(B, Hp, Wp, C)

    # residual (drop_path = Identity, dropouts = 0)
    x = shortcut + x_attn

    # ---- windowed token merging (the "reduction") ----
    k_mean = jnp.mean(k.astype(jnp.float32), axis=1)    # (B, H, W, head_dim)
    wx = window_partition(x, reduction_window_size)
    wk = window_partition(k_mean, reduction_window_size)
    r = 3 * reduction_window_size ** 2 // 4
    merged = windowed_merge(wk, wx, r)
    x = window_reverse(merged, reduction_window_size // 2, H // 2, W // 2)

    # ---- MLP branch (norm2 fused into fc1) ----
    Bo, Ho, Wo, _ = x.shape
    h = linear(x.reshape(-1, C), params["mlp_fc1_w"], params["mlp_fc1_b"],
               ln_gamma=params["norm2_g"], ln_beta=params["norm2_b"])
    # TODO(synk): exact-erf GELU (nn.GELU default) kept in XLA glue rather than fused
    # into the matmul epilogue, to preserve exact semantics.
    h = jax.nn.gelu(h, approximate=False)
    h = linear(h, params["mlp_fc2_w"], params["mlp_fc2_b"]).reshape(Bo, Ho, Wo, C)
    x = x + h

    # ---- upsample MLP (dim -> 2*dim) ----
    u = linear(x.reshape(-1, C), params["up_fc1_w"], params["up_fc1_b"])
    u = jax.nn.gelu(u, approximate=False)
    u = linear(u, params["up_fc2_w"], params["up_fc2_b"])
    return u.reshape(Bo, Ho, Wo, 2 * C)


def init_params(key, dim, num_heads, kernel_size, mlp_ratio):
    hidden = int(dim * mlp_ratio)
    ks = jax.random.split(key, 11)
    w = lambda k, s: 0.02 * jax.random.normal(k, s, jnp.float32)
    return dict(
        norm1_g=jnp.ones((dim,), jnp.float32),
        norm1_b=jnp.zeros((dim,), jnp.float32),
        qkv_w=w(ks[0], (dim, 3 * dim)),
        qkv_b=w(ks[1], (3 * dim,)),
        rpb=w(ks[2], (num_heads, 2 * kernel_size - 1, 2 * kernel_size - 1)),
        proj_w=w(ks[3], (dim, dim)),
        proj_b=w(ks[4], (dim,)),
        norm2_g=jnp.ones((dim,), jnp.float32),
        norm2_b=jnp.zeros((dim,), jnp.float32),
        mlp_fc1_w=w(ks[5], (dim, hidden)),
        mlp_fc1_b=w(ks[6], (hidden,)),
        mlp_fc2_w=w(ks[7], (hidden, dim)),
        mlp_fc2_b=w(ks[8], (dim,)),
        up_fc1_w=w(ks[9], (dim, hidden)),
        up_fc1_b=jnp.zeros((hidden,), jnp.float32),
        up_fc2_w=w(ks[10], (hidden, 2 * dim)),
        up_fc2_b=jnp.zeros((2 * dim,), jnp.float32),
    )


if __name__ == "__main__":
    key = jax.random.PRNGKey(0)
    kx, kp = jax.random.split(key)

    B, H, W, C = 2, 8, 8, 32
    num_heads, kernel_size, dilation = 4, 3, 1
    reduction_window_size, mlp_ratio = 4, 4.0

    x = jax.random.normal(kx, (B, H, W, C), jnp.float32)
    params = init_params(kp, C, num_heads, kernel_size, mlp_ratio)

    fwd = jax.jit(functools.partial(
        block_forward, num_heads=num_heads, kernel_size=kernel_size,
        dilation=dilation, reduction_window_size=reduction_window_size))

    out = fwd(x, params)
    out = jax.block_until_ready(out)
    assert out.shape == (B, H // 2, W // 2, 2 * C), out.shape
    assert bool(jnp.all(jnp.isfinite(out)))
    print("KERNEL_OK")
</pallas_src>

<mosaic_0001>
module attributes {stable_mosaic.version = 11 : i64} {
  func.func @_ln_linear_kernel(%arg0: i32, %arg1: i32, %arg2: memref<128x32xf32, #tpu.memory_space<vmem>>, %arg3: memref<1x32xf32, #tpu.memory_space<vmem>>, %arg4: memref<1x32xf32, #tpu.memory_space<vmem>>, %arg5: memref<32x96xbf16, #tpu.memory_space<vmem>>, %arg6: memref<1x96xf32, #tpu.memory_space<vmem>>, %arg7: memref<128x96xbf16, #tpu.memory_space<vmem>>) attributes {dimension_semantics = [#tpu.dimension_semantics<parallel>, #tpu.dimension_semantics<parallel>], iteration_bounds = array<i64: 1, 1>, scalar_prefetch = 0 : i64, scratch_operands = 0 : i64, tpu.core_type = #tpu.core_type<tc>, window_params = [{transform_indices = @transform_0, window_bounds = array<i64: 128, 32>}, {pipeline_mode = #tpu.pipeline_mode<synchronous>, transform_indices = @transform_1, window_bounds = array<i64: 1, 32>}, {pipeline_mode = #tpu.pipeline_mode<synchronous>, transform_indices = @transform_2, window_bounds = array<i64: 1, 32>}, {transform_indices = @transform_3, window_bounds = array<i64: 32, 96>}, {transform_indices = @transform_4, window_bounds = array<i64: 1, 96>}, {transform_indices = @transform_5, window_bounds = array<i64: 128, 96>}]} {
    %c0 = arith.constant 0 : index
    %c0_0 = arith.constant 0 : index
    %0 = vector.load %arg2[%c0, %c0_0] : memref<128x32xf32, #tpu.memory_space<vmem>>, vector<128x32xf32>
    %cst = arith.constant dense<0.000000e+00> : vector<128xf32>
    %1 = vector.multi_reduction <add>, %0, %cst [1] : vector<128x32xf32> to vector<128xf32>
    %2 = vector.shape_cast %1 : vector<128xf32> to vector<128x1xf32>
    %cst_1 = arith.constant 3.200000e+01 : f32
    %3 = vector.broadcast %cst_1 : f32 to vector<128x1xf32>
    %4 = arith.divf %2, %3 : vector<128x1xf32>
    %5 = vector.broadcast %4 : vector<128x1xf32> to vector<128x32xf32>
    %6 = arith.subf %0, %5 : vector<128x32xf32>
    %7 = arith.mulf %6, %6 : vector<128x32xf32>
    %cst_2 = arith.constant dense<0.000000e+00> : vector<128xf32>
    %8 = vector.multi_reduction <add>, %7, %cst_2 [1] : vector<128x32xf32> to vector<128xf32>
    %9 = vector.shape_cast %8 : vector<128xf32> to vector<128x1xf32>
    %cst_3 = arith.constant 3.200000e+01 : f32
    %10 = vector.broadcast %cst_3 : f32 to vector<128x1xf32>
    %11 = arith.divf %9, %10 : vector<128x1xf32>
    %cst_4 = arith.constant 9.99999974E-6 : f32
    %12 = vector.broadcast %cst_4 : f32 to vector<128x1xf32>
    %13 = arith.addf %11, %12 : vector<128x1xf32>
    %14 = math.rsqrt %13 : vector<128x1xf32>
    %15 = vector.broadcast %14 : vector<128x1xf32> to vector<128x32xf32>
    %16 = arith.mulf %6, %15 : vector<128x32xf32>
    %c0_5 = arith.constant 0 : index
    %c0_6 = arith.constant 0 : index
    %17 = vector.load %arg3[%c0_5, %c0_6] : memref<1x32xf32, #tpu.memory_space<vmem>>, vector<1x32xf32>
    %18 = vector.broadcast %17 : vector<1x32xf32> to vector<128x32xf32>
    %19 = arith.mulf %16, %18 : vector<128x32xf32>
    %c0_7 = arith.constant 0 : index
    %c0_8 = arith.constant 0 : index
    %20 = vector.load %arg4[%c0_7, %c0_8] : memref<1x32xf32, #tpu.memory_space<vmem>>, vector<1x32xf32>
    %21 = vector.broadcast %20 : vector<1x32xf32> to vector<128x32xf32>
    %22 = arith.addf %19, %21 : vector<128x32xf32>
    %23 = arith.truncf %22 : vector<128x32xf32> to vector<128x32xbf16>
    %c0_9 = arith.constant 0 : index
    %c0_10 = arith.constant 0 : index
    %24 = vector.load %arg5[%c0_9, %c0_10] : memref<32x96xbf16, #tpu.memory_space<vmem>>, vector<32x96xbf16>
    %cst_11 = arith.constant dense<0.000000e+00> : vector<128x96xf32>
    %25 = tpu.matmul %23, %24, %cst_11 {dimension_numbers = #tpu.dot_dimension_numbers<[1], [0], [0], [1], [0, 0, 1, 1], [], []>} : vector<128x32xbf16>, vector<32x96xbf16>, vector<128x96xf32> -> vector<128x96xf32>
    %c0_12 = arith.constant 0 : index
    %c0_13 = arith.constant 0 : index
    %26 = vector.load %arg6[%c0_12, %c0_13] : memref<1x96xf32, #tpu.memory_space<vmem>>, vector<1x96xf32>
    %27 = vector.broadcast %26 : vector<1x96xf32> to vector<128x96xf32>
    %28 = arith.addf %25, %27 : vector<128x96xf32>
    %29 = arith.truncf %28 : vector<128x96xf32> to vector<128x96xbf16>
    %c0_14 = arith.constant 0 : index
    %c0_15 = arith.constant 0 : index
    %30 = vector.load %arg7[%c0_14, %c0_15] : memref<128x96xbf16, #tpu.memory_space<vmem>>, vector<128x96xbf16>
    tpu.vector_store %arg7[%c0_14, %c0_15], %29 {strides = array<i32>} : memref<128x96xbf16, #tpu.memory_space<vmem>>, vector<128x96xbf16>,
    return
  }
  func.func @transform_0(%arg0: i32, %arg1: i32) -> (i32, i32) {
    %c0_i32 = arith.constant 0 : i32
    %c0_i32_0 = arith.constant 0 : i32
    return %arg0, %c0_i32 : i32, i32
  }
  func.func @transform_1(%arg0: i32, %arg1: i32) -> (i32, i32) {
    %c0_i32 = arith.constant 0 : i32
    %c0_i32_0 = arith.constant 0 : i32
    %c0_i32_1 = arith.constant 0 : i32
    return %c0_i32, %c0_i32_0 : i32, i32
  }
  func.func @transform_2(%arg0: i32, %arg1: i32) -> (i32, i32) {
    %c0_i32 = arith.constant 0 : i32
    %c0_i32_0 = arith.constant 0 : i32
    %c0_i32_1 = arith.constant 0 : i32
    return %c0_i32, %c0_i32_0 : i32, i32
  }
  func.func @transform_3(%arg0: i32, %arg1: i32) -> (i32, i32) {
    %c0_i32 = arith.constant 0 : i32
    %c0_i32_0 = arith.constant 0 : i32
    return %c0_i32, %arg1 : i32, i32
  }
  func.func @transform_4(%arg0: i32, %arg1: i32) -> (i32, i32) {
    %c0_i32 = arith.constant 0 : i32
    %c0_i32_0 = arith.constant 0 : i32
    return %c0_i32, %arg1 : i32, i32
  }
  func.func @transform_5(%arg0: i32, %arg1: i32) -> (i32, i32) {
    %c0_i32 = arith.constant 0 : i32
    return %arg0, %arg1 : i32, i32
  }
}

module attributes {stable_mosaic.version = 11 : i64} {
  func.func @_nat_attn_kernel(%arg0: i32, %arg1: memref<1x4x64x8xbf16, #tpu.memory_space<vmem>>, %arg2: memref<1x4x64x8xbf16, #tpu.memory_space<vmem>>, %arg3: memref<1x4x64x8xbf16, #tpu.memory_space<vmem>>, %arg4: memref<4x64x64xf32, #tpu.memory_space<vmem>>, %arg5: memref<1x4x64x8xf32, #tpu.memory_space<vmem>>) attributes {dimension_semantics = [#tpu.dimension_semantics<parallel>], iteration_bounds = array<i64: 2>, scalar_prefetch = 0 : i64, scratch_operands = 0 : i64, tpu.core_type = #tpu.core_type<tc>, window_params = [{transform_indices = @transform_0, window_bounds = array<i64: 1, 4, 64, 8>}, {transform_indices = @transform_1, window_bounds = array<i64: 1, 4, 64, 8>}, {transform_indices = @transform_2, window_bounds = array<i64: 1, 4, 64, 8>}, {pipeline_mode = #tpu.pipeline_mode<synchronous>, transform_indices = @transform_3, window_bounds = array<i64: 4, 64, 64>}, {transform_indices = @transform_4, window_bounds = array<i64: 1, 4, 64, 8>}]} {
    %c0 = arith.constant 0 : index
    %c0_0 = arith.constant 0 : index
    %c0_1 = arith.constant 0 : index
    %c0_2 = arith.constant 0 : index
    %0 = vector.load %arg1[%c0, %c0_0, %c0_1, %c0_2] : memref<1x4x64x8xbf16, #tpu.memory_space<vmem>>, vector<1x4x64x8xbf16>
    %1 = vector.shape_cast %0 : vector<1x4x64x8xbf16> to vector<4x64x8xbf16>
    %c0_3 = arith.constant 0 : index
    %c0_4 = arith.constant 0 : index
    %c0_5 = arith.constant 0 : index
    %c0_6 = arith.constant 0 : index
    %2 = vector.load %arg2[%c0_3, %c0_4, %c0_5, %c0_6] : memref<1x4x64x8xbf16, #tpu.memory_space<vmem>>, vector<1x4x64x8xbf16>
    %3 = vector.shape_cast %2 : vector<1x4x64x8xbf16> to vector<4x64x8xbf16>
    %c0_7 = arith.constant 0 : index
    %c0_8 = arith.constant 0 : index
    %c0_9 = arith.constant 0 : index
    %c0_10 = arith.constant 0 : index
    %4 = vector.load %arg3[%c0_7, %c0_8, %c0_9, %c0_10] : memref<1x4x64x8xbf16, #tpu.memory_space<vmem>>, vector<1x4x64x8xbf16>
    %5 = vector.shape_cast %4 : vector<1x4x64x8xbf16> to vector<4x64x8xbf16>
    "tpu.trace_start"() <{level = 10 : i32, message = "hqd,hkd->hqk"}> : () -> ()
    %cst = arith.constant dense<0.000000e+00> : vector<4x64x64xf32>
    %6 = tpu.matmul %1, %3, %cst {dimension_numbers = #tpu.dot_dimension_numbers<[2], [2], [1], [1], [0, 0, 0, 1, 1, 1], [0], [0]>} : vector<4x64x8xbf16>, vector<4x64x8xbf16>, vector<4x64x64xf32> -> vector<4x64x64xf32>
    "tpu.trace_stop"() : () -> ()
    %cst_11 = arith.constant 0.353553385 : f32
    %7 = vector.broadcast %cst_11 : f32 to vector<4x64x64xf32>
    %8 = arith.mulf %6, %7 : vector<4x64x64xf32>
    %c0_12 = arith.constant 0 : index
    %c0_13 = arith.constant 0 : index
    %c0_14 = arith.constant 0 : index
    %9 = vector.load %arg4[%c0_12, %c0_13, %c0_14] : memref<4x64x64xf32, #tpu.memory_space<vmem>>, vector<4x64x64xf32>
    %10 = arith.addf %8, %9 : vector<4x64x64xf32>
    %cst_15 = arith.constant dense<0xFF800000> : vector<4x64xf32>
    %11 = vector.multi_reduction <maximumf>, %10, %cst_15 [2] : vector<4x64x64xf32> to vector<4x64xf32>
    %12 = vector.shape_cast %11 : vector<4x64xf32> to vector<4x64x1xf32>
    %13 = vector.broadcast %12 : vector<4x64x1xf32> to vector<4x64x64xf32>
    %14 = arith.subf %10, %13 : vector<4x64x64xf32>
    %15 = math.exp %14 : vector<4x64x64xf32>
    %cst_16 = arith.constant dense<0.000000e+00> : vector<4x64xf32>
    %16 = vector.multi_reduction <add>, %15, %cst_16 [2] : vector<4x64x64xf32> to vector<4x64xf32>
    %17 = vector.shape_cast %16 : vector<4x64xf32> to vector<4x64x1xf32>
    %18 = tpu.reciprocal %17 {approx = true} : vector<4x64x1xf32> -> vector<4x64x1xf32>
    %19 = vector.broadcast %18 : vector<4x64x1xf32> to vector<4x64x64xf32>
    %20 = arith.mulf %15, %19 : vector<4x64x64xf32>
    %21 = arith.truncf %20 : vector<4x64x64xf32> to vector<4x64x64xbf16>
    "tpu.trace_start"() <{level = 10 : i32, message = "hqk,hkd->hqd"}> : () -> ()
    %cst_17 = arith.constant dense<0.000000e+00> : vector<4x64x8xf32>
    %22 = tpu.matmul %21, %5, %cst_17 {dimension_numbers = #tpu.dot_dimension_numbers<[2], [1], [1], [2], [0, 0, 0, 1, 1, 2], [0], [0]>} : vector<4x64x64xbf16>, vector<4x64x8xbf16>, vector<4x64x8xf32> -> vector<4x64x8xf32>
    "tpu.trace_stop"() : () -> ()
    %c0_18 = arith.constant 0 : index
    %c0_19 = arith.constant 0 : index
    %c0_20 = arith.constant 0 : index
    %c0_21 = arith.constant 0 : index
    %23 = vector.load %arg5[%c0_18, %c0_19, %c0_20, %c0_21] : memref<1x4x64x8xf32, #tpu.memory_space<vmem>>, vector<1x4x64x8xf32>
    %24 = vector.shape_cast %23 : vector<1x4x64x8xf32> to vector<4x64x8xf32>
    %25 = vector.shape_cast %22 : vector<4x64x8xf32> to vector<1x4x64x8xf32>
    tpu.vector_store %arg5[%c0_18, %c0_19, %c0_20, %c0_21], %25 {strides = array<i32>} : memref<1x4x64x8xf32, #tpu.memory_space<vmem>>, vector<1x4x64x8xf32>,
    return
  }
  func.func @transform_0(%arg0: i32) -> (i32, i32, i32, i32) {
    %c0_i32 = arith.constant 0 : i32
    %c0_i32_0 = arith.constant 0 : i32
    %c0_i32_1 = arith.constant 0 : i32
    %c0_i32_2 = arith.constant 0 : i32
    return %arg0, %c0_i32, %c0_i32_0, %c0_i32_1 : i32, i32, i32, i32
  }
  func.func @transform_1(%arg0: i32) -> (i32, i32, i32, i32) {
    %c0_i32 = arith.constant 0 : i32
    %c0_i32_0 = arith.constant 0 : i32
    %c0_i32_1 = arith.constant 0 : i32
    %c0_i32_2 = arith.constant 0 : i32
    return %arg0, %c0_i32, %c0_i32_0, %c0_i32_1 : i32, i32, i32, i32
  }
  func.func @transform_2(%arg0: i32) -> (i32, i32, i32, i32) {
    %c0_i32 = arith.constant 0 : i32
    %c0_i32_0 = arith.constant 0 : i32
    %c0_i32_1 = arith.constant 0 : i32
    %c0_i32_2 = arith.constant 0 : i32
    return %arg0, %c0_i32, %c0_i32_0, %c0_i32_1 : i32, i32, i32, i32
  }
  func.func @transform_3(%arg0: i32) -> (i32, i32, i32) {
    %c0_i32 = arith.constant 0 : i32
    %c0_i32_0 = arith.constant 0 : i32
    %c0_i32_1 = arith.constant 0 : i32
    %c0_i32_2 = arith.constant 0 : i32
    return %c0_i32, %c0_i32_0, %c0_i32_1 : i32, i32, i32
  }
  func.func @transform_4(%arg0: i32) -> (i32, i32, i32, i32) {
    %c0_i32 = arith.constant 0 : i32
    %c0_i32_0 = arith.constant 0 : i32
    %c0_i32_1 = arith.constant 0 : i32
    %c0_i32_2 = arith.constant 0 : i32
    return %arg0, %c0_i32, %c0_i32_0, %c0_i32_1 : i32, i32, i32, i32
  }
}

module attributes {stable_mosaic.version = 11 : i64} {
  func.func @_linear_kernel(%arg0: i32, %arg1: i32, %arg2: memref<128x32xf32, #tpu.memory_space<vmem>>, %arg3: memref<32x32xbf16, #tpu.memory_space<vmem>>, %arg4: memref<1x32xf32, #tpu.memory_space<vmem>>, %arg5: memref<128x32xf32, #tpu.memory_space<vmem>>) attributes {dimension_semantics = [#tpu.dimension_semantics<parallel>, #tpu.dimension_semantics<parallel>], iteration_bounds = array<i64: 1, 1>, scalar_prefetch = 0 : i64, scratch_operands = 0 : i64, tpu.core_type = #tpu.core_type<tc>, window_params = [{transform_indices = @transform_0, window_bounds = array<i64: 128, 32>}, {transform_indices = @transform_1, window_bounds = array<i64: 32, 32>}, {transform_indices = @transform_2, window_bounds = array<i64: 1, 32>}, {transform_indices = @transform_3, window_bounds = array<i64: 128, 32>}]} {
    %c0 = arith.constant 0 : index
    %c0_0 = arith.constant 0 : index
    %0 = vector.load %arg2[%c0, %c0_0] : memref<128x32xf32, #tpu.memory_space<vmem>>, vector<128x32xf32>
    %1 = arith.truncf %0 : vector<128x32xf32> to vector<128x32xbf16>
    %c0_1 = arith.constant 0 : index
    %c0_2 = arith.constant 0 : index
    %2 = vector.load %arg3[%c0_1, %c0_2] : memref<32x32xbf16, #tpu.memory_space<vmem>>, vector<32x32xbf16>
    %cst = arith.constant dense<0.000000e+00> : vector<128x32xf32>
    %3 = tpu.matmul %1, %2, %cst {dimension_numbers = #tpu.dot_dimension_numbers<[1], [0], [0], [1], [0, 0, 1, 1], [], []>} : vector<128x32xbf16>, vector<32x32xbf16>, vector<128x32xf32> -> vector<128x32xf32>
    %c0_3 = arith.constant 0 : index
    %c0_4 = arith.constant 0 : index
    %4 = vector.load %arg4[%c0_3, %c0_4] : memref<1x32xf32, #tpu.memory_space<vmem>>, vector<1x32xf32>
    %5 = vector.broadcast %4 : vector<1x32xf32> to vector<128x32xf32>
    %6 = arith.addf %3, %5 : vector<128x32xf32>
    %c0_5 = arith.constant 0 : index
    %c0_6 = arith.constant 0 : index
    %7 = vector.load %arg5[%c0_5, %c0_6] : memref<128x32xf32, #tpu.memory_space<vmem>>, vector<128x32xf32>
    tpu.vector_store %arg5[%c0_5, %c0_6], %6 {strides = array<i32>} : memref<128x32xf32, #tpu.memory_space<vmem>>, vector<128x32xf32>,
    return
  }
  func.func @transform_0(%arg0: i32, %arg1: i32) -> (i32, i32) {
    %c0_i32 = arith.constant 0 : i32
    %c0_i32_0 = arith.constant 0 : i32
    return %arg0, %c0_i32 : i32, i32
  }
  func.func @transform_1(%arg0: i32, %arg1: i32) -> (i32, i32) {
    %c0_i32 = arith.constant 0 : i32
    %c0_i32_0 = arith.constant 0 : i32
    return %c0_i32, %arg1 : i32, i32
  }
  func.func @transform_2(%arg0: i32, %arg1: i32) -> (i32, i32) {
    %c0_i32 = arith.constant 0 : i32
    %c0_i32_0 = arith.constant 0 : i32
    return %c0_i32, %arg1 : i32, i32
  }
  func.func @transform_3(%arg0: i32, %arg1: i32) -> (i32, i32) {
    %c0_i32 = arith.constant 0 : i32
    return %arg0, %arg1 : i32, i32
  }
}

module attributes {stable_mosaic.version = 11 : i64} {
  func.func @_merge_kernel(%arg0: i32, %arg1: memref<8x12x8xf32, #tpu.memory_space<vmem>>, %arg2: memref<8x4x8xf32, #tpu.memory_space<vmem>>, %arg3: memref<8x12x32xf32, #tpu.memory_space<vmem>>, %arg4: memref<8x4x32xf32, #tpu.memory_space<vmem>>, %arg5: memref<8x4x32xf32, #tpu.memory_space<vmem>>) attributes {dimension_semantics = [#tpu.dimension_semantics<parallel>], iteration_bounds = array<i64: 1>, scalar_prefetch = 0 : i64, scratch_operands = 0 : i64, tpu.core_type = #tpu.core_type<tc>, window_params = [{transform_indices = @transform_0, window_bounds = array<i64: 8, 12, 8>}, {transform_indices = @transform_1, window_bounds = array<i64: 8, 4, 8>}, {transform_indices = @transform_2, window_bounds = array<i64: 8, 12, 32>}, {transform_indices = @transform_3, window_bounds = array<i64: 8, 4, 32>}, {transform_indices = @transform_4, window_bounds = array<i64: 8, 4, 32>}]} {
    %c0 = arith.constant 0 : index
    %c0_0 = arith.constant 0 : index
    %c0_1 = arith.constant 0 : index
    %0 = vector.load %arg1[%c0, %c0_0, %c0_1] : memref<8x12x8xf32, #tpu.memory_space<vmem>>, vector<8x12x8xf32>
    %c0_2 = arith.constant 0 : index
    %c0_3 = arith.constant 0 : index
    %c0_4 = arith.constant 0 : index
    %1 = vector.load %arg2[%c0_2, %c0_3, %c0_4] : memref<8x4x8xf32, #tpu.memory_space<vmem>>, vector<8x4x8xf32>
    %2 = arith.mulf %0, %0 : vector<8x12x8xf32>
    %cst = arith.constant dense<0.000000e+00> : vector<8x12xf32>
    %3 = vector.multi_reduction <add>, %2, %cst [2] : vector<8x12x8xf32> to vector<8x12xf32>
    %4 = vector.shape_cast %3 : vector<8x12xf32> to vector<8x12x1xf32>
    %cst_5 = arith.constant 9.99999996E-13 : f32
    %5 = vector.broadcast %cst_5 : f32 to vector<8x12x1xf32>
    %6 = arith.addf %4, %5 : vector<8x12x1xf32>
    %7 = math.rsqrt %6 : vector<8x12x1xf32>
    %8 = vector.broadcast %7 : vector<8x12x1xf32> to vector<8x12x8xf32>
    %9 = arith.mulf %0, %8 : vector<8x12x8xf32>
    %10 = arith.mulf %1, %1 : vector<8x4x8xf32>
    %cst_6 = arith.constant dense<0.000000e+00> : vector<8x4xf32>
    %11 = vector.multi_reduction <add>, %10, %cst_6 [2] : vector<8x4x8xf32> to vector<8x4xf32>
    %12 = vector.shape_cast %11 : vector<8x4xf32> to vector<8x4x1xf32>
    %cst_7 = arith.constant 9.99999996E-13 : f32
    %13 = vector.broadcast %cst_7 : f32 to vector<8x4x1xf32>
    %14 = arith.addf %12, %13 : vector<8x4x1xf32>
    %15 = math.rsqrt %14 : vector<8x4x1xf32>
    %16 = vector.broadcast %15 : vector<8x4x1xf32> to vector<8x4x8xf32>
    %17 = arith.mulf %1, %16 : vector<8x4x8xf32>
    %18 = arith.truncf %9 : vector<8x12x8xf32> to vector<8x12x8xbf16>
    %19 = arith.truncf %17 : vector<8x4x8xf32> to vector<8x4x8xbf16>
    "tpu.trace_start"() <{level = 10 : i32, message = "wrc,wdc->wrd"}> : () -> ()
    %cst_8 = arith.constant dense<0.000000e+00> : vector<8x12x4xf32>
    %20 = tpu.matmul %18, %19, %cst_8 {dimension_numbers = #tpu.dot_dimension_numbers<[2], [2], [1], [1], [0, 0, 0, 1, 1, 1], [0], [0]>} : vector<8x12x8xbf16>, vector<8x4x8xbf16>, vector<8x12x4xf32> -> vector<8x12x4xf32>
    "tpu.trace_stop"() : () -> ()
    %21 = tpu.iota {dimensions = array<i32: 1>} : vector<12x4xi32>
    %22 = vector.shape_cast %21 : vector<12x4xi32> to vector<1x12x4xi32>
    %cst_9 = arith.constant dense<0xFF800000> : vector<8x12xf32>
    %23 = vector.multi_reduction <maximumf>, %20, %cst_9 [2] : vector<8x12x4xf32> to vector<8x12xf32>
    %24 = vector.shape_cast %23 : vector<8x12xf32> to vector<8x12x1xf32>
    %25 = vector.broadcast %24 : vector<8x12x1xf32> to vector<8x12x4xf32>
    %26 = arith.cmpf oge, %20, %25 : vector<8x12x4xf32>
    %c4_i32 = arith.constant 4 : i32
    %27 = vector.shape_cast %22 : vector<1x12x4xi32> to vector<1x12x4xi32>
    %28 = vector.broadcast %27 : vector<1x12x4xi32> to vector<8x12x4xi32>
    %29 = vector.broadcast %c4_i32 : i32 to vector<8x12x4xi32>
    %30 = arith.select %26, %28, %29 : vector<8x12x4xi1>, vector<8x12x4xi32>
    %cst_10 = arith.constant dense<2147483647> : vector<8x12xi32>
    %31 = vector.multi_reduction <minsi>, %30, %cst_10 [2] : vector<8x12x4xi32> to vector<8x12xi32>
    %32 = vector.shape_cast %31 : vector<8x12xi32> to vector<8x12x1xi32>
    %33 = vector.broadcast %22 : vector<1x12x4xi32> to vector<8x12x4xi32>
    %34 = vector.broadcast %32 : vector<8x12x1xi32> to vector<8x12x4xi32>
    %35 = arith.cmpi eq, %33, %34 : vector<8x12x4xi32>
    %36 = arith.extui %35 : vector<8x12x4xi1> to vector<8x12x4xi32>
    %37 = arith.sitofp %36 : vector<8x12x4xi32> to vector<8x12x4xf32>
    %c0_11 = arith.constant 0 : index
    %c0_12 = arith.constant 0 : index
    %c0_13 = arith.constant 0 : index
    %38 = vector.load %arg3[%c0_11, %c0_12, %c0_13] : memref<8x12x32xf32, #tpu.memory_space<vmem>>, vector<8x12x32xf32>
    %c0_14 = arith.constant 0 : index
    %c0_15 = arith.constant 0 : index
    %c0_16 = arith.constant 0 : index
    %39 = vector.load %arg4[%c0_14, %c0_15, %c0_16] : memref<8x4x32xf32, #tpu.memory_space<vmem>>, vector<8x4x32xf32>
    %40 = arith.truncf %37 : vector<8x12x4xf32> to vector<8x12x4xbf16>
    %41 = arith.truncf %38 : vector<8x12x32xf32> to vector<8x12x32xbf16>
    "tpu.trace_start"() <{level = 10 : i32, message = "wrd,wrc->wdc"}> : () -> ()
    %cst_17 = arith.constant dense<0.000000e+00> : vector<8x4x32xf32>
    %42 = tpu.matmul %40, %41, %cst_17 {dimension_numbers = #tpu.dot_dimension_numbers<[1], [1], [2], [2], [0, 0, 0, 2, 1, 2], [0], [0]>} : vector<8x12x4xbf16>, vector<8x12x32xbf16>, vector<8x4x32xf32> -> vector<8x4x32xf32>
    "tpu.trace_stop"() : () -> ()
    %cst_18 = arith.constant dense<0.000000e+00> : vector<8x4xf32>
    %43 = vector.multi_reduction <add>, %37, %cst_18 [1] : vector<8x12x4xf32> to vector<8x4xf32>
    %44 = vector.shape_cast %43 : vector<8x4xf32> to vector<8x4x1xf32>
    %45 = arith.addf %39, %42 : vector<8x4x32xf32>
    %cst_19 = arith.constant 1.000000e+00 : f32
    %46 = vector.broadcast %cst_19 : f32 to vector<8x4x1xf32>
    %47 = arith.addf %46, %44 : vector<8x4x1xf32>
    %48 = vector.broadcast %47 : vector<8x4x1xf32> to vector<8x4x32xf32>
    %49 = arith.divf %45, %48 : vector<8x4x32xf32>
    %c0_20 = arith.constant 0 : index
    %c0_21 = arith.constant 0 : index
    %c0_22 = arith.constant 0 : index
    %50 = vector.load %arg5[%c0_20, %c0_21, %c0_22] : memref<8x4x32xf32, #tpu.memory_space<vmem>>, vector<8x4x32xf32>
    tpu.vector_store %arg5[%c0_20, %c0_21, %c0_22], %49 {strides = array<i32>} : memref<8x4x32xf32, #tpu.memory_space<vmem>>, vector<8x4x32xf32>,
    return
  }
  func.func @transform_0(%arg0: i32) -> (i32, i32, i32) {
    %c0_i32 = arith.constant 0 : i32
    %c0_i32_0 = arith.constant 0 : i32
    %c0_i32_1 = arith.constant 0 : i32
    return %arg0, %c0_i32, %c0_i32_0 : i32, i32, i32
  }
  func.func @transform_1(%arg0: i32) -> (i32, i32, i32) {
    %c0_i32 = arith.constant 0 : i32
    %c0_i32_0 = arith.constant 0 : i32
    %c0_i32_1 = arith.constant 0 : i32
    return %arg0, %c0_i32, %c0_i32_0 : i32, i32, i32
  }
  func.func @transform_2(%arg0: i32) -> (i32, i32, i32) {
    %c0_i32 = arith.constant 0 : i32
    %c0_i32_0 = arith.constant 0 : i32
    %c0_i32_1 = arith.constant 0 : i32
    return %arg0, %c0_i32, %c0_i32_0 : i32, i32, i32
  }
  func.func @transform_3(%arg0: i32) -> (i32, i32, i32) {
    %c0_i32 = arith.constant 0 : i32
    %c0_i32_0 = arith.constant 0 : i32
    %c0_i32_1 = arith.constant 0 : i32
    return %arg0, %c0_i32, %c0_i32_0 : i32, i32, i32
  }
  func.func @transform_4(%arg0: i32) -> (i32, i32, i32) {
    %c0_i32 = arith.constant 0 : i32
    %c0_i32_0 = arith.constant 0 : i32
    %c0_i32_1 = arith.constant 0 : i32
    return %arg0, %c0_i32, %c0_i32_0 : i32, i32, i32
  }
}

module attributes {stable_mosaic.version = 11 : i64} {
  func.func @_ln_linear_kernel(%arg0: i32, %arg1: i32, %arg2: memref<32x32xf32, #tpu.memory_space<vmem>>, %arg3: memref<1x32xf32, #tpu.memory_space<vmem>>, %arg4: memref<1x32xf32, #tpu.memory_space<vmem>>, %arg5: memref<32x128xbf16, #tpu.memory_space<vmem>>, %arg6: memref<1x128xf32, #tpu.memory_space<vmem>>, %arg7: memref<32x128xf32, #tpu.memory_space<vmem>>) attributes {dimension_semantics = [#tpu.dimension_semantics<parallel>, #tpu.dimension_semantics<parallel>], iteration_bounds = array<i64: 1, 1>, scalar_prefetch = 0 : i64, scratch_operands = 0 : i64, tpu.core_type = #tpu.core_type<tc>, window_params = [{transform_indices = @transform_0, window_bounds = array<i64: 32, 32>}, {pipeline_mode = #tpu.pipeline_mode<synchronous>, transform_indices = @transform_1, window_bounds = array<i64: 1, 32>}, {pipeline_mode = #tpu.pipeline_mode<synchronous>, transform_indices = @transform_2, window_bounds = array<i64: 1, 32>}, {transform_indices = @transform_3, window_bounds = array<i64: 32, 128>}, {transform_indices = @transform_4, window_bounds = array<i64: 1, 128>}, {transform_indices = @transform_5, window_bounds = array<i64: 32, 128>}]} {
    %c0 = arith.constant 0 : index
    %c0_0 = arith.constant 0 : index
    %0 = vector.load %arg2[%c0, %c0_0] : memref<32x32xf32, #tpu.memory_space<vmem>>, vector<32x32xf32>
    %cst = arith.constant dense<0.000000e+00> : vector<32xf32>
    %1 = vector.multi_reduction <add>, %0, %cst [1] : vector<32x32xf32> to vector<32xf32>
    %2 = vector.shape_cast %1 : vector<32xf32> to vector<32x1xf32>
    %cst_1 = arith.constant 3.200000e+01 : f32
    %3 = vector.broadcast %cst_1 : f32 to vector<32x1xf32>
    %4 = arith.divf %2, %3 : vector<32x1xf32>
    %5 = vector.broadcast %4 : vector<32x1xf32> to vector<32x32xf32>
    %6 = arith.subf %0, %5 : vector<32x32xf32>
    %7 = arith.mulf %6, %6 : vector<32x32xf32>
    %cst_2 = arith.constant dense<0.000000e+00> : vector<32xf32>
    %8 = vector.multi_reduction <add>, %7, %cst_2 [1] : vector<32x32xf32> to vector<32xf32>
    %9 = vector.shape_cast %8 : vector<32xf32> to vector<32x1xf32>
    %cst_3 = arith.constant 3.200000e+01 : f32
    %10 = vector.broadcast %cst_3 : f32 to vector<32x1xf32>
    %11 = arith.divf %9, %10 : vector<32x1xf32>
    %cst_4 = arith.constant 9.99999974E-6 : f32
    %12 = vector.broadcast %cst_4 : f32 to vector<32x1xf32>
    %13 = arith.addf %11, %12 : vector<32x1xf32>
    %14 = math.rsqrt %13 : vector<32x1xf32>
    %15 = vector.broadcast %14 : vector<32x1xf32> to vector<32x32xf32>
    %16 = arith.mulf %6, %15 : vector<32x32xf32>
    %c0_5 = arith.constant 0 : index
    %c0_6 = arith.constant 0 : index
    %17 = vector.load %arg3[%c0_5, %c0_6] : memref<1x32xf32, #tpu.memory_space<vmem>>, vector<1x32xf32>
    %18 = vector.broadcast %17 : vector<1x32xf32> to vector<32x32xf32>
    %19 = arith.mulf %16, %18 : vector<32x32xf32>
    %c0_7 = arith.constant 0 : index
    %c0_8 = arith.constant 0 : index
    %20 = vector.load %arg4[%c0_7, %c0_8] : memref<1x32xf32, #tpu.memory_space<vmem>>, vector<1x32xf32>
    %21 = vector.broadcast %20 : vector<1x32xf32> to vector<32x32xf32>
    %22 = arith.addf %19, %21 : vector<32x32xf32>
    %23 = arith.truncf %22 : vector<32x32xf32> to vector<32x32xbf16>
    %c0_9 = arith.constant 0 : index
    %c0_10 = arith.constant 0 : index
    %24 = vector.load %arg5[%c0_9, %c0_10] : memref<32x128xbf16, #tpu.memory_space<vmem>>, vector<32x128xbf16>
    %cst_11 = arith.constant dense<0.000000e+00> : vector<32x128xf32>
    %25 = tpu.matmul %23, %24, %cst_11 {dimension_numbers = #tpu.dot_dimension_numbers<[1], [0], [0], [1], [0, 0, 1, 1], [], []>} : vector<32x32xbf16>, vector<32x128xbf16>, vector<32x128xf32> -> vector<32x128xf32>
    %c0_12 = arith.constant 0 : index
    %c0_13 = arith.constant 0 : index
    %26 = vector.load %arg6[%c0_12, %c0_13] : memref<1x128xf32, #tpu.memory_space<vmem>>, vector<1x128xf32>
    %27 = vector.broadcast %26 : vector<1x128xf32> to vector<32x128xf32>
    %28 = arith.addf %25, %27 : vector<32x128xf32>
    %c0_14 = arith.constant 0 : index
    %c0_15 = arith.constant 0 : index
    %29 = vector.load %arg7[%c0_14, %c0_15] : memref<32x128xf32, #tpu.memory_space<vmem>>, vector<32x128xf32>
    tpu.vector_store %arg7[%c0_14, %c0_15], %28 {strides = array<i32>} : memref<32x128xf32, #tpu.memory_space<vmem>>, vector<32x128xf32>,
    return
  }
  func.func @transform_0(%arg0: i32, %arg1: i32) -> (i32, i32) {
    %c0_i32 = arith.constant 0 : i32
    %c0_i32_0 = arith.constant 0 : i32
    return %arg0, %c0_i32 : i32, i32
  }
  func.func @transform_1(%arg0: i32, %arg1: i32) -> (i32, i32) {
    %c0_i32 = arith.constant 0 : i32
    %c0_i32_0 = arith.constant 0 : i32
    %c0_i32_1 = arith.constant 0 : i32
    return %c0_i32, %c0_i32_0 : i32, i32
  }
  func.func @transform_2(%arg0: i32, %arg1: i32) -> (i32, i32) {
    %c0_i32 = arith.constant 0 : i32
    %c0_i32_0 = arith.constant 0 : i32
    %c0_i32_1 = arith.constant 0 : i32
    return %c0_i32, %c0_i32_0 : i32, i32
  }
  func.func @transform_3(%arg0: i32, %arg1: i32) -> (i32, i32) {
    %c0_i32 = arith.constant 0 : i32
    %c0_i32_0 = arith.constant 0 : i32
    return %c0_i32, %arg1 : i32, i32
  }
  func.func @transform_4(%arg0: i32, %arg1: i32) -> (i32, i32) {
    %c0_i32 = arith.constant 0 : i32
    %c0_i32_0 = arith.constant 0 : i32
    return %c0_i32, %arg1 : i32, i32
  }
  func.func @transform_5(%arg0: i32, %arg1: i32) -> (i32, i32) {
    %c0_i32 = arith.constant 0 : i32
    return %arg0, %arg1 : i32, i32
  }
}

module attributes {stable_mosaic.version = 11 : i64} {
  func.func @_linear_kernel(%arg0: i32, %arg1: i32, %arg2: memref<32x128xf32, #tpu.memory_space<vmem>>, %arg3: memref<128x32xbf16, #tpu.memory_space<vmem>>, %arg4: memref<1x32xf32, #tpu.memory_space<vmem>>, %arg5: memref<32x32xf32, #tpu.memory_space<vmem>>) attributes {dimension_semantics = [#tpu.dimension_semantics<parallel>, #tpu.dimension_semantics<parallel>], iteration_bounds = array<i64: 1, 1>, scalar_prefetch = 0 : i64, scratch_operands = 0 : i64, tpu.core_type = #tpu.core_type<tc>, window_params = [{transform_indices = @transform_0, window_bounds = array<i64: 32, 128>}, {transform_indices = @transform_1, window_bounds = array<i64: 128, 32>}, {transform_indices = @transform_2, window_bounds = array<i64: 1, 32>}, {transform_indices = @transform_3, window_bounds = array<i64: 32, 32>}]} {
    %c0 = arith.constant 0 : index
    %c0_0 = arith.constant 0 : index
    %0 = vector.load %arg2[%c0, %c0_0] : memref<32x128xf32, #tpu.memory_space<vmem>>, vector<32x128xf32>
    %1 = arith.truncf %0 : vector<32x128xf32> to vector<32x128xbf16>
    %c0_1 = arith.constant 0 : index
    %c0_2 = arith.constant 0 : index
    %2 = vector.load %arg3[%c0_1, %c0_2] : memref<128x32xbf16, #tpu.memory_space<vmem>>, vector<128x32xbf16>
    %cst = arith.constant dense<0.000000e+00> : vector<32x32xf32>
    %3 = tpu.matmul %1, %2, %cst {dimension_numbers = #tpu.dot_dimension_numbers<[1], [0], [0], [1], [0, 0, 1, 1], [], []>} : vector<32x128xbf16>, vector<128x32xbf16>, vector<32x32xf32> -> vector<32x32xf32>
    %c0_3 = arith.constant 0 : index
    %c0_4 = arith.constant 0 : index
    %4 = vector.load %arg4[%c0_3, %c0_4] : memref<1x32xf32, #tpu.memory_space<vmem>>, vector<1x32xf32>
    %5 = vector.broadcast %4 : vector<1x32xf32> to vector<32x32xf32>
    %6 = arith.addf %3, %5 : vector<32x32xf32>
    %c0_5 = arith.constant 0 : index
    %c0_6 = arith.constant 0 : index
    %7 = vector.load %arg5[%c0_5, %c0_6] : memref<32x32xf32, #tpu.memory_space<vmem>>, vector<32x32xf32>
    tpu.vector_store %arg5[%c0_5, %c0_6], %6 {strides = array<i32>} : memref<32x32xf32, #tpu.memory_space<vmem>>, vector<32x32xf32>,
    return
  }
  func.func @transform_0(%arg0: i32, %arg1: i32) -> (i32, i32) {
    %c0_i32 = arith.constant 0 : i32
    %c0_i32_0 = arith.constant 0 : i32
    return %arg0, %c0_i32 : i32, i32
  }
  func.func @transform_1(%arg0: i32, %arg1: i32) -> (i32, i32) {
    %c0_i32 = arith.constant 0 : i32
    %c0_i32_0 = arith.constant 0 : i32
    return %c0_i32, %arg1 : i32, i32
  }
  func.func @transform_2(%arg0: i32, %arg1: i32) -> (i32, i32) {
    %c0_i32 = arith.constant 0 : i32
    %c0_i32_0 = arith.constant 0 : i32
    return %c0_i32, %arg1 : i32, i32
  }
  func.func @transform_3(%arg0: i32, %arg1: i32) -> (i32, i32) {
    %c0_i32 = arith.constant 0 : i32
    return %arg0, %arg1 : i32, i32
  }
}

module attributes {stable_mosaic.version = 11 : i64} {
  func.func @_linear_kernel(%arg0: i32, %arg1: i32, %arg2: memref<32x32xf32, #tpu.memory_space<vmem>>, %arg3: memref<32x128xbf16, #tpu.memory_space<vmem>>, %arg4: memref<1x128xf32, #tpu.memory_space<vmem>>, %arg5: memref<32x128xf32, #tpu.memory_space<vmem>>) attributes {dimension_semantics = [#tpu.dimension_semantics<parallel>, #tpu.dimension_semantics<parallel>], iteration_bounds = array<i64: 1, 1>, scalar_prefetch = 0 : i64, scratch_operands = 0 : i64, tpu.core_type = #tpu.core_type<tc>, window_params = [{transform_indices = @transform_0, window_bounds = array<i64: 32, 32>}, {transform_indices = @transform_1, window_bounds = array<i64: 32, 128>}, {transform_indices = @transform_2, window_bounds = array<i64: 1, 128>}, {transform_indices = @transform_3, window_bounds = array<i64: 32, 128>}]} {
    %c0 = arith.constant 0 : index
    %c0_0 = arith.constant 0 : index
    %0 = vector.load %arg2[%c0, %c0_0] : memref<32x32xf32, #tpu.memory_space<vmem>>, vector<32x32xf32>
    %1 = arith.truncf %0 : vector<32x32xf32> to vector<32x32xbf16>
    %c0_1 = arith.constant 0 : index
    %c0_2 = arith.constant 0 : index
    %2 = vector.load %arg3[%c0_1, %c0_2] : memref<32x128xbf16, #tpu.memory_space<vmem>>, vector<32x128xbf16>
    %cst = arith.constant dense<0.000000e+00> : vector<32x128xf32>
    %3 = tpu.matmul %1, %2, %cst {dimension_numbers = #tpu.dot_dimension_numbers<[1], [0], [0], [1], [0, 0, 1, 1], [], []>} : vector<32x32xbf16>, vector<32x128xbf16>, vector<32x128xf32> -> vector<32x128xf32>
    %c0_3 = arith.constant 0 : index
    %c0_4 = arith.constant 0 : index
    %4 = vector.load %arg4[%c0_3, %c0_4] : memref<1x128xf32, #tpu.memory_space<vmem>>, vector<1x128xf32>
    %5 = vector.broadcast %4 : vector<1x128xf32> to vector<32x128xf32>
    %6 = arith.addf %3, %5 : vector<32x128xf32>
    %c0_5 = arith.constant 0 : index
    %c0_6 = arith.constant 0 : index
    %7 = vector.load %arg5[%c0_5, %c0_6] : memref<32x128xf32, #tpu.memory_space<vmem>>, vector<32x128xf32>
    tpu.vector_store %arg5[%c0_5, %c0_6], %6 {strides = array<i32>} : memref<32x128xf32, #tpu.memory_space<vmem>>, vector<32x128xf32>,
    return
  }
  func.func @transform_0(%arg0: i32, %arg1: i32) -> (i32, i32) {
    %c0_i32 = arith.constant 0 : i32
    %c0_i32_0 = arith.constant 0 : i32
    return %arg0, %c0_i32 : i32, i32
  }
  func.func @transform_1(%arg0: i32, %arg1: i32) -> (i32, i32) {
    %c0_i32 = arith.constant 0 : i32
    %c0_i32_0 = arith.constant 0 : i32
    return %c0_i32, %arg1 : i32, i32
  }
  func.func @transform_2(%arg0: i32, %arg1: i32) -> (i32, i32) {
    %c0_i32 = arith.constant 0 : i32
    %c0_i32_0 = arith.constant 0 : i32
    return %c0_i32, %arg1 : i32, i32
  }
  func.func @transform_3(%arg0: i32, %arg1: i32) -> (i32, i32) {
    %c0_i32 = arith.constant 0 : i32
    return %arg0, %arg1 : i32, i32
  }
}

module attributes {stable_mosaic.version = 11 : i64} {
  func.func @_linear_kernel(%arg0: i32, %arg1: i32, %arg2: memref<32x128xf32, #tpu.memory_space<vmem>>, %arg3: memref<128x64xbf16, #tpu.memory_space<vmem>>, %arg4: memref<1x64xf32, #tpu.memory_space<vmem>>, %arg5: memref<32x64xf32, #tpu.memory_space<vmem>>) attributes {dimension_semantics = [#tpu.dimension_semantics<parallel>, #tpu.dimension_semantics<parallel>], iteration_bounds = array<i64: 1, 1>, scalar_prefetch = 0 : i64, scratch_operands = 0 : i64, tpu.core_type = #tpu.core_type<tc>, window_params = [{transform_indices = @transform_0, window_bounds = array<i64: 32, 128>}, {transform_indices = @transform_1, window_bounds = array<i64: 128, 64>}, {transform_indices = @transform_2, window_bounds = array<i64: 1, 64>}, {transform_indices = @transform_3, window_bounds = array<i64: 32, 64>}]} {
    %c0 = arith.constant 0 : index
    %c0_0 = arith.constant 0 : index
    %0 = vector.load %arg2[%c0, %c0_0] : memref<32x128xf32, #tpu.memory_space<vmem>>, vector<32x128xf32>
    %1 = arith.truncf %0 : vector<32x128xf32> to vector<32x128xbf16>
    %c0_1 = arith.constant 0 : index
    %c0_2 = arith.constant 0 : index
    %2 = vector.load %arg3[%c0_1, %c0_2] : memref<128x64xbf16, #tpu.memory_space<vmem>>, vector<128x64xbf16>
    %cst = arith.constant dense<0.000000e+00> : vector<32x64xf32>
    %3 = tpu.matmul %1, %2, %cst {dimension_numbers = #tpu.dot_dimension_numbers<[1], [0], [0], [1], [0, 0, 1, 1], [], []>} : vector<32x128xbf16>, vector<128x64xbf16>, vector<32x64xf32> -> vector<32x64xf32>
    %c0_3 = arith.constant 0 : index
    %c0_4 = arith.constant 0 : index
    %4 = vector.load %arg4[%c0_3, %c0_4] : memref<1x64xf32, #tpu.memory_space<vmem>>, vector<1x64xf32>
    %5 = vector.broadcast %4 : vector<1x64xf32> to vector<32x64xf32>
    %6 = arith.addf %3, %5 : vector<32x64xf32>
    %c0_5 = arith.constant 0 : index
    %c0_6 = arith.constant 0 : index
    %7 = vector.load %arg5[%c0_5, %c0_6] : memref<32x64xf32, #tpu.memory_space<vmem>>, vector<32x64xf32>
    tpu.vector_store %arg5[%c0_5, %c0_6], %6 {strides = array<i32>} : memref<32x64xf32, #tpu.memory_space<vmem>>, vector<32x64xf32>,
    return
  }
  func.func @transform_0(%arg0: i32, %arg1: i32) -> (i32, i32) {
    %c0_i32 = arith.constant 0 : i32
    %c0_i32_0 = arith.constant 0 : i32
    return %arg0, %c0_i32 : i32, i32
  }
  func.func @transform_1(%arg0: i32, %arg1: i32) -> (i32, i32) {
    %c0_i32 = arith.constant 0 : i32
    %c0_i32_0 = arith.constant 0 : i32
    return %c0_i32, %arg1 : i32, i32
  }
  func.func @transform_2(%arg0: i32, %arg1: i32) -> (i32, i32) {
    %c0_i32 = arith.constant 0 : i32
    %c0_i32_0 = arith.constant 0 : i32
    return %c0_i32, %arg1 : i32, i32
  }
  func.func @transform_3(%arg0: i32, %arg1: i32) -> (i32, i32) {
    %c0_i32 = arith.constant 0 : i32
    return %arg0, %arg1 : i32, i32
  }
}

</mosaic_0001>

<llo_original>
// kernel: block_forward.8
$region0: #{block_forward.8}
  #allocation0 [shape = 'u32[]', space=smem, size = 0x4, offset = 0x4, fixed_abs, tag = 'smem constant byte address 0x4 - core index']
  #allocation1 [shape = 'u32[144,128]{1,0:T(1,128)}', space=vmem, size = 0x12000, scoped, tag = 'internal scratch']
  %s0 = inlined_call_operand.vmem [shape: f32[128,32], index: 0, kind: input, shape index: {}]
  %s1 = inlined_call_operand.vmem [shape: f32[1,32], index: 1, kind: input, shape index: {}]
  %s2 = inlined_call_operand.vmem [shape: f32[1,32], index: 2, kind: input, shape index: {}]
  %s3 = inlined_call_operand.vmem [shape: bf16[32,96], index: 3, kind: input, shape index: {}]
  %s4 = inlined_call_operand.vmem [shape: f32[1,96], index: 4, kind: input, shape index: {}]
  %s5 = inlined_call_operand.vmem [shape: bf16[128,96], index: 5, kind: output, shape index: {}]
  %s6 = sld [smem:[#allocation0]]
  $region30: #{block_forward.8} parent=0
    _
  %s8 = ssub.s32 1, %s6
  %s9 = scalar_select 0, %s8, %s6
  // Predicated region
  $region2: #{block_forward.8} parent=0 // pred_check
    _
  $region3: #{block_forward.8} parent=0 // pred_check_branch
    %11 = sbr.rel (0) target = $region5
  $region4: #{block_forward.8} parent=0 // pred_region
    _
  $region5: #{block_forward.8} parent=0 // pred_fallthru
    _
  // Predicated region
  $region6: #{block_forward.8} parent=0 // pred_check
    _
  $region7: #{block_forward.8} parent=0 // pred_check_branch
    %13 = sbr.rel (0) target = $region9
  $region8: #{block_forward.8} parent=0 // pred_region
    _
  $region9: #{block_forward.8} parent=0 // pred_fallthru
    _
  // Predicated region
  $region10: #{block_forward.8} parent=0 // pred_check
    _
  $region11: #{block_forward.8} parent=0 // pred_check_branch
    %15 = sbr.rel (0) target = $region13
  $region12: #{block_forward.8} parent=0 // pred_region
    _
  $region13: #{block_forward.8} parent=0 // pred_fallthru
    _
  // Predicated region
  $region14: #{block_forward.8} parent=0 // pred_check
    _
  $region15: #{block_forward.8} parent=0 // pred_check_branch
    %17 = sbr.rel (0) target = $region17
  $region16: #{block_forward.8} parent=0 // pred_region
    _
  $region17: #{block_forward.8} parent=0 // pred_fallthru
    _
  // Predicated region
  $region18: #{block_forward.8} parent=0 // pred_check
    _
  $region19: #{block_forward.8} parent=0 // pred_check_branch
    %19 = sbr.rel (0) target = $region21
  $region20: #{block_forward.8} parent=0 // pred_region
    _
  $region21: #{block_forward.8} parent=0 // pred_fallthru
    _
  %v21 = vld [vmem:[%s0] sm:$0xff]
  %v22 = vld [vmem:[%s0 + $0x8] sm:$0xff]
  %v23 = vld [vmem:[%s0 + $0x10] sm:$0xff]
  %v24 = vld [vmem:[%s0 + $0x18] sm:$0xff]
  %v25 = vld [vmem:[%s0 + $0x20] sm:$0xff]
  %v26 = vld [vmem:[%s0 + $0x28] sm:$0xff]
  %v27 = vld [vmem:[%s0 + $0x30] sm:$0xff]
  %v28 = vld [vmem:[%s0 + $0x38] sm:$0xff]
  %v29 = vld [vmem:[%s0 + $0x40] sm:$0xff]
  %v30 = vld [vmem:[%s0 + $0x48] sm:$0xff]
  %v31 = vld [vmem:[%s0 + $0x50] sm:$0xff]
  %v32 = vld [vmem:[%s0 + $0x58] sm:$0xff]
  %v33 = vld [vmem:[%s0 + $0x60] sm:$0xff]
  %v34 = vld [vmem:[%s0 + $0x68] sm:$0xff]
  %v35 = vld [vmem:[%s0 + $0x70] sm:$0xff]
  %v36 = vld [vmem:[%s0 + $0x78] sm:$0xff]
  %vm37 = vcmask 261120
  %v38 = vsel %vm37, %v21, 0.0
  %39 = vadd.xlane.f32.xlu0 %v38
  %v40 = vpop.xlane.xlu0 %39
  %v41 = vsel %vm37, %v22, 0.0
  %42 = vadd.xlane.f32.xlu0 %v41
  %v43 = vpop.xlane.xlu0 %42
  %v44 = vsel %vm37, %v23, 0.0
  %45 = vadd.xlane.f32.xlu0 %v44
  %v46 = vpop.xlane.xlu0 %45
  %v47 = vsel %vm37, %v24, 0.0
  %48 = vadd.xlane.f32.xlu0 %v47
  %v49 = vpop.xlane.xlu0 %48
  %v50 = vsel %vm37, %v25, 0.0
  %51 = vadd.xlane.f32.xlu0 %v50
  %v52 = vpop.xlane.xlu0 %51
  %v53 = vsel %vm37, %v26, 0.0
  %54 = vadd.xlane.f32.xlu0 %v53
  %v55 = vpop.xlane.xlu0 %54
  %v56 = vsel %vm37, %v27, 0.0
  %57 = vadd.xlane.f32.xlu0 %v56
  %v58 = vpop.xlane.xlu0 %57
  %v59 = vsel %vm37, %v28, 0.0
  %60 = vadd.xlane.f32.xlu0 %v59
  %v61 = vpop.xlane.xlu0 %60
  %v62 = vsel %vm37, %v29, 0.0
  %63 = vadd.xlane.f32.xlu0 %v62
  %v64 = vpop.xlane.xlu0 %63
  %v65 = vsel %vm37, %v30, 0.0
  %66 = vadd.xlane.f32.xlu0 %v65
  %v67 = vpop.xlane.xlu0 %66
  %v68 = vsel %vm37, %v31, 0.0
  %69 = vadd.xlane.f32.xlu0 %v68
  %v70 = vpop.xlane.xlu0 %69
  %v71 = vsel %vm37, %v32, 0.0
  %72 = vadd.xlane.f32.xlu0 %v71
  %v73 = vpop.xlane.xlu0 %72
  %v74 = vsel %vm37, %v33, 0.0
  %75 = vadd.xlane.f32.xlu0 %v74
  %v76 = vpop.xlane.xlu0 %75
  %v77 = vsel %vm37, %v34, 0.0
  %78 = vadd.xlane.f32.xlu0 %v77
  %v79 = vpop.xlane.xlu0 %78
  %v80 = vsel %vm37, %v35, 0.0
  %81 = vadd.xlane.f32.xlu0 %v80
  %v82 = vpop.xlane.xlu0 %81
  %v83 = vsel %vm37, %v36, 0.0
  %84 = vadd.xlane.f32.xlu0 %v83
  %v85 = vpop.xlane.xlu0 %84
  %v86 = vrcp.pop 32.0
  %v87 = vmul.f32 %v40, %v86
  %v88 = vmul.f32 %v43, %v86
  %v89 = vmul.f32 %v46, %v86
  %v90 = vmul.f32 %v49, %v86
  %v91 = vmul.f32 %v52, %v86
  %v92 = vmul.f32 %v55, %v86
  %v93 = vmul.f32 %v58, %v86
  %v94 = vmul.f32 %v61, %v86
  %v95 = vmul.f32 %v64, %v86
  %v96 = vmul.f32 %v67, %v86
  %v97 = vmul.f32 %v70, %v86
  %v98 = vmul.f32 %v73, %v86
  %v99 = vmul.f32 %v76, %v86
  %v100 = vmul.f32 %v79, %v86
  %v101 = vmul.f32 %v82, %v86
  %v102 = vmul.f32 %v85, %v86
  %v103 = vsub.f32 %v21, %v87
  %v104 = vsub.f32 %v22, %v88
  %v105 = vsub.f32 %v23, %v89
  %v106 = vsub.f32 %v24, %v90
  %v107 = vsub.f32 %v25, %v91
  %v108 = vsub.f32 %v26, %v92
  %v109 = vsub.f32 %v27, %v93
  %v110 = vsub.f32 %v28, %v94
  %v111 = vsub.f32 %v29, %v95
  %v112 = vsub.f32 %v30, %v96
  %v113 = vsub.f32 %v31, %v97
  %v114 = vsub.f32 %v32, %v98
  %v115 = vsub.f32 %v33, %v99
  %v116 = vsub.f32 %v34, %v100
  %v117 = vsub.f32 %v35, %v101
  %v118 = vsub.f32 %v36, %v102
  %v119 = vmul.f32 %v103, %v103
  %v120 = vmul.f32 %v104, %v104
  %v121 = vmul.f32 %v105, %v105
  %v122 = vmul.f32 %v106, %v106
  %v123 = vmul.f32 %v107, %v107
  %v124 = vmul.f32 %v108, %v108
  %v125 = vmul.f32 %v109, %v109
  %v126 = vmul.f32 %v110, %v110
  %v127 = vmul.f32 %v111, %v111
  %v128 = vmul.f32 %v112, %v112
  %v129 = vmul.f32 %v113, %v113
  %v130 = vmul.f32 %v114, %v114
  %v131 = vmul.f32 %v115, %v115
  %v132 = vmul.f32 %v116, %v116
  %v133 = vmul.f32 %v117, %v117
  %v134 = vmul.f32 %v118, %v118
  %v135 = vsel %vm37, %v119, 0.0
  %136 = vadd.xlane.f32.xlu0 %v135
  %v137 = vpop.xlane.xlu0 %136
  %v138 = vsel %vm37, %v120, 0.0
  %139 = vadd.xlane.f32.xlu0 %v138
  %v140 = vpop.xlane.xlu0 %139
  %v141 = vsel %vm37, %v121, 0.0
  %142 = vadd.xlane.f32.xlu0 %v141
  %v143 = vpop.xlane.xlu0 %142
  %v144 = vsel %vm37, %v122, 0.0
  %145 = vadd.xlane.f32.xlu0 %v144
  %v146 = vpop.xlane.xlu0 %145
  %v147 = vsel %vm37, %v123, 0.0
  %148 = vadd.xlane.f32.xlu0 %v147
  %v149 = vpop.xlane.xlu0 %148
  %v150 = vsel %vm37, %v124, 0.0
  %151 = vadd.xlane.f32.xlu0 %v150
  %v152 = vpop.xlane.xlu0 %151
  %v153 = vsel %vm37, %v125, 0.0
  %154 = vadd.xlane.f32.xlu0 %v153
  %v155 = vpop.xlane.xlu0 %154
  %v156 = vsel %vm37, %v126, 0.0
  %157 = vadd.xlane.f32.xlu0 %v156
  %v158 = vpop.xlane.xlu0 %157
  %v159 = vsel %vm37, %v127, 0.0
  %160 = vadd.xlane.f32.xlu0 %v159
  %v161 = vpop.xlane.xlu0 %160
  %v162 = vsel %vm37, %v128, 0.0
  %163 = vadd.xlane.f32.xlu0 %v162
  %v164 = vpop.xlane.xlu0 %163
  %v165 = vsel %vm37, %v129, 0.0
  %166 = vadd.xlane.f32.xlu0 %v165
  %v167 = vpop.xlane.xlu0 %166
  %v168 = vsel %vm37, %v130, 0.0
  %169 = vadd.xlane.f32.xlu0 %v168
  %v170 = vpop.xlane.xlu0 %169
  %v171 = vsel %vm37, %v131, 0.0
  %172 = vadd.xlane.f32.xlu0 %v171
  %v173 = vpop.xlane.xlu0 %172
  %v174 = vsel %vm37, %v132, 0.0
  %175 = vadd.xlane.f32.xlu0 %v174
  %v176 = vpop.xlane.xlu0 %175
  %v177 = vsel %vm37, %v133, 0.0
  %178 = vadd.xlane.f32.xlu0 %v177
  %v179 = vpop.xlane.xlu0 %178
  %v180 = vsel %vm37, %v134, 0.0
  %181 = vadd.xlane.f32.xlu0 %v180
  %v182 = vpop.xlane.xlu0 %181
  %v183 = vmul.f32 %v137, %v86
  %v184 = vmul.f32 %v140, %v86
  %v185 = vmul.f32 %v143, %v86
  %v186 = vmul.f32 %v146, %v86
  %v187 = vmul.f32 %v149, %v86
  %v188 = vmul.f32 %v152, %v86
  %v189 = vmul.f32 %v155, %v86
  %v190 = vmul.f32 %v158, %v86
  %v191 = vmul.f32 %v161, %v86
  %v192 = vmul.f32 %v164, %v86
  %v193 = vmul.f32 %v167, %v86
  %v194 = vmul.f32 %v170, %v86
  %v195 = vmul.f32 %v173, %v86
  %v196 = vmul.f32 %v176, %v86
  %v197 = vmul.f32 %v179, %v86
  %v198 = vmul.f32 %v182, %v86
  %v199 = vadd.f32 %v183, 1e-05
  %v200 = vadd.f32 %v184, 1e-05
  %v201 = vadd.f32 %v185, 1e-05
  %v202 = vadd.f32 %v186, 1e-05
  %v203 = vadd.f32 %v187, 1e-05
  %v204 = vadd.f32 %v188, 1e-05
  %v205 = vadd.f32 %v189, 1e-05
  %v206 = vadd.f32 %v190, 1e-05
  %v207 = vadd.f32 %v191, 1e-05
  %v208 = vadd.f32 %v192, 1e-05
  %v209 = vadd.f32 %v193, 1e-05
  %v210 = vadd.f32 %v194, 1e-05
  %v211 = vadd.f32 %v195, 1e-05
  %v212 = vadd.f32 %v196, 1e-05
  %v213 = vadd.f32 %v197, 1e-05
  %v214 = vadd.f32 %v198, 1e-05
  %v215 = vrsqrt.pop %v199
  %v216 = vrsqrt.pop %v200
  %v217 = vrsqrt.pop %v201
  %v218 = vrsqrt.pop %v202
  %v219 = vrsqrt.pop %v203
  %v220 = vrsqrt.pop %v204
  %v221 = vrsqrt.pop %v205
  %v222 = vrsqrt.pop %v206
  %v223 = vrsqrt.pop %v207
  %v224 = vrsqrt.pop %v208
  %v225 = vrsqrt.pop %v209
  %v226 = vrsqrt.pop %v210
  %v227 = vrsqrt.pop %v211
  %v228 = vrsqrt.pop %v212
  %v229 = vrsqrt.pop %v213
  %v230 = vrsqrt.pop %v214
  %v231 = vmul.f32 %v103, %v215
  %v232 = vmul.f32 %v104, %v216
  %v233 = vmul.f32 %v105, %v217
  %v234 = vmul.f32 %v106, %v218
  %v235 = vmul.f32 %v107, %v219
  %v236 = vmul.f32 %v108, %v220
  %v237 = vmul.f32 %v109, %v221
  %v238 = vmul.f32 %v110, %v222
  %v239 = vmul.f32 %v111, %v223
  %v240 = vmul.f32 %v112, %v224
  %v241 = vmul.f32 %v113, %v225
  %v242 = vmul.f32 %v114, %v226
  %v243 = vmul.f32 %v115, %v227
  %v244 = vmul.f32 %v116, %v228
  %v245 = vmul.f32 %v117, %v229
  %v246 = vmul.f32 %v118, %v230
  %v247 = vld [vmem:[%s1] sm:$0x1]
  %v249 = vlaneseq
  %v250 = vshrl.u32 %v249, 7
  %v251 = vsub.s32 0, %v250
  %v252 = vrot.slane %v247, %v251
  %v254 = vmul.f32 %v231, %v252
  %v255 = vmul.f32 %v232, %v252
  %v256 = vmul.f32 %v233, %v252
  %v257 = vmul.f32 %v234, %v252
  %v258 = vmul.f32 %v235, %v252
  %v259 = vmul.f32 %v236, %v252
  %v260 = vmul.f32 %v237, %v252
  %v261 = vmul.f32 %v238, %v252
  %v262 = vmul.f32 %v239, %v252
  %v263 = vmul.f32 %v240, %v252
  %v264 = vmul.f32 %v241, %v252
  %v265 = vmul.f32 %v242, %v252
  %v266 = vmul.f32 %v243, %v252
  %v267 = vmul.f32 %v244, %v252
  %v268 = vmul.f32 %v245, %v252
  %v269 = vmul.f32 %v246, %v252
  %v270 = vld [vmem:[%s2] sm:$0x1]
  %v272 = vlaneseq
  %v273 = vshrl.u32 %v272, 7
  %v274 = vsub.s32 0, %v273
  %v275 = vrot.slane %v270, %v274
  %v277 = vadd.f32 %v254, %v275
  %v278 = vadd.f32 %v255, %v275
  %v279 = vadd.f32 %v256, %v275
  %v280 = vadd.f32 %v257, %v275
  %v281 = vadd.f32 %v258, %v275
  %v282 = vadd.f32 %v259, %v275
  %v283 = vadd.f32 %v260, %v275
  %v284 = vadd.f32 %v261, %v275
  %v285 = vadd.f32 %v262, %v275
  %v286 = vadd.f32 %v263, %v275
  %v287 = vadd.f32 %v264, %v275
  %v288 = vadd.f32 %v265, %v275
  %v289 = vadd.f32 %v266, %v275
  %v290 = vadd.f32 %v267, %v275
  %v291 = vadd.f32 %v268, %v275
  %v292 = vadd.f32 %v269, %v275
  %v293 = vpack.c.bf16 %v278, %v277
  %v294 = vpack.c.bf16 %v280, %v279
  %v295 = vpack.c.bf16 %v282, %v281
  %v296 = vpack.c.bf16 %v284, %v283
  %v297 = vpack.c.bf16 %v286, %v285
  %v298 = vpack.c.bf16 %v288, %v287
  %v299 = vpack.c.bf16 %v290, %v289
  %v300 = vpack.c.bf16 %v292, %v291
  %v301 = vld [vmem:[%s3] sm:$0xf]
  %v302 = vld [vmem:[%s3 + $0x4] sm:$0xf]
  %v303 = vld [vmem:[%s3 + $0x8] sm:$0xf]
  %v304 = vld [vmem:[%s3 + $0xc] sm:$0xf]
  %v305 = vld [vmem:[%s4] sm:$0x1]
  %v307 = vlaneseq
  %v308 = vshrl.u32 %v307, 7
  %v309 = vsub.s32 0, %v308
  %v310 = vrot.slane %v305, %v309
  %v316 = vunpack.c.l.b16 %v301
  %v317 = vunpack.c.l.b16 %v302
  %v318 = vunpack.c.l.b16 %v303
  %v319 = vunpack.c.l.b16 %v304
  %v320 = vpack.c.b16 %v317, %v316
  %v321 = vpack.c.b16 %v319, %v318
  %v325 = vsel %vm37, %v293, 0
  %v328 = vsel %vm37, %v294, 0
  %v331 = vsel %vm37, %v295, 0
  %v334 = vsel %vm37, %v296, 0
  %v337 = vsel %vm37, %v297, 0
  %v340 = vsel %vm37, %v298, 0
  %v343 = vsel %vm37, %v299, 0
  %v346 = vsel %vm37, %v300, 0
  %348 = vmatprep.subr.bf16.mxu0 0
  %349 = vmatpush1.bf16.msra.mxu0 %v320
  %350 = vmatprep.subr.bf16.mxu0 0
  %351 = vmatpush1.bf16.msra.mxu0 %v321
  %352 = vmatprep.subr.bf16.mxu0 0
  %353 = vmatpush1.bf16.msra.mxu0 0
  %354 = vmatprep.subr.bf16.mxu0 0
  %355 = vmatpush1.bf16.msra.mxu0 0
  %356 = vmatprep.subr.bf16.mxu0 0
  %357 = vmatpush1.bf16.msra.mxu0 0
  %358 = vmatprep.subr.bf16.mxu0 0
  %359 = vmatpush1.bf16.msra.mxu0 0
  %360 = vmatprep.subr.bf16.mxu0 0
  %361 = vmatpush1.bf16.msra.mxu0 0
  %362 = vmatprep.subr.bf16.mxu0 0
  %363 = vmatpush1.bf16.msra.mxu0 0
  %364 = vmatprep.subr.bf16.mxu0 0
  %365 = vmatpush1.bf16.msra.mxu0 0
  %366 = vmatprep.subr.bf16.mxu0 0
  %367 = vmatpush1.bf16.msra.mxu0 0
  %368 = vmatprep.subr.bf16.mxu0 0
  %369 = vmatpush1.bf16.msra.mxu0 0
  %370 = vmatprep.subr.bf16.mxu0 0
  %371 = vmatpush1.bf16.msra.mxu0 0
  %372 = vmatprep.subr.bf16.mxu0 0
  %373 = vmatpush1.bf16.msra.mxu0 0
  %374 = vmatprep.subr.bf16.mxu0 0
  %375 = vmatpush1.bf16.msra.mxu0 0
  %376 = vmatprep.subr.bf16.mxu0 0
  %377 = vmatpush1.bf16.msra.mxu0 0
  %378 = vmatprep.subr.bf16.mxu0 0
  %379 = vmatpush1.bf16.msra.mxu0 0
  %380 = vmatprep.mubr.bf16.mxu0 0
  %381 = vmatmul.mubr.bf16.gmra.mrb[0].mxu0 %v325
  %v382 = vpop.f32.mrb[0].mxu0
  %v383 = vadd.f32 %v310, %v382
  %v384 = vpop.f32.mrb[0].mxu0
  %v385 = vpop.f32.mrb[0].mxu0
  %v386 = vadd.f32 %v310, %v385
  %v387 = vpop.f32.mrb[0].mxu0
  %388 = vmatprep.mubr.bf16.mxu0 0
  %389 = vmatmul.mubr.bf16.gmra.mrb[0].mxu0 %v328
  %v390 = vpop.f32.mrb[0].mxu0
  %v391 = vadd.f32 %v310, %v390
  %v392 = vpop.f32.mrb[0].mxu0
  %v393 = vpop.f32.mrb[0].mxu0
  %v394 = vadd.f32 %v310, %v393
  %v395 = vpop.f32.mrb[0].mxu0
  %396 = vmatprep.mubr.bf16.mxu0 0
  %397 = vmatmul.mubr.bf16.gmra.mrb[0].mxu0 %v331
  %v398 = vpop.f32.mrb[0].mxu0
  %v399 = vadd.f32 %v310, %v398
  %v400 = vpop.f32.mrb[0].mxu0
  %v401 = vpop.f32.mrb[0].mxu0
  %v402 = vadd.f32 %v310, %v401
  %v403 = vpop.f32.mrb[0].mxu0
  %404 = vmatprep.mubr.bf16.mxu0 0
  %405 = vmatmul.mubr.bf16.gmra.mrb[0].mxu0 %v334
  %v406 = vpop.f32.mrb[0].mxu0
  %v407 = vadd.f32 %v310, %v406
  %v408 = vpop.f32.mrb[0].mxu0
  %v409 = vpop.f32.mrb[0].mxu0
  %v410 = vadd.f32 %v310, %v409
  %v411 = vpop.f32.mrb[0].mxu0
  %412 = vmatprep.mubr.bf16.mxu0 0
  %413 = vmatmul.mubr.bf16.gmra.mrb[0].mxu0 %v337
  %v414 = vpop.f32.mrb[0].mxu0
  %v415 = vadd.f32 %v310, %v414
  %v416 = vpop.f32.mrb[0].mxu0
  %v417 = vpop.f32.mrb[0].mxu0
  %v418 = vadd.f32 %v310, %v417
  %v419 = vpop.f32.mrb[0].mxu0
  %420 = vmatprep.mubr.bf16.mxu0 0
  %421 = vmatmul.mubr.bf16.gmra.mrb[0].mxu0 %v340
  %v422 = vpop.f32.mrb[0].mxu0
  %v423 = vadd.f32 %v310, %v422
  %v424 = vpop.f32.mrb[0].mxu0
  %v425 = vpop.f32.mrb[0].mxu0
  %v426 = vadd.f32 %v310, %v425
  %v427 = vpop.f32.mrb[0].mxu0
  %428 = vmatprep.mubr.bf16.mxu0 0
  %429 = vmatmul.mubr.bf16.gmra.mrb[0].mxu0 %v343
  %v430 = vpop.f32.mrb[0].mxu0
  %v431 = vadd.f32 %v310, %v430
  %v432 = vpop.f32.mrb[0].mxu0
  %v433 = vpop.f32.mrb[0].mxu0
  %v434 = vadd.f32 %v310, %v433
  %v435 = vpop.f32.mrb[0].mxu0
  %436 = vmatprep.mubr.bf16.mxu0 0
  %437 = vmatmul.mubr.bf16.gmra.mrb[0].mxu0 %v346
  %v438 = vpop.f32.mrb[0].mxu0
  %v439 = vadd.f32 %v310, %v438
  %v440 = vpop.f32.mrb[0].mxu0
  %v441 = vpop.f32.mrb[0].mxu0
  %v442 = vadd.f32 %v310, %v441
  %v443 = vpop.f32.mrb[0].mxu0
  %444 = vdwg.mxu0
  %v445 = vpack.c.bf16 %v386, %v383
  %v446 = vpack.c.bf16 %v394, %v391
  %v447 = vpack.c.bf16 %v402, %v399
  %v448 = vpack.c.bf16 %v410, %v407
  %v449 = vpack.c.bf16 %v418, %v415
  %v450 = vpack.c.bf16 %v426, %v423
  %v451 = vpack.c.bf16 %v434, %v431
  %v452 = vpack.c.bf16 %v442, %v439
  %v461 = vunpack.c.l.b16 %v445
  %v462 = vunpack.c.h.b16 %v445
  %v463 = vunpack.c.l.b16 %v446
  %v464 = vunpack.c.h.b16 %v446
  %v465 = vunpack.c.l.b16 %v447
  %v466 = vunpack.c.h.b16 %v447
  %v467 = vunpack.c.l.b16 %v448
  %v468 = vunpack.c.h.b16 %v448
  %v469 = vunpack.c.l.b16 %v449
  %v470 = vunpack.c.h.b16 %v449
  %v471 = vunpack.c.l.b16 %v450
  %v472 = vunpack.c.h.b16 %v450
  %v473 = vunpack.c.l.b16 %v451
  %v474 = vunpack.c.h.b16 %v451
  %v475 = vunpack.c.l.b16 %v452
  %v476 = vunpack.c.h.b16 %v452
  %v477 = vpack.c.b16 %v461, %v461
  %v478 = vpack.c.b16 %v462, %v462
  %v479 = vpack.c.b16 %v463, %v463
  %v480 = vpack.c.b16 %v464, %v464
  %v481 = vpack.c.b16 %v465, %v465
  %v482 = vpack.c.b16 %v466, %v466
  %v483 = vpack.c.b16 %v467, %v467
  %v484 = vpack.c.b16 %v468, %v468
  %v485 = vpack.c.b16 %v469, %v469
  %v486 = vpack.c.b16 %v470, %v470
  %v487 = vpack.c.b16 %v471, %v471
  %v488 = vpack.c.b16 %v472, %v472
  %v489 = vpack.c.b16 %v473, %v473
  %v490 = vpack.c.b16 %v474, %v474
  %v491 = vpack.c.b16 %v475, %v475
  %v492 = vpack.c.b16 %v476, %v476
  %vm509 = vcmask 781312
  %510 = vst.msk [vmem:[%s5] sm:$0xf] %vm509, %v477
  %511 = vst.msk [vmem:[%s5 + $0x4] sm:$0xf] %vm509, %v478
  %512 = vst.msk [vmem:[%s5 + $0x8] sm:$0xf] %vm509, %v479
  %513 = vst.msk [vmem:[%s5 + $0xc] sm:$0xf] %vm509, %v480
  %514 = vst.msk [vmem:[%s5 + $0x10] sm:$0xf] %vm509, %v481
  %515 = vst.msk [vmem:[%s5 + $0x14] sm:$0xf] %vm509, %v482
  %516 = vst.msk [vmem:[%s5 + $0x18] sm:$0xf] %vm509, %v483
  %517 = vst.msk [vmem:[%s5 + $0x1c] sm:$0xf] %vm509, %v484
  %518 = vst.msk [vmem:[%s5 + $0x20] sm:$0xf] %vm509, %v485
  %519 = vst.msk [vmem:[%s5 + $0x24] sm:$0xf] %vm509, %v486
  %520 = vst.msk [vmem:[%s5 + $0x28] sm:$0xf] %vm509, %v487
  %521 = vst.msk [vmem:[%s5 + $0x2c] sm:$0xf] %vm509, %v488
  %522 = vst.msk [vmem:[%s5 + $0x30] sm:$0xf] %vm509, %v489
  %523 = vst.msk [vmem:[%s5 + $0x34] sm:$0xf] %vm509, %v490
  %524 = vst.msk [vmem:[%s5 + $0x38] sm:$0xf] %vm509, %v491
  %525 = vst.msk [vmem:[%s5 + $0x3c] sm:$0xf] %vm509, %v492
  // Predicated region
  $region22: #{block_forward.8} parent=0 // pred_check
    _
  $region23: #{block_forward.8} parent=0 // pred_check_branch
    %527 = sbr.rel (0) target = $region25
  $region24: #{block_forward.8} parent=0 // pred_region
    _
  $region25: #{block_forward.8} parent=0 // pred_fallthru
    _
  // Predicated region
  $region26: #{block_forward.8} parent=0 // pred_check
    _
  $region27: #{block_forward.8} parent=0 // pred_check_branch
    %529 = sbr.rel (0) target = $region29
  $region28: #{block_forward.8} parent=0 // pred_region
    _
  $region29: #{block_forward.8} parent=0 // pred_fallthru
    _

// kernel: block_forward.9
$region0: #{block_forward.9}
  #allocation0 [shape = 'u32[]', space=smem, size = 0x4, offset = 0x4, fixed_abs, tag = 'smem constant byte address 0x4 - core index']
  #allocation1 [shape = 'u32[144,128]{1,0:T(1,128)}', space=vmem, size = 0x12000, scoped, tag = 'internal scratch']
  %s0 = inlined_call_operand.vmem [shape: bf16[2,4,64,8], index: 0, kind: input, shape index: {}]
  %s1 = inlined_call_operand.vmem [shape: bf16[2,4,64,8], index: 1, kind: input, shape index: {}]
  %s2 = inlined_call_operand.vmem [shape: bf16[2,4,64,8], index: 2, kind: input, shape index: {}]
  %s3 = inlined_call_operand.vmem [shape: f32[4,64,64], index: 3, kind: input, shape index: {}]
  %s4 = inlined_call_operand.vmem [shape: f32[2,4,64,8], index: 4, kind: output, shape index: {}]
  %s5 = sld [smem:[#allocation0]]
  $region49: #{block_forward.9} parent=0
    _
  %s7 = ssub.s32 1, %s5
  %s8 = scalar_select 0, %s7, %s5
  loop: start=0, step=1, limit=4
  $region2: #{block_forward.9} parent=0 // loop_pre_header
    _
  $region3: #{block_forward.9} parent=0 // loop_header
    %s10 = sphi 0, %s14
    %p11 = scmp.ge.s32.totalorder %s10, 4
    %s20 = sphi 0, %s22
    %s23 = sphi 0, %s20
    %s24 = sphi 0, %s23
    %s40 = sphi 0, %s24
    %s46 = sphi 0, %s48
    %s49 = sphi 0, %s46
    %s50 = sphi 0, %s49
    %s66 = sphi 0, %s50
    %s72 = sphi 0, %s74
    %s75 = sphi 0, %s72
    %s76 = sphi 0, %s75
    %s92 = sphi 0, %s76
    %s96 = sphi 0, %s96
    %s98 = sphi 0, %s96
    %s99 = sphi 0, %s98
    %s113 = sphi 0, %s99
    %s119 = sphi 0, %s121
    %s122 = sphi 0, %s119
    %s123 = sphi 0, %s122
    %s139 = sphi 0, %s123
  $region4: #{block_forward.9} parent=0 // loop_header_branch
    %13 = sbr.rel (%p11) target = $region8
  $region5: #{block_forward.9} parent=0 // loop_body
    %s15 = ssub.s32 %s10, 1
    %s16 = ssub.s32 %s10, 2
    %s17 = sadd.s32 %s10, 1
    %s18 = ssub.s32 %s10, %s17
    %p19 = scmp.eq.s32.totalorder %s18, 0
    %s21 = sadd.s32 %s20, 1
    %s22 = scalar_select %p19, %s20, %s21
    %p25 = pneg %p19
    %p26 = scmp.eq.s32.totalorder %s10, 1
    %p27 = por %p25, %p26
    %p28 = scmp.ne.s32.totalorder %s20, %s23
    %p29 = scmp.eq.s32.totalorder %s10, 0
    %p30 = por %p28, %p29
    %p31 = scmp.ne.s32.totalorder %s20, %s23
    %p32 = scmp.eq.s32.totalorder %s15, 1
    %p33 = por %p31, %p32
    %p34 = scmp.ne.s32.totalorder %s23, %s24
    %p35 = scmp.eq.s32.totalorder %s15, 0
    %p36 = por %p34, %p35
    %p37 = scmp.ne.s32.totalorder %s23, %s24
    %p38 = scmp.eq.s32.totalorder %s16, 1
    %p39 = por %p37, %p38
    %p41 = scmp.ne.s32.totalorder %s24, %s40
    %p42 = scmp.eq.s32.totalorder %s16, 0
    %p43 = por %p41, %p42
    %s44 = ssub.s32 %s10, %s17
    %p45 = scmp.eq.s32.totalorder %s44, 0
    %s47 = sadd.s32 %s46, 1
    %s48 = scalar_select %p45, %s46, %s47
    %p51 = pneg %p45
    %p52 = scmp.eq.s32.totalorder %s10, 1
    %p53 = por %p51, %p52
    %p54 = scmp.ne.s32.totalorder %s46, %s49
    %p55 = scmp.eq.s32.totalorder %s10, 0
    %p56 = por %p54, %p55
    %p57 = scmp.ne.s32.totalorder %s46, %s49
    %p58 = scmp.eq.s32.totalorder %s15, 1
    %p59 = por %p57, %p58
    %p60 = scmp.ne.s32.totalorder %s49, %s50
    %p61 = scmp.eq.s32.totalorder %s15, 0
    %p62 = por %p60, %p61
    %p63 = scmp.ne.s32.totalorder %s49, %s50
    %p64 = scmp.eq.s32.totalorder %s16, 1
    %p65 = por %p63, %p64
    %p67 = scmp.ne.s32.totalorder %s50, %s66
    %p68 = scmp.eq.s32.totalorder %s16, 0
    %p69 = por %p67, %p68
    %s70 = ssub.s32 %s10, %s17
    %p71 = scmp.eq.s32.totalorder %s70, 0
    %s73 = sadd.s32 %s72, 1
    %s74 = scalar_select %p71, %s72, %s73
    %p77 = pneg %p71
    %p78 = scmp.eq.s32.totalorder %s10, 1
    %p79 = por %p77, %p78
    %p80 = scmp.ne.s32.totalorder %s72, %s75
    %p81 = scmp.eq.s32.totalorder %s10, 0
    %p82 = por %p80, %p81
    %p83 = scmp.ne.s32.totalorder %s72, %s75
    %p84 = scmp.eq.s32.totalorder %s15, 1
    %p85 = por %p83, %p84
    %p86 = scmp.ne.s32.totalorder %s75, %s76
    %p87 = scmp.eq.s32.totalorder %s15, 0
    %p88 = por %p86, %p87
    %p89 = scmp.ne.s32.totalorder %s75, %s76
    %p90 = scmp.eq.s32.totalorder %s16, 1
    %p91 = por %p89, %p90
    %p93 = scmp.ne.s32.totalorder %s76, %s92
    %p94 = scmp.eq.s32.totalorder %s16, 0
    %p95 = por %p93, %p94
    %s97 = sadd.s32 %s96, 1
    %p100 = scmp.eq.s32.totalorder %s10, 1
    %p101 = scmp.ne.s32.totalorder %s96, %s98
    %p102 = scmp.eq.s32.totalorder %s10, 0
    %p103 = por %p101, %p102
    %p104 = scmp.ne.s32.totalorder %s96, %s98
    %p105 = scmp.eq.s32.totalorder %s15, 1
    %p106 = por %p104, %p105
    %p107 = scmp.ne.s32.totalorder %s98, %s99
    %p108 = scmp.eq.s32.totalorder %s15, 0
    %p109 = por %p107, %p108
    %p110 = scmp.ne.s32.totalorder %s98, %s99
    %p111 = scmp.eq.s32.totalorder %s16, 1
    %p112 = por %p110, %p111
    %p114 = scmp.ne.s32.totalorder %s99, %s113
    %p115 = scmp.eq.s32.totalorder %s16, 0
    %p116 = por %p114, %p115
    %s117 = ssub.s32 %s10, %s17
    %p118 = scmp.eq.s32.totalorder %s117, 0
    %s120 = sadd.s32 %s119, 1
    %s121 = scalar_select %p118, %s119, %s120
    %p124 = pneg %p118
    %p125 = scmp.eq.s32.totalorder %s10, 1
    %p126 = por %p124, %p125
    %p127 = scmp.ne.s32.totalorder %s119, %s122
    %p128 = scmp.eq.s32.totalorder %s10, 0
    %p129 = por %p127, %p128
    %p130 = scmp.ne.s32.totalorder %s119, %s122
    %p131 = scmp.eq.s32.totalorder %s15, 1
    %p132 = por %p130, %p131
    %p133 = scmp.ne.s32.totalorder %s122, %s123
    %p134 = scmp.eq.s32.totalorder %s15, 0
    %p135 = por %p133, %p134
    %p136 = scmp.ne.s32.totalorder %s122, %s123
    %p137 = scmp.eq.s32.totalorder %s16, 1
    %p138 = por %p136, %p137
    %p140 = scmp.ne.s32.totalorder %s123, %s139
    %p141 = scmp.eq.s32.totalorder %s16, 0
    %p142 = por %p140, %p141
    %p143 = scmp.le.s32.totalorder 1, %s10
    %p144 = scmp.lt.s32.totalorder %s10, 3
    %p145 = pnand %p143, %p144
    %p146 = pneg %p145
    // Predicated region
    $region9: #{block_forward.9} parent=5 // pred_check
      _
    $region10: #{block_forward.9} parent=5 // pred_check_branch
      %148 = sbr.rel (%p145) target = $region12
    $region11: #{block_forward.9} parent=5 // pred_region
      %s149 = ssub.s32 %s10, 1
      // Predicated region
      $region13: #{block_forward.9} parent=11 // pred_check
        %p150 = pneg %p109
      $region14: #{block_forward.9} parent=11 // pred_check_branch
        %152 = sbr.rel (%p150) target = $region16
      $region15: #{block_forward.9} parent=11 // pred_region
        _
      $region16: #{block_forward.9} parent=11 // pred_fallthru
        _
    $region12: #{block_forward.9} parent=5 // pred_fallthru
      _
    %p153 = scmp.lt.s32.totalorder %s10, 2
    // Predicated region
    $region17: #{block_forward.9} parent=5 // pred_check
      %p154 = pneg %p153
    $region18: #{block_forward.9} parent=5 // pred_check_branch
      %156 = sbr.rel (%p154) target = $region20
    $region19: #{block_forward.9} parent=5 // pred_region
      // Predicated region
      $region21: #{block_forward.9} parent=19 // pred_check
        %p157 = pneg %p30
      $region22: #{block_forward.9} parent=19 // pred_check_branch
        %159 = sbr.rel (%p157) target = $region24
      $region23: #{block_forward.9} parent=19 // pred_region
        %p160 = scmp.lt.s32.totalorder %s10, 1
        %s161 = scalar_select %p160, %s10, 1
        %s162 = smul.addr %s161, 32
        %s163 = smul.addr %s162, 4
        %s164 = scalar_lea.vmem %s0, %s163
      $region24: #{block_forward.9} parent=19 // pred_fallthru
        _
      // Predicated region
      $region25: #{block_forward.9} parent=19 // pred_check
        %p165 = pneg %p56
      $region26: #{block_forward.9} parent=19 // pred_check_branch
        %167 = sbr.rel (%p165) target = $region28
      $region27: #{block_forward.9} parent=19 // pred_region
        %p168 = scmp.lt.s32.totalorder %s10, 1
        %s169 = scalar_select %p168, %s10, 1
        %s170 = smul.addr %s169, 32
        %s171 = smul.addr %s170, 4
        %s172 = scalar_lea.vmem %s1, %s171
      $region28: #{block_forward.9} parent=19 // pred_fallthru
        _
      // Predicated region
      $region29: #{block_forward.9} parent=19 // pred_check
        %p173 = pneg %p82
      $region30: #{block_forward.9} parent=19 // pred_check_branch
        %175 = sbr.rel (%p173) target = $region32
      $region31: #{block_forward.9} parent=19 // pred_region
        %p176 = scmp.lt.s32.totalorder %s10, 1
        %s177 = scalar_select %p176, %s10, 1
        %s178 = smul.addr %s177, 32
        %s179 = smul.addr %s178, 4
        %s180 = scalar_lea.vmem %s2, %s179
      $region32: #{block_forward.9} parent=19 // pred_fallthru
        _
    $region20: #{block_forward.9} parent=5 // pred_fallthru
      _
    %p181 = scmp.le.s32.totalorder 1, %s10
    %p182 = scmp.lt.s32.totalorder %s10, 3
    %p183 = pnand %p181, %p182
    %p184 = pneg %p183
    // Predicated region
    $region33: #{block_forward.9} parent=5 // pred_check
      _
    $region34: #{block_forward.9} parent=5 // pred_check_branch
      %186 = sbr.rel (%p183) target = $region36
    $region35: #{block_forward.9} parent=5 // pred_region
      %s187 = ssub.s32 %s10, 1
      %p188 = scmp.lt.s32.totalorder %s15, 1
      %s189 = scalar_select %p188, %s15, 1
      %s190 = smul.addr %s189, 32
      %s191 = smul.addr %s190, 4
      %s192 = scalar_lea.vmem %s0, %s191
      %p193 = pneg %p36
      %p194 = pneg %p33
      %p195 = scmp.lt.s32.totalorder %s15, 1
      %s196 = scalar_select %p195, %s15, 1
      %s197 = smul.addr %s196, 32
      %s198 = smul.addr %s197, 4
      %s199 = scalar_lea.vmem %s1, %s198
      %p200 = pneg %p62
      %p201 = pneg %p59
      %p202 = scmp.lt.s32.totalorder %s15, 1
      %s203 = scalar_select %p202, %s15, 1
      %s204 = smul.addr %s203, 32
      %s205 = smul.addr %s204, 4
      %s206 = scalar_lea.vmem %s2, %s205
      %p207 = pneg %p88
      %p208 = pneg %p85
      %p209 = pneg %p109
      %p210 = pneg %p106
      %p211 = pneg %p135
      %p212 = pneg %p132
      %p213 = scmp.lt.s32.totalorder %s15, 1
      %s214 = scalar_select %p213, %s15, 1
      %s215 = smul.addr %s214, 32
      %s216 = smul.addr %s215, 8
      %s217 = scalar_lea.vmem %s4, %s216
      %p218 = scmp.lt.s32.totalorder %s15, 1
      %s219 = scalar_select %p218, %s15, 1
      %s220 = smul.addr %s219, 32
      %s221 = smul.addr %s220, 4
      %s222 = scalar_lea.vmem %s0, %s221
      %p223 = scmp.lt.s32.totalorder %s15, 1
      %s224 = scalar_select %p223, %s15, 1
      %s225 = smul.addr %s224, 32
      %s226 = smul.addr %s225, 4
      %s227 = scalar_lea.vmem %s1, %s226
      %p228 = scmp.lt.s32.totalorder %s15, 1
      %s229 = scalar_select %p228, %s15, 1
      %s230 = smul.addr %s229, 32
      %s231 = smul.addr %s230, 4
      %s232 = scalar_lea.vmem %s2, %s231
      %p233 = scmp.lt.s32.totalorder %s15, 1
      %s234 = scalar_select %p233, %s15, 1
      %s235 = smul.addr %s234, 32
      %s236 = smul.addr %s235, 8
      %s237 = scalar_lea.vmem %s4, %s236
      %v239 = vld [vmem:[%s222] sm:$0xf]
      %v240 = vld [vmem:[%s222 + $0x4] sm:$0xf]
      %v241 = vld [vmem:[%s222 + $0x8] sm:$0xf]
      %v242 = vld [vmem:[%s222 + $0xc] sm:$0xf]
      %v243 = vld [vmem:[%s222 + $0x10] sm:$0xf]
      %v244 = vld [vmem:[%s222 + $0x14] sm:$0xf]
      %v245 = vld [vmem:[%s222 + $0x18] sm:$0xf]
      %v246 = vld [vmem:[%s222 + $0x1c] sm:$0xf]
      %v247 = vld [vmem:[%s222 + $0x20] sm:$0xf]
      %v248 = vld [vmem:[%s222 + $0x24] sm:$0xf]
      %v249 = vld [vmem:[%s222 + $0x28] sm:$0xf]
      %v250 = vld [vmem:[%s222 + $0x2c] sm:$0xf]
      %v251 = vld [vmem:[%s222 + $0x30] sm:$0xf]
      %v252 = vld [vmem:[%s222 + $0x34] sm:$0xf]
      %v253 = vld [vmem:[%s222 + $0x38] sm:$0xf]
      %v254 = vld [vmem:[%s222 + $0x3c] sm:$0xf]
      %v255 = vld [vmem:[%s222 + $0x40] sm:$0xf]
      %v256 = vld [vmem:[%s222 + $0x44] sm:$0xf]
      %v257 = vld [vmem:[%s222 + $0x48] sm:$0xf]
      %v258 = vld [vmem:[%s222 + $0x4c] sm:$0xf]
      %v259 = vld [vmem:[%s222 + $0x50] sm:$0xf]
      %v260 = vld [vmem:[%s222 + $0x54] sm:$0xf]
      %v261 = vld [vmem:[%s222 + $0x58] sm:$0xf]
      %v262 = vld [vmem:[%s222 + $0x5c] sm:$0xf]
      %v263 = vld [vmem:[%s222 + $0x60] sm:$0xf]
      %v264 = vld [vmem:[%s222 + $0x64] sm:$0xf]
      %v265 = vld [vmem:[%s222 + $0x68] sm:$0xf]
      %v266 = vld [vmem:[%s222 + $0x6c] sm:$0xf]
      %v267 = vld [vmem:[%s222 + $0x70] sm:$0xf]
      %v268 = vld [vmem:[%s222 + $0x74] sm:$0xf]
      %v269 = vld [vmem:[%s222 + $0x78] sm:$0xf]
      %v270 = vld [vmem:[%s222 + $0x7c] sm:$0xf]
      %v271 = vld [vmem:[%s227] sm:$0xf]
      %v272 = vld [vmem:[%s227 + $0x4] sm:$0xf]
      %v273 = vld [vmem:[%s227 + $0x8] sm:$0xf]
      %v274 = vld [vmem:[%s227 + $0xc] sm:$0xf]
      %v275 = vld [vmem:[%s227 + $0x10] sm:$0xf]
      %v276 = vld [vmem:[%s227 + $0x14] sm:$0xf]
      %v277 = vld [vmem:[%s227 + $0x18] sm:$0xf]
      %v278 = vld [vmem:[%s227 + $0x1c] sm:$0xf]
      %v279 = vld [vmem:[%s227 + $0x20] sm:$0xf]
      %v280 = vld [vmem:[%s227 + $0x24] sm:$0xf]
      %v281 = vld [vmem:[%s227 + $0x28] sm:$0xf]
      %v282 = vld [vmem:[%s227 + $0x2c] sm:$0xf]
      %v283 = vld [vmem:[%s227 + $0x30] sm:$0xf]
      %v284 = vld [vmem:[%s227 + $0x34] sm:$0xf]
      %v285 = vld [vmem:[%s227 + $0x38] sm:$0xf]
      %v286 = vld [vmem:[%s227 + $0x3c] sm:$0xf]
      %v287 = vld [vmem:[%s227 + $0x40] sm:$0xf]
      %v288 = vld [vmem:[%s227 + $0x44] sm:$0xf]
      %v289 = vld [vmem:[%s227 + $0x48] sm:$0xf]
      %v290 = vld [vmem:[%s227 + $0x4c] sm:$0xf]
      %v291 = vld [vmem:[%s227 + $0x50] sm:$0xf]
      %v292 = vld [vmem:[%s227 + $0x54] sm:$0xf]
      %v293 = vld [vmem:[%s227 + $0x58] sm:$0xf]
      %v294 = vld [vmem:[%s227 + $0x5c] sm:$0xf]
      %v295 = vld [vmem:[%s227 + $0x60] sm:$0xf]
      %v296 = vld [vmem:[%s227 + $0x64] sm:$0xf]
      %v297 = vld [vmem:[%s227 + $0x68] sm:$0xf]
      %v298 = vld [vmem:[%s227 + $0x6c] sm:$0xf]
      %v299 = vld [vmem:[%s227 + $0x70] sm:$0xf]
      %v300 = vld [vmem:[%s227 + $0x74] sm:$0xf]
      %v301 = vld [vmem:[%s227 + $0x78] sm:$0xf]
      %v302 = vld [vmem:[%s227 + $0x7c] sm:$0xf]
      %v303 = vld [vmem:[%s232] sm:$0xf]
      %v304 = vld [vmem:[%s232 + $0x4] sm:$0xf]
      %v305 = vld [vmem:[%s232 + $0x8] sm:$0xf]
      %v306 = vld [vmem:[%s232 + $0xc] sm:$0xf]
      %v307 = vld [vmem:[%s232 + $0x10] sm:$0xf]
      %v308 = vld [vmem:[%s232 + $0x14] sm:$0xf]
      %v309 = vld [vmem:[%s232 + $0x18] sm:$0xf]
      %v310 = vld [vmem:[%s232 + $0x1c] sm:$0xf]
      %v311 = vld [vmem:[%s232 + $0x20] sm:$0xf]
      %v312 = vld [vmem:[%s232 + $0x24] sm:$0xf]
      %v313 = vld [vmem:[%s232 + $0x28] sm:$0xf]
      %v314 = vld [vmem:[%s232 + $0x2c] sm:$0xf]
      %v315 = vld [vmem:[%s232 + $0x30] sm:$0xf]
      %v316 = vld [vmem:[%s232 + $0x34] sm:$0xf]
      %v317 = vld [vmem:[%s232 + $0x38] sm:$0xf]
      %v318 = vld [vmem:[%s232 + $0x3c] sm:$0xf]
      %v319 = vld [vmem:[%s232 + $0x40] sm:$0xf]
      %v320 = vld [vmem:[%s232 + $0x44] sm:$0xf]
      %v321 = vld [vmem:[%s232 + $0x48] sm:$0xf]
      %v322 = vld [vmem:[%s232 + $0x4c] sm:$0xf]
      %v323 = vld [vmem:[%s232 + $0x50] sm:$0xf]
      %v324 = vld [vmem:[%s232 + $0x54] sm:$0xf]
      %v325 = vld [vmem:[%s232 + $0x58] sm:$0xf]
      %v326 = vld [vmem:[%s232 + $0x5c] sm:$0xf]
      %v327 = vld [vmem:[%s232 + $0x60] sm:$0xf]
      %v328 = vld [vmem:[%s232 + $0x64] sm:$0xf]
      %v329 = vld [vmem:[%s232 + $0x68] sm:$0xf]
      %v330 = vld [vmem:[%s232 + $0x6c] sm:$0xf]
      %v331 = vld [vmem:[%s232 + $0x70] sm:$0xf]
      %v332 = vld [vmem:[%s232 + $0x74] sm:$0xf]
      %v333 = vld [vmem:[%s232 + $0x78] sm:$0xf]
      %v334 = vld [vmem:[%s232 + $0x7c] sm:$0xf]
      %v343 = vunpack.c.l.b16 %v239
      %v344 = vunpack.c.l.b16 %v240
      %v345 = vunpack.c.l.b16 %v241
      %v346 = vunpack.c.l.b16 %v242
      %v347 = vunpack.c.l.b16 %v243
      %v348 = vunpack.c.l.b16 %v244
      %v349 = vunpack.c.l.b16 %v245
      %v350 = vunpack.c.l.b16 %v246
      %v351 = vpack.c.b16 %v344, %v343
      %v352 = vpack.c.b16 %v346, %v345
      %v353 = vpack.c.b16 %v348, %v347
      %v354 = vpack.c.b16 %v350, %v349
      %v363 = vunpack.c.l.b16 %v271
      %v364 = vunpack.c.l.b16 %v272
      %v365 = vunpack.c.l.b16 %v273
      %v366 = vunpack.c.l.b16 %v274
      %v367 = vunpack.c.l.b16 %v275
      %v368 = vunpack.c.l.b16 %v276
      %v369 = vunpack.c.l.b16 %v277
      %v370 = vunpack.c.l.b16 %v278
      %v371 = vpack.c.b16 %v364, %v363
      %v372 = vpack.c.b16 %v366, %v365
      %v373 = vpack.c.b16 %v368, %v367
      %v374 = vpack.c.b16 %v370, %v369
      %vm375 = vcmask 64512
      %v377 = vsel %vm375, %v351, 0
      %v380 = vsel %vm375, %v352, 0
      %v383 = vsel %vm375, %v353, 0
      %v386 = vsel %vm375, %v354, 0
      %v389 = vsel %vm375, %v371, 0
      %v392 = vsel %vm375, %v372, 0
      %v395 = vsel %vm375, %v373, 0
      %v398 = vsel %vm375, %v374, 0
      %400 = vmatprep.subr.bf16.mxu0 0
      %401 = vmatpush1.bf16.xpose.msra.mxu0 %v389
      %402 = vmatprep.subr.bf16.mxu0 0
      %403 = vmatpush1.bf16.xpose.msra.mxu0 %v392
      %404 = vmatprep.subr.bf16.mxu0 0
      %405 = vmatpush1.bf16.xpose.msra.mxu0 %v395
      %406 = vmatprep.subr.bf16.mxu0 0
      %407 = vmatpush1.bf16.xpose.msra.mxu0 %v398
      %408 = vmatprep.subr.bf16.mxu0 0
      %409 = vmatpush1.bf16.xpose.msra.mxu0 0
      %410 = vmatprep.subr.bf16.mxu0 0
      %411 = vmatpush1.bf16.xpose.msra.mxu0 0
      %412 = vmatprep.subr.bf16.mxu0 0
      %413 = vmatpush1.bf16.xpose.msra.mxu0 0
      %414 = vmatprep.subr.bf16.mxu0 0
      %415 = vmatpush1.bf16.xpose.msra.mxu0 0
      %416 = vmatprep.subr.bf16.mxu0 0
      %417 = vmatpush1.bf16.xpose.msra.mxu0 0
      %418 = vmatprep.subr.bf16.mxu0 0
      %419 = vmatpush1.bf16.xpose.msra.mxu0 0
      %420 = vmatprep.subr.bf16.mxu0 0
      %421 = vmatpush1.bf16.xpose.msra.mxu0 0
      %422 = vmatprep.subr.bf16.mxu0 0
      %423 = vmatpush1.bf16.xpose.msra.mxu0 0
      %424 = vmatprep.subr.bf16.mxu0 0
      %425 = vmatpush1.bf16.xpose.msra.mxu0 0
      %426 = vmatprep.subr.bf16.mxu0 0
      %427 = vmatpush1.bf16.xpose.msra.mxu0 0
      %428 = vmatprep.subr.bf16.mxu0 0
      %429 = vmatpush1.bf16.xpose.msra.mxu0 0
      %430 = vmatprep.subr.bf16.mxu0 0
      %431 = vmatpush1.bf16.xpose.msra.mxu0 0
      %432 = vmatprep.mubr.bf16.mxu0 0
      %433 = vmatmul.mubr.bf16.gmra.mrb[0].mxu0 %v377
      %v434 = vpop.f32.mrb[0].mxu0
      %v435 = vadd.f32 0.0, %v434
      %v436 = vpop.f32.mrb[0].mxu0
      %v437 = vpop.f32.mrb[0].mxu0
      %v438 = vadd.f32 0.0, %v437
      %v439 = vpop.f32.mrb[0].mxu0
      %440 = vmatprep.mubr.bf16.mxu0 0
      %441 = vmatmul.mubr.bf16.gmra.mrb[0].mxu0 %v380
      %v442 = vpop.f32.mrb[0].mxu0
      %v443 = vadd.f32 0.0, %v442
      %v444 = vpop.f32.mrb[0].mxu0
      %v445 = vpop.f32.mrb[0].mxu0
      %v446 = vadd.f32 0.0, %v445
      %v447 = vpop.f32.mrb[0].mxu0
      %448 = vmatprep.mubr.bf16.mxu0 0
      %449 = vmatmul.mubr.bf16.gmra.mrb[0].mxu0 %v383
      %v450 = vpop.f32.mrb[0].mxu0
      %v451 = vadd.f32 0.0, %v450
      %v452 = vpop.f32.mrb[0].mxu0
      %v453 = vpop.f32.mrb[0].mxu0
      %v454 = vadd.f32 0.0, %v453
      %v455 = vpop.f32.mrb[0].mxu0
      %456 = vmatprep.mubr.bf16.mxu0 0
      %457 = vmatmul.mubr.bf16.gmra.mrb[0].mxu0 %v386
      %v458 = vpop.f32.mrb[0].mxu0
      %v459 = vadd.f32 0.0, %v458
      %v460 = vpop.f32.mrb[0].mxu0
      %v461 = vpop.f32.mrb[0].mxu0
      %v462 = vadd.f32 0.0, %v461
      %v463 = vpop.f32.mrb[0].mxu0
      %464 = vdwg.mxu0
      %v473 = vunpack.c.l.b16 %v247
      %v474 = vunpack.c.l.b16 %v248
      %v475 = vunpack.c.l.b16 %v249
      %v476 = vunpack.c.l.b16 %v250
      %v477 = vunpack.c.l.b16 %v251
      %v478 = vunpack.c.l.b16 %v252
      %v479 = vunpack.c.l.b16 %v253
      %v480 = vunpack.c.l.b16 %v254
      %v481 = vpack.c.b16 %v474, %v473
      %v482 = vpack.c.b16 %v476, %v475
      %v483 = vpack.c.b16 %v478, %v477
      %v484 = vpack.c.b16 %v480, %v479
      %v493 = vunpack.c.l.b16 %v279
      %v494 = vunpack.c.l.b16 %v280
      %v495 = vunpack.c.l.b16 %v281
      %v496 = vunpack.c.l.b16 %v282
      %v497 = vunpack.c.l.b16 %v283
      %v498 = vunpack.c.l.b16 %v284
      %v499 = vunpack.c.l.b16 %v285
      %v500 = vunpack.c.l.b16 %v286
      %v501 = vpack.c.b16 %v494, %v493
      %v502 = vpack.c.b16 %v496, %v495
      %v503 = vpack.c.b16 %v498, %v497
      %v504 = vpack.c.b16 %v500, %v499
      %v506 = vsel %vm375, %v481, 0
      %v509 = vsel %vm375, %v482, 0
      %v512 = vsel %vm375, %v483, 0
      %v515 = vsel %vm375, %v484, 0
      %v518 = vsel %vm375, %v501, 0
      %v521 = vsel %vm375, %v502, 0
      %v524 = vsel %vm375, %v503, 0
      %v527 = vsel %vm375, %v504, 0
      %529 = vmatprep.subr.bf16.mxu0 0
      %530 = vmatpush1.bf16.xpose.msra.mxu0 %v518
      %531 = vmatprep.subr.bf16.mxu0 0
      %532 = vmatpush1.bf16.xpose.msra.mxu0 %v521
      %533 = vmatprep.subr.bf16.mxu0 0
      %534 = vmatpush1.bf16.xpose.msra.mxu0 %v524
      %535 = vmatprep.subr.bf16.mxu0 0
      %536 = vmatpush1.bf16.xpose.msra.mxu0 %v527
      %537 = vmatprep.subr.bf16.mxu0 0
      %538 = vmatpush1.bf16.xpose.msra.mxu0 0
      %539 = vmatprep.subr.bf16.mxu0 0
      %540 = vmatpush1.bf16.xpose.msra.mxu0 0
      %541 = vmatprep.subr.bf16.mxu0 0
      %542 = vmatpush1.bf16.xpose.msra.mxu0 0
      %543 = vmatprep.subr.bf16.mxu0 0
      %544 = vmatpush1.bf16.xpose.msra.mxu0 0
      %545 = vmatprep.subr.bf16.mxu0 0
      %546 = vmatpush1.bf16.xpose.msra.mxu0 0
      %547 = vmatprep.subr.bf16.mxu0 0
      %548 = vmatpush1.bf16.xpose.msra.mxu0 0
      %549 = vmatprep.subr.bf16.mxu0 0
      %550 = vmatpush1.bf16.xpose.msra.mxu0 0
      %551 = vmatprep.subr.bf16.mxu0 0
      %552 = vmatpush1.bf16.xpose.msra.mxu0 0
      %553 = vmatprep.subr.bf16.mxu0 0
      %554 = vmatpush1.bf16.xpose.msra.mxu0 0
      %555 = vmatprep.subr.bf16.mxu0 0
      %556 = vmatpush1.bf16.xpose.msra.mxu0 0
      %557 = vmatprep.subr.bf16.mxu0 0
      %558 = vmatpush1.bf16.xpose.msra.mxu0 0
      %559 = vmatprep.subr.bf16.mxu0 0
      %560 = vmatpush1.bf16.xpose.msra.mxu0 0
      %561 = vmatprep.mubr.bf16.mxu0 0
      %562 = vmatmul.mubr.bf16.gmra.mrb[0].mxu0 %v506
      %v563 = vpop.f32.mrb[0].mxu0
      %v564 = vadd.f32 0.0, %v563
      %v565 = vpop.f32.mrb[0].mxu0
      %v566 = vpop.f32.mrb[0].mxu0
      %v567 = vadd.f32 0.0, %v566
      %v568 = vpop.f32.mrb[0].mxu0
      %569 = vmatprep.mubr.bf16.mxu0 0
      %570 = vmatmul.mubr.bf16.gmra.mrb[0].mxu0 %v509
      %v571 = vpop.f32.mrb[0].mxu0
      %v572 = vadd.f32 0.0, %v571
      %v573 = vpop.f32.mrb[0].mxu0
      %v574 = vpop.f32.mrb[0].mxu0
      %v575 = vadd.f32 0.0, %v574
      %v576 = vpop.f32.mrb[0].mxu0
      %577 = vmatprep.mubr.bf16.mxu0 0
      %578 = vmatmul.mubr.bf16.gmra.mrb[0].mxu0 %v512
      %v579 = vpop.f32.mrb[0].mxu0
      %v580 = vadd.f32 0.0, %v579
      %v581 = vpop.f32.mrb[0].mxu0
      %v582 = vpop.f32.mrb[0].mxu0
      %v583 = vadd.f32 0.0, %v582
      %v584 = vpop.f32.mrb[0].mxu0
      %585 = vmatprep.mubr.bf16.mxu0 0
      %586 = vmatmul.mubr.bf16.gmra.mrb[0].mxu0 %v515
      %v587 = vpop.f32.mrb[0].mxu0
      %v588 = vadd.f32 0.0, %v587
      %v589 = vpop.f32.mrb[0].mxu0
      %v590 = vpop.f32.mrb[0].mxu0
      %v591 = vadd.f32 0.0, %v590
      %v592 = vpop.f32.mrb[0].mxu0
      %593 = vdwg.mxu0
      %v602 = vunpack.c.l.b16 %v255
      %v603 = vunpack.c.l.b16 %v256
      %v604 = vunpack.c.l.b16 %v257
      %v605 = vunpack.c.l.b16 %v258
      %v606 = vunpack.c.l.b16 %v259
      %v607 = vunpack.c.l.b16 %v260
      %v608 = vunpack.c.l.b16 %v261
      %v609 = vunpack.c.l.b16 %v262
      %v610 = vpack.c.b16 %v603, %v602
      %v611 = vpack.c.b16 %v605, %v604
      %v612 = vpack.c.b16 %v607, %v606
      %v613 = vpack.c.b16 %v609, %v608
      %v622 = vunpack.c.l.b16 %v287
      %v623 = vunpack.c.l.b16 %v288
      %v624 = vunpack.c.l.b16 %v289
      %v625 = vunpack.c.l.b16 %v290
      %v626 = vunpack.c.l.b16 %v291
      %v627 = vunpack.c.l.b16 %v292
      %v628 = vunpack.c.l.b16 %v293
      %v629 = vunpack.c.l.b16 %v294
      %v630 = vpack.c.b16 %v623, %v622
      %v631 = vpack.c.b16 %v625, %v624
      %v632 = vpack.c.b16 %v627, %v626
      %v633 = vpack.c.b16 %v629, %v628
      %v635 = vsel %vm375, %v610, 0
      %v638 = vsel %vm375, %v611, 0
      %v641 = vsel %vm375, %v612, 0
      %v644 = vsel %vm375, %v613, 0
      %v647 = vsel %vm375, %v630, 0
      %v650 = vsel %vm375, %v631, 0
      %v653 = vsel %vm375, %v632, 0
      %v656 = vsel %vm375, %v633, 0
      %658 = vmatprep.subr.bf16.mxu0 0
      %659 = vmatpush1.bf16.xpose.msra.mxu0 %v647
      %660 = vmatprep.subr.bf16.mxu0 0
      %661 = vmatpush1.bf16.xpose.msra.mxu0 %v650
      %662 = vmatprep.subr.bf16.mxu0 0
      %663 = vmatpush1.bf16.xpose.msra.mxu0 %v653
      %664 = vmatprep.subr.bf16.mxu0 0
      %665 = vmatpush1.bf16.xpose.msra.mxu0 %v656
      %666 = vmatprep.subr.bf16.mxu0 0
      %667 = vmatpush1.bf16.xpose.msra.mxu0 0
      %668 = vmatprep.subr.bf16.mxu0 0
      %669 = vmatpush1.bf16.xpose.msra.mxu0 0
      %670 = vmatprep.subr.bf16.mxu0 0
      %671 = vmatpush1.bf16.xpose.msra.mxu0 0
      %672 = vmatprep.subr.bf16.mxu0 0
      %673 = vmatpush1.bf16.xpose.msra.mxu0 0
      %674 = vmatprep.subr.bf16.mxu0 0
      %675 = vmatpush1.bf16.xpose.msra.mxu0 0
      %676 = vmatprep.subr.bf16.mxu0 0
      %677 = vmatpush1.bf16.xpose.msra.mxu0 0
      %678 = vmatprep.subr.bf16.mxu0 0
      %679 = vmatpush1.bf16.xpose.msra.mxu0 0
      %680 = vmatprep.subr.bf16.mxu0 0
      %681 = vmatpush1.bf16.xpose.msra.mxu0 0
      %682 = vmatprep.subr.bf16.mxu0 0
      %683 = vmatpush1.bf16.xpose.msra.mxu0 0
      %684 = vmatprep.subr.bf16.mxu0 0
      %685 = vmatpush1.bf16.xpose.msra.mxu0 0
      %686 = vmatprep.subr.bf16.mxu0 0
      %687 = vmatpush1.bf16.xpose.msra.mxu0 0
      %688 = vmatprep.subr.bf16.mxu0 0
      %689 = vmatpush1.bf16.xpose.msra.mxu0 0
      %690 = vmatprep.mubr.bf16.mxu0 0
      %691 = vmatmul.mubr.bf16.gmra.mrb[0].mxu0 %v635
      %v692 = vpop.f32.mrb[0].mxu0
      %v693 = vadd.f32 0.0, %v692
      %v694 = vpop.f32.mrb[0].mxu0
      %v695 = vpop.f32.mrb[0].mxu0
      %v696 = vadd.f32 0.0, %v695
      %v697 = vpop.f32.mrb[0].mxu0
      %698 = vmatprep.mubr.bf16.mxu0 0
      %699 = vmatmul.mubr.bf16.gmra.mrb[0].mxu0 %v638
      %v700 = vpop.f32.mrb[0].mxu0
      %v701 = vadd.f32 0.0, %v700
      %v702 = vpop.f32.mrb[0].mxu0
      %v703 = vpop.f32.mrb[0].mxu0
      %v704 = vadd.f32 0.0, %v703
      %v705 = vpop.f32.mrb[0].mxu0
      %706 = vmatprep.mubr.bf16.mxu0 0
      %707 = vmatmul.mubr.bf16.gmra.mrb[0].mxu0 %v641
      %v708 = vpop.f32.mrb[0].mxu0
      %v709 = vadd.f32 0.0, %v708
      %v710 = vpop.f32.mrb[0].mxu0
      %v711 = vpop.f32.mrb[0].mxu0
      %v712 = vadd.f32 0.0, %v711
      %v713 = vpop.f32.mrb[0].mxu0
      %714 = vmatprep.mubr.bf16.mxu0 0
      %715 = vmatmul.mubr.bf16.gmra.mrb[0].mxu0 %v644
      %v716 = vpop.f32.mrb[0].mxu0
      %v717 = vadd.f32 0.0, %v716
      %v718 = vpop.f32.mrb[0].mxu0
      %v719 = vpop.f32.mrb[0].mxu0
      %v720 = vadd.f32 0.0, %v719
      %v721 = vpop.f32.mrb[0].mxu0
      %722 = vdwg.mxu0
      %v731 = vunpack.c.l.b16 %v263
      %v732 = vunpack.c.l.b16 %v264
      %v733 = vunpack.c.l.b16 %v265
      %v734 = vunpack.c.l.b16 %v266
      %v735 = vunpack.c.l.b16 %v267
      %v736 = vunpack.c.l.b16 %v268
      %v737 = vunpack.c.l.b16 %v269
      %v738 = vunpack.c.l.b16 %v270
      %v739 = vpack.c.b16 %v732, %v731
      %v740 = vpack.c.b16 %v734, %v733
      %v741 = vpack.c.b16 %v736, %v735
      %v742 = vpack.c.b16 %v738, %v737
      %v751 = vunpack.c.l.b16 %v295
      %v752 = vunpack.c.l.b16 %v296
      %v753 = vunpack.c.l.b16 %v297
      %v754 = vunpack.c.l.b16 %v298
      %v755 = vunpack.c.l.b16 %v299
      %v756 = vunpack.c.l.b16 %v300
      %v757 = vunpack.c.l.b16 %v301
      %v758 = vunpack.c.l.b16 %v302
      %v759 = vpack.c.b16 %v752, %v751
      %v760 = vpack.c.b16 %v754, %v753
      %v761 = vpack.c.b16 %v756, %v755
      %v762 = vpack.c.b16 %v758, %v757
      %v764 = vsel %vm375, %v739, 0
      %v767 = vsel %vm375, %v740, 0
      %v770 = vsel %vm375, %v741, 0
      %v773 = vsel %vm375, %v742, 0
      %v776 = vsel %vm375, %v759, 0
      %v779 = vsel %vm375, %v760, 0
      %v782 = vsel %vm375, %v761, 0
      %v785 = vsel %vm375, %v762, 0
      %787 = vmatprep.subr.bf16.mxu0 0
      %788 = vmatpush1.bf16.xpose.msra.mxu0 %v776
      %789 = vmatprep.subr.bf16.mxu0 0
      %790 = vmatpush1.bf16.xpose.msra.mxu0 %v779
      %791 = vmatprep.subr.bf16.mxu0 0
      %792 = vmatpush1.bf16.xpose.msra.mxu0 %v782
      %793 = vmatprep.subr.bf16.mxu0 0
      %794 = vmatpush1.bf16.xpose.msra.mxu0 %v785
      %795 = vmatprep.subr.bf16.mxu0 0
      %796 = vmatpush1.bf16.xpose.msra.mxu0 0
      %797 = vmatprep.subr.bf16.mxu0 0
      %798 = vmatpush1.bf16.xpose.msra.mxu0 0
      %799 = vmatprep.subr.bf16.mxu0 0
      %800 = vmatpush1.bf16.xpose.msra.mxu0 0
      %801 = vmatprep.subr.bf16.mxu0 0
      %802 = vmatpush1.bf16.xpose.msra.mxu0 0
      %803 = vmatprep.subr.bf16.mxu0 0
      %804 = vmatpush1.bf16.xpose.msra.mxu0 0
      %805 = vmatprep.subr.bf16.mxu0 0
      %806 = vmatpush1.bf16.xpose.msra.mxu0 0
      %807 = vmatprep.subr.bf16.mxu0 0
      %808 = vmatpush1.bf16.xpose.msra.mxu0 0
      %809 = vmatprep.subr.bf16.mxu0 0
      %810 = vmatpush1.bf16.xpose.msra.mxu0 0
      %811 = vmatprep.subr.bf16.mxu0 0
      %812 = vmatpush1.bf16.xpose.msra.mxu0 0
      %813 = vmatprep.subr.bf16.mxu0 0
      %814 = vmatpush1.bf16.xpose.msra.mxu0 0
      %815 = vmatprep.subr.bf16.mxu0 0
      %816 = vmatpush1.bf16.xpose.msra.mxu0 0
      %817 = vmatprep.subr.bf16.mxu0 0
      %818 = vmatpush1.bf16.xpose.msra.mxu0 0
      %819 = vmatprep.mubr.bf16.mxu0 0
      %820 = vmatmul.mubr.bf16.gmra.mrb[0].mxu0 %v764
      %v821 = vpop.f32.mrb[0].mxu0
      %v822 = vadd.f32 0.0, %v821
      %v823 = vpop.f32.mrb[0].mxu0
      %v824 = vpop.f32.mrb[0].mxu0
      %v825 = vadd.f32 0.0, %v824
      %v826 = vpop.f32.mrb[0].mxu0
      %827 = vmatprep.mubr.bf16.mxu0 0
      %828 = vmatmul.mubr.bf16.gmra.mrb[0].mxu0 %v767
      %v829 = vpop.f32.mrb[0].mxu0
      %v830 = vadd.f32 0.0, %v829
      %v831 = vpop.f32.mrb[0].mxu0
      %v832 = vpop.f32.mrb[0].mxu0
      %v833 = vadd.f32 0.0, %v832
      %v834 = vpop.f32.mrb[0].mxu0
      %835 = vmatprep.mubr.bf16.mxu0 0
      %836 = vmatmul.mubr.bf16.gmra.mrb[0].mxu0 %v770
      %v837 = vpop.f32.mrb[0].mxu0
      %v838 = vadd.f32 0.0, %v837
      %v839 = vpop.f32.mrb[0].mxu0
      %v840 = vpop.f32.mrb[0].mxu0
      %v841 = vadd.f32 0.0, %v840
      %v842 = vpop.f32.mrb[0].mxu0
      %843 = vmatprep.mubr.bf16.mxu0 0
      %844 = vmatmul.mubr.bf16.gmra.mrb[0].mxu0 %v773
      %v845 = vpop.f32.mrb[0].mxu0
      %v846 = vadd.f32 0.0, %v845
      %v847 = vpop.f32.mrb[0].mxu0
      %v848 = vpop.f32.mrb[0].mxu0
      %v849 = vadd.f32 0.0, %v848
      %v850 = vpop.f32.mrb[0].mxu0
      %851 = vdwg.mxu0
      %v852 = vmul.f32 %v435, 0.35355338
      %v853 = vmul.f32 %v438, 0.35355338
      %v854 = vmul.f32 %v443, 0.35355338
      %v855 = vmul.f32 %v446, 0.35355338
      %v856 = vmul.f32 %v451, 0.35355338
      %v857 = vmul.f32 %v454, 0.35355338
      %v858 = vmul.f32 %v459, 0.35355338
      %v859 = vmul.f32 %v462, 0.35355338
      %v860 = vmul.f32 %v564, 0.35355338
      %v861 = vmul.f32 %v567, 0.35355338
      %v862 = vmul.f32 %v572, 0.35355338
      %v863 = vmul.f32 %v575, 0.35355338
      %v864 = vmul.f32 %v580, 0.35355338
      %v865 = vmul.f32 %v583, 0.35355338
      %v866 = vmul.f32 %v588, 0.35355338
      %v867 = vmul.f32 %v591, 0.35355338
      %v868 = vmul.f32 %v693, 0.35355338
      %v869 = vmul.f32 %v696, 0.35355338
      %v870 = vmul.f32 %v701, 0.35355338
      %v871 = vmul.f32 %v704, 0.35355338
      %v872 = vmul.f32 %v709, 0.35355338
      %v873 = vmul.f32 %v712, 0.35355338
      %v874 = vmul.f32 %v717, 0.35355338
      %v875 = vmul.f32 %v720, 0.35355338
      %v876 = vmul.f32 %v822, 0.35355338
      %v877 = vmul.f32 %v825, 0.35355338
      %v878 = vmul.f32 %v830, 0.35355338
      %v879 = vmul.f32 %v833, 0.35355338
      %v880 = vmul.f32 %v838, 0.35355338
      %v881 = vmul.f32 %v841, 0.35355338
      %v882 = vmul.f32 %v846, 0.35355338
      %v883 = vmul.f32 %v849, 0.35355338
      %v884 = vld [vmem:[%s3] sm:$0xff]
      %v885 = vld [vmem:[%s3 + $0x8] sm:$0xff]
      %v886 = vld [vmem:[%s3 + $0x10] sm:$0xff]
      %v887 = vld [vmem:[%s3 + $0x18] sm:$0xff]
      %v888 = vld [vmem:[%s3 + $0x20] sm:$0xff]
      %v889 = vld [vmem:[%s3 + $0x28] sm:$0xff]
      %v890 = vld [vmem:[%s3 + $0x30] sm:$0xff]
      %v891 = vld [vmem:[%s3 + $0x38] sm:$0xff]
      %v892 = vld [vmem:[%s3 + $0x40] sm:$0xff]
      %v893 = vld [vmem:[%s3 + $0x48] sm:$0xff]
      %v894 = vld [vmem:[%s3 + $0x50] sm:$0xff]
      %v895 = vld [vmem:[%s3 + $0x58] sm:$0xff]
      %v896 = vld [vmem:[%s3 + $0x60] sm:$0xff]
      %v897 = vld [vmem:[%s3 + $0x68] sm:$0xff]
      %v898 = vld [vmem:[%s3 + $0x70] sm:$0xff]
      %v899 = vld [vmem:[%s3 + $0x78] sm:$0xff]
      %v900 = vld [vmem:[%s3 + $0x80] sm:$0xff]
      %v901 = vld [vmem:[%s3 + $0x88] sm:$0xff]
      %v902 = vld [vmem:[%s3 + $0x90] sm:$0xff]
      %v903 = vld [vmem:[%s3 + $0x98] sm:$0xff]
      %v904 = vld [vmem:[%s3 + $0xa0] sm:$0xff]
      %v905 = vld [vmem:[%s3 + $0xa8] sm:$0xff]
      %v906 = vld [vmem:[%s3 + $0xb0] sm:$0xff]
      %v907 = vld [vmem:[%s3 + $0xb8] sm:$0xff]
      %v908 = vld [vmem:[%s3 + $0xc0] sm:$0xff]
      %v909 = vld [vmem:[%s3 + $0xc8] sm:$0xff]
      %v910 = vld [vmem:[%s3 + $0xd0] sm:$0xff]
      %v911 = vld [vmem:[%s3 + $0xd8] sm:$0xff]
      %v912 = vld [vmem:[%s3 + $0xe0] sm:$0xff]
      %v913 = vld [vmem:[%s3 + $0xe8] sm:$0xff]
      %v914 = vld [vmem:[%s3 + $0xf0] sm:$0xff]
      %v915 = vld [vmem:[%s3 + $0xf8] sm:$0xff]
      %v916 = vadd.f32 %v852, %v884
      %v917 = vadd.f32 %v853, %v885
      %v918 = vadd.f32 %v854, %v886
      %v919 = vadd.f32 %v855, %v887
      %v920 = vadd.f32 %v856, %v888
      %v921 = vadd.f32 %v857, %v889
      %v922 = vadd.f32 %v858, %v890
      %v923 = vadd.f32 %v859, %v891
      %v924 = vadd.f32 %v860, %v892
      %v925 = vadd.f32 %v861, %v893
      %v926 = vadd.f32 %v862, %v894
      %v927 = vadd.f32 %v863, %v895
      %v928 = vadd.f32 %v864, %v896
      %v929 = vadd.f32 %v865, %v897
      %v930 = vadd.f32 %v866, %v898
      %v931 = vadd.f32 %v867, %v899
      %v932 = vadd.f32 %v868, %v900
      %v933 = vadd.f32 %v869, %v901
      %v934 = vadd.f32 %v870, %v902
      %v935 = vadd.f32 %v871, %v903
      %v936 = vadd.f32 %v872, %v904
      %v937 = vadd.f32 %v873, %v905
      %v938 = vadd.f32 %v874, %v906
      %v939 = vadd.f32 %v875, %v907
      %v940 = vadd.f32 %v876, %v908
      %v941 = vadd.f32 %v877, %v909
      %v942 = vadd.f32 %v878, %v910
      %v943 = vadd.f32 %v879, %v911
      %v944 = vadd.f32 %v880, %v912
      %v945 = vadd.f32 %v881, %v913
      %v946 = vadd.f32 %v882, %v914
      %v947 = vadd.f32 %v883, %v915
      %vm948 = vcmask 523264
      %v949 = vsel %vm948, %v916, -inf
      %950 = vmax.xlane.f32.xlu0 %v949
      %v951 = vpop.xlane.xlu0 %950
      %v952 = vsel %vm948, %v917, -inf
      %953 = vmax.xlane.f32.xlu0 %v952
      %v954 = vpop.xlane.xlu0 %953
      %v955 = vsel %vm948, %v918, -inf
      %956 = vmax.xlane.f32.xlu0 %v955
      %v957 = vpop.xlane.xlu0 %956
      %v958 = vsel %vm948, %v919, -inf
      %959 = vmax.xlane.f32.xlu0 %v958
      %v960 = vpop.xlane.xlu0 %959
      %v961 = vsel %vm948, %v920, -inf
      %962 = vmax.xlane.f32.xlu0 %v961
      %v963 = vpop.xlane.xlu0 %962
      %v964 = vsel %vm948, %v921, -inf
      %965 = vmax.xlane.f32.xlu0 %v964
      %v966 = vpop.xlane.xlu0 %965
      %v967 = vsel %vm948, %v922, -inf
      %968 = vmax.xlane.f32.xlu0 %v967
      %v969 = vpop.xlane.xlu0 %968
      %v970 = vsel %vm948, %v923, -inf
      %971 = vmax.xlane.f32.xlu0 %v970
      %v972 = vpop.xlane.xlu0 %971
      %v973 = vsel %vm948, %v924, -inf
      %974 = vmax.xlane.f32.xlu0 %v973
      %v975 = vpop.xlane.xlu0 %974
      %v976 = vsel %vm948, %v925, -inf
      %977 = vmax.xlane.f32.xlu0 %v976
      %v978 = vpop.xlane.xlu0 %977
      %v979 = vsel %vm948, %v926, -inf
      %980 = vmax.xlane.f32.xlu0 %v979
      %v981 = vpop.xlane.xlu0 %980
      %v982 = vsel %vm948, %v927, -inf
      %983 = vmax.xlane.f32.xlu0 %v982
      %v984 = vpop.xlane.xlu0 %983
      %v985 = vsel %vm948, %v928, -inf
      %986 = vmax.xlane.f32.xlu0 %v985
      %v987 = vpop.xlane.xlu0 %986
      %v988 = vsel %vm948, %v929, -inf
      %989 = vmax.xlane.f32.xlu0 %v988
      %v990 = vpop.xlane.xlu0 %989
      %v991 = vsel %vm948, %v930, -inf
      %992 = vmax.xlane.f32.xlu0 %v991
      %v993 = vpop.xlane.xlu0 %992
      %v994 = vsel %vm948, %v931, -inf
      %995 = vmax.xlane.f32.xlu0 %v994
      %v996 = vpop.xlane.xlu0 %995
      %v997 = vsel %vm948, %v932, -inf
      %998 = vmax.xlane.f32.xlu0 %v997
      %v999 = vpop.xlane.xlu0 %998
      %v1000 = vsel %vm948, %v933, -inf
      %1001 = vmax.xlane.f32.xlu0 %v1000
      %v1002 = vpop.xlane.xlu0 %1001
      %v1003 = vsel %vm948, %v934, -inf
      %1004 = vmax.xlane.f32.xlu0 %v1003
      %v1005 = vpop.xlane.xlu0 %1004
      %v1006 = vsel %vm948, %v935, -inf
      %1007 = vmax.xlane.f32.xlu0 %v1006
      %v1008 = vpop.xlane.xlu0 %1007
      %v1009 = vsel %vm948, %v936, -inf
      %1010 = vmax.xlane.f32.xlu0 %v1009
      %v1011 = vpop.xlane.xlu0 %1010
      %v1012 = vsel %vm948, %v937, -inf
      %1013 = vmax.xlane.f32.xlu0 %v1012
      %v1014 = vpop.xlane.xlu0 %1013
      %v1015 = vsel %vm948, %v938, -inf
      %1016 = vmax.xlane.f32.xlu0 %v1015
      %v1017 = vpop.xlane.xlu0 %1016
      %v1018 = vsel %vm948, %v939, -inf
      %1019 = vmax.xlane.f32.xlu0 %v1018
      %v1020 = vpop.xlane.xlu0 %1019
      %v1021 = vsel %vm948, %v940, -inf
      %1022 = vmax.xlane.f32.xlu0 %v1021
      %v1023 = vpop.xlane.xlu0 %1022
      %v1024 = vsel %vm948, %v941, -inf
      %1025 = vmax.xlane.f32.xlu0 %v1024
      %v1026 = vpop.xlane.xlu0 %1025
      %v1027 = vsel %vm948, %v942, -inf
      %1028 = vmax.xlane.f32.xlu0 %v1027
      %v1029 = vpop.xlane.xlu0 %1028
      %v1030 = vsel %vm948, %v943, -inf
      %1031 = vmax.xlane.f32.xlu0 %v1030
      %v1032 = vpop.xlane.xlu0 %1031
      %v1033 = vsel %vm948, %v944, -inf
      %1034 = vmax.xlane.f32.xlu0 %v1033
      %v1035 = vpop.xlane.xlu0 %1034
      %v1036 = vsel %vm948, %v945, -inf
      %1037 = vmax.xlane.f32.xlu0 %v1036
      %v1038 = vpop.xlane.xlu0 %1037
      %v1039 = vsel %vm948, %v946, -inf
      %1040 = vmax.xlane.f32.xlu0 %v1039
      %v1041 = vpop.xlane.xlu0 %1040
      %v1042 = vsel %vm948, %v947, -inf
      %1043 = vmax.xlane.f32.xlu0 %v1042
      %v1044 = vpop.xlane.xlu0 %1043
      %v1045 = vsub.f32 %v916, %v951
      %v1046 = vsub.f32 %v917, %v954
      %v1047 = vsub.f32 %v918, %v957
      %v1048 = vsub.f32 %v919, %v960
      %v1049 = vsub.f32 %v920, %v963
      %v1050 = vsub.f32 %v921, %v966
      %v1051 = vsub.f32 %v922, %v969
      %v1052 = vsub.f32 %v923, %v972
      %v1053 = vsub.f32 %v924, %v975
      %v1054 = vsub.f32 %v925, %v978
      %v1055 = vsub.f32 %v926, %v981
      %v1056 = vsub.f32 %v927, %v984
      %v1057 = vsub.f32 %v928, %v987
      %v1058 = vsub.f32 %v929, %v990
      %v1059 = vsub.f32 %v930, %v993
      %v1060 = vsub.f32 %v931, %v996
      %v1061 = vsub.f32 %v932, %v999
      %v1062 = vsub.f32 %v933, %v1002
      %v1063 = vsub.f32 %v934, %v1005
      %v1064 = vsub.f32 %v935, %v1008
      %v1065 = vsub.f32 %v936, %v1011
      %v1066 = vsub.f32 %v937, %v1014
      %v1067 = vsub.f32 %v938, %v1017
      %v1068 = vsub.f32 %v939, %v1020
      %v1069 = vsub.f32 %v940, %v1023
      %v1070 = vsub.f32 %v941, %v1026
      %v1071 = vsub.f32 %v942, %v1029
      %v1072 = vsub.f32 %v943, %v1032
      %v1073 = vsub.f32 %v944, %v1035
      %v1074 = vsub.f32 %v945, %v1038
      %v1075 = vsub.f32 %v946, %v1041
      %v1076 = vsub.f32 %v947, %v1044
      %v1077 = vmul.f32 %v1045, 1.442695
      %v1078 = vpow.pop %v1077
      %v1079 = vmul.f32 %v1046, 1.442695
      %v1080 = vpow.pop %v1079
      %v1081 = vmul.f32 %v1047, 1.442695
      %v1082 = vpow.pop %v1081
      %v1083 = vmul.f32 %v1048, 1.442695
      %v1084 = vpow.pop %v1083
      %v1085 = vmul.f32 %v1049, 1.442695
      %v1086 = vpow.pop %v1085
      %v1087 = vmul.f32 %v1050, 1.442695
      %v1088 = vpow.pop %v1087
      %v1089 = vmul.f32 %v1051, 1.442695
      %v1090 = vpow.pop %v1089
      %v1091 = vmul.f32 %v1052, 1.442695
      %v1092 = vpow.pop %v1091
      %v1093 = vmul.f32 %v1053, 1.442695
      %v1094 = vpow.pop %v1093
      %v1095 = vmul.f32 %v1054, 1.442695
      %v1096 = vpow.pop %v1095
      %v1097 = vmul.f32 %v1055, 1.442695
      %v1098 = vpow.pop %v1097
      %v1099 = vmul.f32 %v1056, 1.442695
      %v1100 = vpow.pop %v1099
      %v1101 = vmul.f32 %v1057, 1.442695
      %v1102 = vpow.pop %v1101
      %v1103 = vmul.f32 %v1058, 1.442695
      %v1104 = vpow.pop %v1103
      %v1105 = vmul.f32 %v1059, 1.442695
      %v1106 = vpow.pop %v1105
      %v1107 = vmul.f32 %v1060, 1.442695
      %v1108 = vpow.pop %v1107
      %v1109 = vmul.f32 %v1061, 1.442695
      %v1110 = vpow.pop %v1109
      %v1111 = vmul.f32 %v1062, 1.442695
      %v1112 = vpow.pop %v1111
      %v1113 = vmul.f32 %v1063, 1.442695
      %v1114 = vpow.pop %v1113
      %v1115 = vmul.f32 %v1064, 1.442695
      %v1116 = vpow.pop %v1115
      %v1117 = vmul.f32 %v1065, 1.442695
      %v1118 = vpow.pop %v1117
      %v1119 = vmul.f32 %v1066, 1.442695
      %v1120 = vpow.pop %v1119
      %v1121 = vmul.f32 %v1067, 1.442695
      %v1122 = vpow.pop %v1121
      %v1123 = vmul.f32 %v1068, 1.442695
      %v1124 = vpow.pop %v1123
      %v1125 = vmul.f32 %v1069, 1.442695
      %v1126 = vpow.pop %v1125
      %v1127 = vmul.f32 %v1070, 1.442695
      %v1128 = vpow.pop %v1127
      %v1129 = vmul.f32 %v1071, 1.442695
      %v1130 = vpow.pop %v1129
      %v1131 = vmul.f32 %v1072, 1.442695
      %v1132 = vpow.pop %v1131
      %v1133 = vmul.f32 %v1073, 1.442695
      %v1134 = vpow.pop %v1133
      %v1135 = vmul.f32 %v1074, 1.442695
      %v1136 = vpow.pop %v1135
      %v1137 = vmul.f32 %v1075, 1.442695
      %v1138 = vpow.pop %v1137
      %v1139 = vmul.f32 %v1076, 1.442695
      %v1140 = vpow.pop %v1139
      %v1141 = vsel %vm948, %v1078, 0.0
      %1142 = vadd.xlane.f32.xlu0 %v1141
      %v1143 = vpop.xlane.xlu0 %1142
      %v1144 = vsel %vm948, %v1080, 0.0
      %1145 = vadd.xlane.f32.xlu0 %v1144
      %v1146 = vpop.xlane.xlu0 %1145
      %v1147 = vsel %vm948, %v1082, 0.0
      %1148 = vadd.xlane.f32.xlu0 %v1147
      %v1149 = vpop.xlane.xlu0 %1148
      %v1150 = vsel %vm948, %v1084, 0.0
      %1151 = vadd.xlane.f32.xlu0 %v1150
      %v1152 = vpop.xlane.xlu0 %1151
      %v1153 = vsel %vm948, %v1086, 0.0
      %1154 = vadd.xlane.f32.xlu0 %v1153
      %v1155 = vpop.xlane.xlu0 %1154
      %v1156 = vsel %vm948, %v1088, 0.0
      %1157 = vadd.xlane.f32.xlu0 %v1156
      %v1158 = vpop.xlane.xlu0 %1157
      %v1159 = vsel %vm948, %v1090, 0.0
      %1160 = vadd.xlane.f32.xlu0 %v1159
      %v1161 = vpop.xlane.xlu0 %1160
      %v1162 = vsel %vm948, %v1092, 0.0
      %1163 = vadd.xlane.f32.xlu0 %v1162
      %v1164 = vpop.xlane.xlu0 %1163
      %v1165 = vsel %vm948, %v1094, 0.0
      %1166 = vadd.xlane.f32.xlu0 %v1165
      %v1167 = vpop.xlane.xlu0 %1166
      %v1168 = vsel %vm948, %v1096, 0.0
      %1169 = vadd.xlane.f32.xlu0 %v1168
      %v1170 = vpop.xlane.xlu0 %1169
      %v1171 = vsel %vm948, %v1098, 0.0
      %1172 = vadd.xlane.f32.xlu0 %v1171
      %v1173 = vpop.xlane.xlu0 %1172
      %v1174 = vsel %vm948, %v1100, 0.0
      %1175 = vadd.xlane.f32.xlu0 %v1174
      %v1176 = vpop.xlane.xlu0 %1175
      %v1177 = vsel %vm948, %v1102, 0.0
      %1178 = vadd.xlane.f32.xlu0 %v1177
      %v1179 = vpop.xlane.xlu0 %1178
      %v1180 = vsel %vm948, %v1104, 0.0
      %1181 = vadd.xlane.f32.xlu0 %v1180
      %v1182 = vpop.xlane.xlu0 %1181
      %v1183 = vsel %vm948, %v1106, 0.0
      %1184 = vadd.xlane.f32.xlu0 %v1183
      %v1185 = vpop.xlane.xlu0 %1184
      %v1186 = vsel %vm948, %v1108, 0.0
      %1187 = vadd.xlane.f32.xlu0 %v1186
      %v1188 = vpop.xlane.xlu0 %1187
      %v1189 = vsel %vm948, %v1110, 0.0
      %1190 = vadd.xlane.f32.xlu0 %v1189
      %v1191 = vpop.xlane.xlu0 %1190
      %v1192 = vsel %vm948, %v1112, 0.0
      %1193 = vadd.xlane.f32.xlu0 %v1192
      %v1194 = vpop.xlane.xlu0 %1193
      %v1195 = vsel %vm948, %v1114, 0.0
      %1196 = vadd.xlane.f32.xlu0 %v1195
      %v1197 = vpop.xlane.xlu0 %1196
      %v1198 = vsel %vm948, %v1116, 0.0
      %1199 = vadd.xlane.f32.xlu0 %v1198
      %v1200 = vpop.xlane.xlu0 %1199
      %v1201 = vsel %vm948, %v1118, 0.0
      %1202 = vadd.xlane.f32.xlu0 %v1201
      %v1203 = vpop.xlane.xlu0 %1202
      %v1204 = vsel %vm948, %v1120, 0.0
      %1205 = vadd.xlane.f32.xlu0 %v1204
      %v1206 = vpop.xlane.xlu0 %1205
      %v1207 = vsel %vm948, %v1122, 0.0
      %1208 = vadd.xlane.f32.xlu0 %v1207
      %v1209 = vpop.xlane.xlu0 %1208
      %v1210 = vsel %vm948, %v1124, 0.0
      %1211 = vadd.xlane.f32.xlu0 %v1210
      %v1212 = vpop.xlane.xlu0 %1211
      %v1213 = vsel %vm948, %v1126, 0.0
      %1214 = vadd.xlane.f32.xlu0 %v1213
      %v1215 = vpop.xlane.xlu0 %1214
      %v1216 = vsel %vm948, %v1128, 0.0
      %1217 = vadd.xlane.f32.xlu0 %v1216
      %v1218 = vpop.xlane.xlu0 %1217
      %v1219 = vsel %vm948, %v1130, 0.0
      %1220 = vadd.xlane.f32.xlu0 %v1219
      %v1221 = vpop.xlane.xlu0 %1220
      %v1222 = vsel %vm948, %v1132, 0.0
      %1223 = vadd.xlane.f32.xlu0 %v1222
      %v1224 = vpop.xlane.xlu0 %1223
      %v1225 = vsel %vm948, %v1134, 0.0
      %1226 = vadd.xlane.f32.xlu0 %v1225
      %v1227 = vpop.xlane.xlu0 %1226
      %v1228 = vsel %vm948, %v1136, 0.0
      %1229 = vadd.xlane.f32.xlu0 %v1228
      %v1230 = vpop.xlane.xlu0 %1229
      %v1231 = vsel %vm948, %v1138, 0.0
      %1232 = vadd.xlane.f32.xlu0 %v1231
      %v1233 = vpop.xlane.xlu0 %1232
      %v1234 = vsel %vm948, %v1140, 0.0
      %1235 = vadd.xlane.f32.xlu0 %v1234
      %v1236 = vpop.xlane.xlu0 %1235
      %v1237 = vrcp.pop %v1143
      %v1238 = vrcp.pop %v1146
      %v1239 = vrcp.pop %v1149
      %v1240 = vrcp.pop %v1152
      %v1241 = vrcp.pop %v1155
      %v1242 = vrcp.pop %v1158
      %v1243 = vrcp.pop %v1161
      %v1244 = vrcp.pop %v1164
      %v1245 = vrcp.pop %v1167
      %v1246 = vrcp.pop %v1170
      %v1247 = vrcp.pop %v1173
      %v1248 = vrcp.pop %v1176
      %v1249 = vrcp.pop %v1179
      %v1250 = vrcp.pop %v1182
      %v1251 = vrcp.pop %v1185
      %v1252 = vrcp.pop %v1188
      %v1253 = vrcp.pop %v1191
      %v1254 = vrcp.pop %v1194
      %v1255 = vrcp.pop %v1197
      %v1256 = vrcp.pop %v1200
      %v1257 = vrcp.pop %v1203
      %v1258 = vrcp.pop %v1206
      %v1259 = vrcp.pop %v1209
      %v1260 = vrcp.pop %v1212
      %v1261 = vrcp.pop %v1215
      %v1262 = vrcp.pop %v1218
      %v1263 = vrcp.pop %v1221
      %v1264 = vrcp.pop %v1224
      %v1265 = vrcp.pop %v1227
      %v1266 = vrcp.pop %v1230
      %v1267 = vrcp.pop %v1233
      %v1268 = vrcp.pop %v1236
      %v1269 = vmul.f32 %v1078, %v1237
      %v1270 = vmul.f32 %v1080, %v1238
      %v1271 = vmul.f32 %v1082, %v1239
      %v1272 = vmul.f32 %v1084, %v1240
      %v1273 = vmul.f32 %v1086, %v1241
      %v1274 = vmul.f32 %v1088, %v1242
      %v1275 = vmul.f32 %v1090, %v1243
      %v1276 = vmul.f32 %v1092, %v1244
      %v1277 = vmul.f32 %v1094, %v1245
      %v1278 = vmul.f32 %v1096, %v1246
      %v1279 = vmul.f32 %v1098, %v1247
      %v1280 = vmul.f32 %v1100, %v1248
      %v1281 = vmul.f32 %v1102, %v1249
      %v1282 = vmul.f32 %v1104, %v1250
      %v1283 = vmul.f32 %v1106, %v1251
      %v1284 = vmul.f32 %v1108, %v1252
      %v1285 = vmul.f32 %v1110, %v1253
      %v1286 = vmul.f32 %v1112, %v1254
      %v1287 = vmul.f32 %v1114, %v1255
      %v1288 = vmul.f32 %v1116, %v1256
      %v1289 = vmul.f32 %v1118, %v1257
      %v1290 = vmul.f32 %v1120, %v1258
      %v1291 = vmul.f32 %v1122, %v1259
      %v1292 = vmul.f32 %v1124, %v1260
      %v1293 = vmul.f32 %v1126, %v1261
      %v1294 = vmul.f32 %v1128, %v1262
      %v1295 = vmul.f32 %v1130, %v1263
      %v1296 = vmul.f32 %v1132, %v1264
      %v1297 = vmul.f32 %v1134, %v1265
      %v1298 = vmul.f32 %v1136, %v1266
      %v1299 = vmul.f32 %v1138, %v1267
      %v1300 = vmul.f32 %v1140, %v1268
      %v1301 = vpack.c.bf16 %v1270, %v1269
      %v1302 = vpack.c.bf16 %v1272, %v1271
      %v1303 = vpack.c.bf16 %v1274, %v1273
      %v1304 = vpack.c.bf16 %v1276, %v1275
      %v1305 = vpack.c.bf16 %v1278, %v1277
      %v1306 = vpack.c.bf16 %v1280, %v1279
      %v1307 = vpack.c.bf16 %v1282, %v1281
      %v1308 = vpack.c.bf16 %v1284, %v1283
      %v1309 = vpack.c.bf16 %v1286, %v1285
      %v1310 = vpack.c.bf16 %v1288, %v1287
      %v1311 = vpack.c.bf16 %v1290, %v1289
      %v1312 = vpack.c.bf16 %v1292, %v1291
      %v1313 = vpack.c.bf16 %v1294, %v1293
      %v1314 = vpack.c.bf16 %v1296, %v1295
      %v1315 = vpack.c.bf16 %v1298, %v1297
      %v1316 = vpack.c.bf16 %v1300, %v1299
      %v1325 = vunpack.c.l.b16 %v303
      %v1326 = vunpack.c.l.b16 %v304
      %v1327 = vunpack.c.l.b16 %v305
      %v1328 = vunpack.c.l.b16 %v306
      %v1329 = vunpack.c.l.b16 %v307
      %v1330 = vunpack.c.l.b16 %v308
      %v1331 = vunpack.c.l.b16 %v309
      %v1332 = vunpack.c.l.b16 %v310
      %v1333 = vpack.c.b16 %v1326, %v1325
      %v1334 = vpack.c.b16 %v1328, %v1327
      %v1335 = vpack.c.b16 %v1330, %v1329
      %v1336 = vpack.c.b16 %v1332, %v1331
      %v1342 = vsel %vm948, %v1301, 0
      %v1345 = vsel %vm948, %v1302, 0
      %v1348 = vsel %vm948, %v1303, 0
      %v1351 = vsel %vm948, %v1304, 0
      %1353 = vmatprep.subr.bf16.mxu0 0
      %1354 = vmatpush1.bf16.msra.mxu0 %v1333
      %1355 = vmatprep.subr.bf16.mxu0 0
      %1356 = vmatpush1.bf16.msra.mxu0 %v1334
      %1357 = vmatprep.subr.bf16.mxu0 0
      %1358 = vmatpush1.bf16.msra.mxu0 %v1335
      %1359 = vmatprep.subr.bf16.mxu0 0
      %1360 = vmatpush1.bf16.msra.mxu0 %v1336
      %1361 = vmatprep.subr.bf16.mxu0 0
      %1362 = vmatpush1.bf16.msra.mxu0 0
      %1363 = vmatprep.subr.bf16.mxu0 0
      %1364 = vmatpush1.bf16.msra.mxu0 0
      %1365 = vmatprep.subr.bf16.mxu0 0
      %1366 = vmatpush1.bf16.msra.mxu0 0
      %1367 = vmatprep.subr.bf16.mxu0 0
      %1368 = vmatpush1.bf16.msra.mxu0 0
      %1369 = vmatprep.subr.bf16.mxu0 0
      %1370 = vmatpush1.bf16.msra.mxu0 0
      %1371 = vmatprep.subr.bf16.mxu0 0
      %1372 = vmatpush1.bf16.msra.mxu0 0
      %1373 = vmatprep.subr.bf16.mxu0 0
      %1374 = vmatpush1.bf16.msra.mxu0 0
      %1375 = vmatprep.subr.bf16.mxu0 0
      %1376 = vmatpush1.bf16.msra.mxu0 0
      %1377 = vmatprep.subr.bf16.mxu0 0
      %1378 = vmatpush1.bf16.msra.mxu0 0
      %1379 = vmatprep.subr.bf16.mxu0 0
      %1380 = vmatpush1.bf16.msra.mxu0 0
      %1381 = vmatprep.subr.bf16.mxu0 0
      %1382 = vmatpush1.bf16.msra.mxu0 0
      %1383 = vmatprep.subr.bf16.mxu0 0
      %1384 = vmatpush1.bf16.msra.mxu0 0
      %1385 = vmatprep.mubr.bf16.mxu0 0
      %1386 = vmatmul.mubr.bf16.gmra.mrb[0].mxu0 %v1342
      %v1387 = vpop.f32.mrb[0].mxu0
      %v1388 = vadd.f32 0.0, %v1387
      %v1389 = vpop.f32.mrb[0].mxu0
      %v1390 = vpop.f32.mrb[0].mxu0
      %v1391 = vadd.f32 0.0, %v1390
      %v1392 = vpop.f32.mrb[0].mxu0
      %1393 = vmatprep.mubr.bf16.mxu0 0
      %1394 = vmatmul.mubr.bf16.gmra.mrb[0].mxu0 %v1345
      %v1395 = vpop.f32.mrb[0].mxu0
      %v1396 = vadd.f32 0.0, %v1395
      %v1397 = vpop.f32.mrb[0].mxu0
      %v1398 = vpop.f32.mrb[0].mxu0
      %v1399 = vadd.f32 0.0, %v1398
      %v1400 = vpop.f32.mrb[0].mxu0
      %1401 = vmatprep.mubr.bf16.mxu0 0
      %1402 = vmatmul.mubr.bf16.gmra.mrb[0].mxu0 %v1348
      %v1403 = vpop.f32.mrb[0].mxu0
      %v1404 = vadd.f32 0.0, %v1403
      %v1405 = vpop.f32.mrb[0].mxu0
      %v1406 = vpop.f32.mrb[0].mxu0
      %v1407 = vadd.f32 0.0, %v1406
      %v1408 = vpop.f32.mrb[0].mxu0
      %1409 = vmatprep.mubr.bf16.mxu0 0
      %1410 = vmatmul.mubr.bf16.gmra.mrb[0].mxu0 %v1351
      %v1411 = vpop.f32.mrb[0].mxu0
      %v1412 = vadd.f32 0.0, %v1411
      %v1413 = vpop.f32.mrb[0].mxu0
      %v1414 = vpop.f32.mrb[0].mxu0
      %v1415 = vadd.f32 0.0, %v1414
      %v1416 = vpop.f32.mrb[0].mxu0
      %1417 = vdwg.mxu0
      %v1426 = vunpack.c.l.b16 %v311
      %v1427 = vunpack.c.l.b16 %v312
      %v1428 = vunpack.c.l.b16 %v313
      %v1429 = vunpack.c.l.b16 %v314
      %v1430 = vunpack.c.l.b16 %v315
      %v1431 = vunpack.c.l.b16 %v316
      %v1432 = vunpack.c.l.b16 %v317
      %v1433 = vunpack.c.l.b16 %v318
      %v1434 = vpack.c.b16 %v1427, %v1426
      %v1435 = vpack.c.b16 %v1429, %v1428
      %v1436 = vpack.c.b16 %v1431, %v1430
      %v1437 = vpack.c.b16 %v1433, %v1432
      %v1443 = vsel %vm948, %v1305, 0
      %v1446 = vsel %vm948, %v1306, 0
      %v1449 = vsel %vm948, %v1307, 0
      %v1452 = vsel %vm948, %v1308, 0
      %1454 = vmatprep.subr.bf16.mxu0 0
      %1455 = vmatpush1.bf16.msra.mxu0 %v1434
      %1456 = vmatprep.subr.bf16.mxu0 0
      %1457 = vmatpush1.bf16.msra.mxu0 %v1435
      %1458 = vmatprep.subr.bf16.mxu0 0
      %1459 = vmatpush1.bf16.msra.mxu0 %v1436
      %1460 = vmatprep.subr.bf16.mxu0 0
      %1461 = vmatpush1.bf16.msra.mxu0 %v1437
      %1462 = vmatprep.subr.bf16.mxu0 0
      %1463 = vmatpush1.bf16.msra.mxu0 0
      %1464 = vmatprep.subr.bf16.mxu0 0
      %1465 = vmatpush1.bf16.msra.mxu0 0
      %1466 = vmatprep.subr.bf16.mxu0 0
      %1467 = vmatpush1.bf16.msra.mxu0 0
      %1468 = vmatprep.subr.bf16.mxu0 0
      %1469 = vmatpush1.bf16.msra.mxu0 0
      %1470 = vmatprep.subr.bf16.mxu0 0
      %1471 = vmatpush1.bf16.msra.mxu0 0
      %1472 = vmatprep.subr.bf16.mxu0 0
      %1473 = vmatpush1.bf16.msra.mxu0 0
      %1474 = vmatprep.subr.bf16.mxu0 0
      %1475 = vmatpush1.bf16.msra.mxu0 0
      %1476 = vmatprep.subr.bf16.mxu0 0
      %1477 = vmatpush1.bf16.msra.mxu0 0
      %1478 = vmatprep.subr.bf16.mxu0 0
      %1479 = vmatpush1.bf16.msra.mxu0 0
      %1480 = vmatprep.subr.bf16.mxu0 0
      %1481 = vmatpush1.bf16.msra.mxu0 0
      %1482 = vmatprep.subr.bf16.mxu0 0
      %1483 = vmatpush1.bf16.msra.mxu0 0
      %1484 = vmatprep.subr.bf16.mxu0 0
      %1485 = vmatpush1.bf16.msra.mxu0 0
      %1486 = vmatprep.mubr.bf16.mxu0 0
      %1487 = vmatmul.mubr.bf16.gmra.mrb[0].mxu0 %v1443
      %v1488 = vpop.f32.mrb[0].mxu0
      %v1489 = vadd.f32 0.0, %v1488
      %v1490 = vpop.f32.mrb[0].mxu0
      %v1491 = vpop.f32.mrb[0].mxu0
      %v1492 = vadd.f32 0.0, %v1491
      %v1493 = vpop.f32.mrb[0].mxu0
      %1494 = vmatprep.mubr.bf16.mxu0 0
      %1495 = vmatmul.mubr.bf16.gmra.mrb[0].mxu0 %v1446
      %v1496 = vpop.f32.mrb[0].mxu0
      %v1497 = vadd.f32 0.0, %v1496
      %v1498 = vpop.f32.mrb[0].mxu0
      %v1499 = vpop.f32.mrb[0].mxu0
      %v1500 = vadd.f32 0.0, %v1499
      %v1501 = vpop.f32.mrb[0].mxu0
      %1502 = vmatprep.mubr.bf16.mxu0 0
      %1503 = vmatmul.mubr.bf16.gmra.mrb[0].mxu0 %v1449
      %v1504 = vpop.f32.mrb[0].mxu0
      %v1505 = vadd.f32 0.0, %v1504
      %v1506 = vpop.f32.mrb[0].mxu0
      %v1507 = vpop.f32.mrb[0].mxu0
      %v1508 = vadd.f32 0.0, %v1507
      %v1509 = vpop.f32.mrb[0].mxu0
      %1510 = vmatprep.mubr.bf16.mxu0 0
      %1511 = vmatmul.mubr.bf16.gmra.mrb[0].mxu0 %v1452
      %v1512 = vpop.f32.mrb[0].mxu0
      %v1513 = vadd.f32 0.0, %v1512
      %v1514 = vpop.f32.mrb[0].mxu0
      %v1515 = vpop.f32.mrb[0].mxu0
      %v1516 = vadd.f32 0.0, %v1515
      %v1517 = vpop.f32.mrb[0].mxu0
      %1518 = vdwg.mxu0
      %v1527 = vunpack.c.l.b16 %v319
      %v1528 = vunpack.c.l.b16 %v320
      %v1529 = vunpack.c.l.b16 %v321
      %v1530 = vunpack.c.l.b16 %v322
      %v1531 = vunpack.c.l.b16 %v323
      %v1532 = vunpack.c.l.b16 %v324
      %v1533 = vunpack.c.l.b16 %v325
      %v1534 = vunpack.c.l.b16 %v326
      %v1535 = vpack.c.b16 %v1528, %v1527
      %v1536 = vpack.c.b16 %v1530, %v1529
      %v1537 = vpack.c.b16 %v1532, %v1531
      %v1538 = vpack.c.b16 %v1534, %v1533
      %v1544 = vsel %vm948, %v1309, 0
      %v1547 = vsel %vm948, %v1310, 0
      %v1550 = vsel %vm948, %v1311, 0
      %v1553 = vsel %vm948, %v1312, 0
      %1555 = vmatprep.subr.bf16.mxu0 0
      %1556 = vmatpush1.bf16.msra.mxu0 %v1535
      %1557 = vmatprep.subr.bf16.mxu0 0
      %1558 = vmatpush1.bf16.msra.mxu0 %v1536
      %1559 = vmatprep.subr.bf16.mxu0 0
      %1560 = vmatpush1.bf16.msra.mxu0 %v1537
      %1561 = vmatprep.subr.bf16.mxu0 0
      %1562 = vmatpush1.bf16.msra.mxu0 %v1538
      %1563 = vmatprep.subr.bf16.mxu0 0
      %1564 = vmatpush1.bf16.msra.mxu0 0
      %1565 = vmatprep.subr.bf16.mxu0 0
      %1566 = vmatpush1.bf16.msra.mxu0 0
      %1567 = vmatprep.subr.bf16.mxu0 0
      %1568 = vmatpush1.bf16.msra.mxu0 0
      %1569 = vmatprep.subr.bf16.mxu0 0
      %1570 = vmatpush1.bf16.msra.mxu0 0
      %1571 = vmatprep.subr.bf16.mxu0 0
      %1572 = vmatpush1.bf16.msra.mxu0 0
      %1573 = vmatprep.subr.bf16.mxu0 0
      %1574 = vmatpush1.bf16.msra.mxu0 0
      %1575 = vmatprep.subr.bf16.mxu0 0
      %1576 = vmatpush1.bf16.msra.mxu0 0
      %1577 = vmatprep.subr.bf16.mxu0 0
      %1578 = vmatpush1.bf16.msra.mxu0 0
      %1579 = vmatprep.subr.bf16.mxu0 0
      %1580 = vmatpush1.bf16.msra.mxu0 0
      %1581 = vmatprep.subr.bf16.mxu0 0
      %1582 = vmatpush1.bf16.msra.mxu0 0
      %1583 = vmatprep.subr.bf16.mxu0 0
      %1584 = vmatpush1.bf16.msra.mxu0 0
      %1585 = vmatprep.subr.bf16.mxu0 0
      %1586 = vmatpush1.bf16.msra.mxu0 0
      %1587 = vmatprep.mubr.bf16.mxu0 0
      %1588 = vmatmul.mubr.bf16.gmra.mrb[0].mxu0 %v1544
      %v1589 = vpop.f32.mrb[0].mxu0
      %v1590 = vadd.f32 0.0, %v1589
      %v1591 = vpop.f32.mrb[0].mxu0
      %v1592 = vpop.f32.mrb[0].mxu0
      %v1593 = vadd.f32 0.0, %v1592
      %v1594 = vpop.f32.mrb[0].mxu0
      %1595 = vmatprep.mubr.bf16.mxu0 0
      %1596 = vmatmul.mubr.bf16.gmra.mrb[0].mxu0 %v1547
      %v1597 = vpop.f32.mrb[0].mxu0
      %v1598 = vadd.f32 0.0, %v1597
      %v1599 = vpop.f32.mrb[0].mxu0
      %v1600 = vpop.f32.mrb[0].mxu0
      %v1601 = vadd.f32 0.0, %v1600
      %v1602 = vpop.f32.mrb[0].mxu0
      %1603 = vmatprep.mubr.bf16.mxu0 0
      %1604 = vmatmul.mubr.bf16.gmra.mrb[0].mxu0 %v1550
      %v1605 = vpop.f32.mrb[0].mxu0
      %v1606 = vadd.f32 0.0, %v1605
      %v1607 = vpop.f32.mrb[0].mxu0
      %v1608 = vpop.f32.mrb[0].mxu0
      %v1609 = vadd.f32 0.0, %v1608
      %v1610 = vpop.f32.mrb[0].mxu0
      %1611 = vmatprep.mubr.bf16.mxu0 0
      %1612 = vmatmul.mubr.bf16.gmra.mrb[0].mxu0 %v1553
      %v1613 = vpop.f32.mrb[0].mxu0
      %v1614 = vadd.f32 0.0, %v1613
      %v1615 = vpop.f32.mrb[0].mxu0
      %v1616 = vpop.f32.mrb[0].mxu0
      %v1617 = vadd.f32 0.0, %v1616
      %v1618 = vpop.f32.mrb[0].mxu0
      %1619 = vdwg.mxu0
      %v1628 = vunpack.c.l.b16 %v327
      %v1629 = vunpack.c.l.b16 %v328
      %v1630 = vunpack.c.l.b16 %v329
      %v1631 = vunpack.c.l.b16 %v330
      %v1632 = vunpack.c.l.b16 %v331
      %v1633 = vunpack.c.l.b16 %v332
      %v1634 = vunpack.c.l.b16 %v333
      %v1635 = vunpack.c.l.b16 %v334
      %v1636 = vpack.c.b16 %v1629, %v1628
      %v1637 = vpack.c.b16 %v1631, %v1630
      %v1638 = vpack.c.b16 %v1633, %v1632
      %v1639 = vpack.c.b16 %v1635, %v1634
      %v1645 = vsel %vm948, %v1313, 0
      %v1648 = vsel %vm948, %v1314, 0
      %v1651 = vsel %vm948, %v1315, 0
      %v1654 = vsel %vm948, %v1316, 0
      %1656 = vmatprep.subr.bf16.mxu0 0
      %1657 = vmatpush1.bf16.msra.mxu0 %v1636
      %1658 = vmatprep.subr.bf16.mxu0 0
      %1659 = vmatpush1.bf16.msra.mxu0 %v1637
      %1660 = vmatprep.subr.bf16.mxu0 0
      %1661 = vmatpush1.bf16.msra.mxu0 %v1638
      %1662 = vmatprep.subr.bf16.mxu0 0
      %1663 = vmatpush1.bf16.msra.mxu0 %v1639
      %1664 = vmatprep.subr.bf16.mxu0 0
      %1665 = vmatpush1.bf16.msra.mxu0 0
      %1666 = vmatprep.subr.bf16.mxu0 0
      %1667 = vmatpush1.bf16.msra.mxu0 0
      %1668 = vmatprep.subr.bf16.mxu0 0
      %1669 = vmatpush1.bf16.msra.mxu0 0
      %1670 = vmatprep.subr.bf16.mxu0 0
      %1671 = vmatpush1.bf16.msra.mxu0 0
      %1672 = vmatprep.subr.bf16.mxu0 0
      %1673 = vmatpush1.bf16.msra.mxu0 0
      %1674 = vmatprep.subr.bf16.mxu0 0
      %1675 = vmatpush1.bf16.msra.mxu0 0
      %1676 = vmatprep.subr.bf16.mxu0 0
      %1677 = vmatpush1.bf16.msra.mxu0 0
      %1678 = vmatprep.subr.bf16.mxu0 0
      %1679 = vmatpush1.bf16.msra.mxu0 0
      %1680 = vmatprep.subr.bf16.mxu0 0
      %1681 = vmatpush1.bf16.msra.mxu0 0
      %1682 = vmatprep.subr.bf16.mxu0 0
      %1683 = vmatpush1.bf16.msra.mxu0 0
      %1684 = vmatprep.subr.bf16.mxu0 0
      %1685 = vmatpush1.bf16.msra.mxu0 0
      %1686 = vmatprep.subr.bf16.mxu0 0
      %1687 = vmatpush1.bf16.msra.mxu0 0
      %1688 = vmatprep.mubr.bf16.mxu0 0
      %1689 = vmatmul.mubr.bf16.gmra.mrb[0].mxu0 %v1645
      %v1690 = vpop.f32.mrb[0].mxu0
      %v1691 = vadd.f32 0.0, %v1690
      %v1692 = vpop.f32.mrb[0].mxu0
      %v1693 = vpop.f32.mrb[0].mxu0
      %v1694 = vadd.f32 0.0, %v1693
      %v1695 = vpop.f32.mrb[0].mxu0
      %1696 = vmatprep.mubr.bf16.mxu0 0
      %1697 = vmatmul.mubr.bf16.gmra.mrb[0].mxu0 %v1648
      %v1698 = vpop.f32.mrb[0].mxu0
      %v1699 = vadd.f32 0.0, %v1698
      %v1700 = vpop.f32.mrb[0].mxu0
      %v1701 = vpop.f32.mrb[0].mxu0
      %v1702 = vadd.f32 0.0, %v1701
      %v1703 = vpop.f32.mrb[0].mxu0
      %1704 = vmatprep.mubr.bf16.mxu0 0
      %1705 = vmatmul.mubr.bf16.gmra.mrb[0].mxu0 %v1651
      %v1706 = vpop.f32.mrb[0].mxu0
      %v1707 = vadd.f32 0.0, %v1706
      %v1708 = vpop.f32.mrb[0].mxu0
      %v1709 = vpop.f32.mrb[0].mxu0
      %v1710 = vadd.f32 0.0, %v1709
      %v1711 = vpop.f32.mrb[0].mxu0
      %1712 = vmatprep.mubr.bf16.mxu0 0
      %1713 = vmatmul.mubr.bf16.gmra.mrb[0].mxu0 %v1654
      %v1714 = vpop.f32.mrb[0].mxu0
      %v1715 = vadd.f32 0.0, %v1714
      %v1716 = vpop.f32.mrb[0].mxu0
      %v1717 = vpop.f32.mrb[0].mxu0
      %v1718 = vadd.f32 0.0, %v1717
      %v1719 = vpop.f32.mrb[0].mxu0
      %1720 = vdwg.mxu0
      %1721 = vst.msk [vmem:[%s237] sm:$0xff] %vm375, %v1388
      %1722 = vst.msk [vmem:[%s237 + $0x8] sm:$0xff] %vm375, %v1391
      %1723 = vst.msk [vmem:[%s237 + $0x10] sm:$0xff] %vm375, %v1396
      %1724 = vst.msk [vmem:[%s237 + $0x18] sm:$0xff] %vm375, %v1399
      %1725 = vst.msk [vmem:[%s237 + $0x20] sm:$0xff] %vm375, %v1404
      %1726 = vst.msk [vmem:[%s237 + $0x28] sm:$0xff] %vm375, %v1407
      %1727 = vst.msk [vmem:[%s237 + $0x30] sm:$0xff] %vm375, %v1412
      %1728 = vst.msk [vmem:[%s237 + $0x38] sm:$0xff] %vm375, %v1415
      %1729 = vst.msk [vmem:[%s237 + $0x40] sm:$0xff] %vm375, %v1489
      %1730 = vst.msk [vmem:[%s237 + $0x48] sm:$0xff] %vm375, %v1492
      %1731 = vst.msk [vmem:[%s237 + $0x50] sm:$0xff] %vm375, %v1497
      %1732 = vst.msk [vmem:[%s237 + $0x58] sm:$0xff] %vm375, %v1500
      %1733 = vst.msk [vmem:[%s237 + $0x60] sm:$0xff] %vm375, %v1505
      %1734 = vst.msk [vmem:[%s237 + $0x68] sm:$0xff] %vm375, %v1508
      %1735 = vst.msk [vmem:[%s237 + $0x70] sm:$0xff] %vm375, %v1513
      %1736 = vst.msk [vmem:[%s237 + $0x78] sm:$0xff] %vm375, %v1516
      %1737 = vst.msk [vmem:[%s237 + $0x80] sm:$0xff] %vm375, %v1590
      %1738 = vst.msk [vmem:[%s237 + $0x88] sm:$0xff] %vm375, %v1593
      %1739 = vst.msk [vmem:[%s237 + $0x90] sm:$0xff] %vm375, %v1598
      %1740 = vst.msk [vmem:[%s237 + $0x98] sm:$0xff] %vm375, %v1601
      %1741 = vst.msk [vmem:[%s237 + $0xa0] sm:$0xff] %vm375, %v1606
      %1742 = vst.msk [vmem:[%s237 + $0xa8] sm:$0xff] %vm375, %v1609
      %1743 = vst.msk [vmem:[%s237 + $0xb0] sm:$0xff] %vm375, %v1614
      %1744 = vst.msk [vmem:[%s237 + $0xb8] sm:$0xff] %vm375, %v1617
      %1745 = vst.msk [vmem:[%s237 + $0xc0] sm:$0xff] %vm375, %v1691
      %1746 = vst.msk [vmem:[%s237 + $0xc8] sm:$0xff] %vm375, %v1694
      %1747 = vst.msk [vmem:[%s237 + $0xd0] sm:$0xff] %vm375, %v1699
      %1748 = vst.msk [vmem:[%s237 + $0xd8] sm:$0xff] %vm375, %v1702
      %1749 = vst.msk [vmem:[%s237 + $0xe0] sm:$0xff] %vm375, %v1707
      %1750 = vst.msk [vmem:[%s237 + $0xe8] sm:$0xff] %vm375, %v1710
      %1751 = vst.msk [vmem:[%s237 + $0xf0] sm:$0xff] %vm375, %v1715
      %1752 = vst.msk [vmem:[%s237 + $0xf8] sm:$0xff] %vm375, %v1718
      %p1753 = scmp.lt.s32.totalorder %s15, 1
      %s1754 = scalar_select %p1753, %s15, 1
      %s1755 = smul.addr %s1754, 32
      %s1756 = smul.addr %s1755, 8
      %s1757 = scalar_lea.vmem %s4, %s1756
      // Predicated region
      $region37: #{block_forward.9} parent=35 // pred_check
        %p1758 = pneg %p132
      $region38: #{block_forward.9} parent=35 // pred_check_branch
        %1760 = sbr.rel (%p1758) target = $region40
      $region39: #{block_forward.9} parent=35 // pred_region
        _
      $region40: #{block_forward.9} parent=35 // pred_fallthru
        _
    $region36: #{block_forward.9} parent=5 // pred_fallthru
      _
    %p1761 = scmp.le.s32.totalorder 2, %s10
    // Predicated region
    $region41: #{block_forward.9} parent=5 // pred_check
      %p1762 = pneg %p1761
    $region42: #{block_forward.9} parent=5 // pred_check_branch
      %1764 = sbr.rel (%p1762) target = $region44
    $region43: #{block_forward.9} parent=5 // pred_region
      %s1765 = ssub.s32 %s10, 2
      // Predicated region
      $region45: #{block_forward.9} parent=43 // pred_check
        %p1766 = pneg %p138
      $region46: #{block_forward.9} parent=43 // pred_check_branch
        %1768 = sbr.rel (%p1766) target = $region48
      $region47: #{block_forward.9} parent=43 // pred_region
        %p1769 = scmp.lt.s32.totalorder %s16, 1
        %s1770 = scalar_select %p1769, %s16, 1
        %s1771 = smul.addr %s1770, 32
        %s1772 = smul.addr %s1771, 8
        %s1773 = scalar_lea.vmem %s4, %s1772
      $region48: #{block_forward.9} parent=43 // pred_fallthru
        _
    $region44: #{block_forward.9} parent=5 // pred_fallthru
      _
  $region6: #{block_forward.9} parent=0 // loop_footer
    %s14 = sadd.s32 1, %s10
  $region7: #{block_forward.9} parent=0 // loop_footer_branch
    %9 = sbr.rel target = $region3
  $region8: #{block_forward.9} parent=0 // loop_exit
    _

// kernel: block_forward.10
$region0: #{block_forward.10}
  #allocation0 [shape = 'u32[]', space=smem, size = 0x4, offset = 0x4, fixed_abs, tag = 'smem constant byte address 0x4 - core index']
  #allocation1 [shape = 'u32[144,128]{1,0:T(1,128)}', space=vmem, size = 0x12000, scoped, tag = 'internal scratch']
  %s0 = inlined_call_operand.vmem [shape: f32[128,32], index: 0, kind: input, shape index: {}]
  %s1 = inlined_call_operand.vmem [shape: bf16[32,32], index: 1, kind: input, shape index: {}]
  %s2 = inlined_call_operand.vmem [shape: f32[1,32], index: 2, kind: input, shape index: {}]
  %s3 = inlined_call_operand.vmem [shape: f32[128,32], index: 3, kind: output, shape index: {}]
  %s4 = sld [smem:[#allocation0]]
  $region22: #{block_forward.10} parent=0
    _
  %s6 = ssub.s32 1, %s4
  %s7 = scalar_select 0, %s6, %s4
  // Predicated region
  $region2: #{block_forward.10} parent=0 // pred_check
    _
  $region3: #{block_forward.10} parent=0 // pred_check_branch
    %9 = sbr.rel (0) target = $region5
  $region4: #{block_forward.10} parent=0 // pred_region
    _
  $region5: #{block_forward.10} parent=0 // pred_fallthru
    _
  // Predicated region
  $region6: #{block_forward.10} parent=0 // pred_check
    _
  $region7: #{block_forward.10} parent=0 // pred_check_branch
    %11 = sbr.rel (0) target = $region9
  $region8: #{block_forward.10} parent=0 // pred_region
    _
  $region9: #{block_forward.10} parent=0 // pred_fallthru
    _
  // Predicated region
  $region10: #{block_forward.10} parent=0 // pred_check
    _
  $region11: #{block_forward.10} parent=0 // pred_check_branch
    %13 = sbr.rel (0) target = $region13
  $region12: #{block_forward.10} parent=0 // pred_region
    _
  $region13: #{block_forward.10} parent=0 // pred_fallthru
    _
  %v15 = vld [vmem:[%s0] sm:$0xff]
  %v16 = vld [vmem:[%s0 + $0x8] sm:$0xff]
  %v17 = vld [vmem:[%s0 + $0x10] sm:$0xff]
  %v18 = vld [vmem:[%s0 + $0x18] sm:$0xff]
  %v19 = vld [vmem:[%s0 + $0x20] sm:$0xff]
  %v20 = vld [vmem:[%s0 + $0x28] sm:$0xff]
  %v21 = vld [vmem:[%s0 + $0x30] sm:$0xff]
  %v22 = vld [vmem:[%s0 + $0x38] sm:$0xff]
  %v23 = vld [vmem:[%s0 + $0x40] sm:$0xff]
  %v24 = vld [vmem:[%s0 + $0x48] sm:$0xff]
  %v25 = vld [vmem:[%s0 + $0x50] sm:$0xff]
  %v26 = vld [vmem:[%s0 + $0x58] sm:$0xff]
  %v27 = vld [vmem:[%s0 + $0x60] sm:$0xff]
  %v28 = vld [vmem:[%s0 + $0x68] sm:$0xff]
  %v29 = vld [vmem:[%s0 + $0x70] sm:$0xff]
  %v30 = vld [vmem:[%s0 + $0x78] sm:$0xff]
  %v31 = vpack.c.bf16 %v16, %v15
  %v32 = vpack.c.bf16 %v18, %v17
  %v33 = vpack.c.bf16 %v20, %v19
  %v34 = vpack.c.bf16 %v22, %v21
  %v35 = vpack.c.bf16 %v24, %v23
  %v36 = vpack.c.bf16 %v26, %v25
  %v37 = vpack.c.bf16 %v28, %v27
  %v38 = vpack.c.bf16 %v30, %v29
  %v39 = vld [vmem:[%s1] sm:$0xf]
  %v40 = vld [vmem:[%s1 + $0x4] sm:$0xf]
  %v41 = vld [vmem:[%s1 + $0x8] sm:$0xf]
  %v42 = vld [vmem:[%s1 + $0xc] sm:$0xf]
  %v43 = vld [vmem:[%s2] sm:$0x1]
  %v45 = vlaneseq
  %v46 = vshrl.u32 %v45, 7
  %v47 = vsub.s32 0, %v46
  %v48 = vrot.slane %v43, %v47
  %v54 = vunpack.c.l.b16 %v39
  %v55 = vunpack.c.l.b16 %v40
  %v56 = vunpack.c.l.b16 %v41
  %v57 = vunpack.c.l.b16 %v42
  %v58 = vpack.c.b16 %v55, %v54
  %v59 = vpack.c.b16 %v57, %v56
  %vm62 = vcmask 261120
  %v64 = vsel %vm62, %v31, 0
  %v67 = vsel %vm62, %v32, 0
  %v70 = vsel %vm62, %v33, 0
  %v73 = vsel %vm62, %v34, 0
  %v76 = vsel %vm62, %v35, 0
  %v79 = vsel %vm62, %v36, 0
  %v82 = vsel %vm62, %v37, 0
  %v85 = vsel %vm62, %v38, 0
  %87 = vmatprep.subr.bf16.mxu0 0
  %88 = vmatpush1.bf16.msra.mxu0 %v58
  %89 = vmatprep.subr.bf16.mxu0 0
  %90 = vmatpush1.bf16.msra.mxu0 %v59
  %91 = vmatprep.subr.bf16.mxu0 0
  %92 = vmatpush1.bf16.msra.mxu0 0
  %93 = vmatprep.subr.bf16.mxu0 0
  %94 = vmatpush1.bf16.msra.mxu0 0
  %95 = vmatprep.subr.bf16.mxu0 0
  %96 = vmatpush1.bf16.msra.mxu0 0
  %97 = vmatprep.subr.bf16.mxu0 0
  %98 = vmatpush1.bf16.msra.mxu0 0
  %99 = vmatprep.subr.bf16.mxu0 0
  %100 = vmatpush1.bf16.msra.mxu0 0
  %101 = vmatprep.subr.bf16.mxu0 0
  %102 = vmatpush1.bf16.msra.mxu0 0
  %103 = vmatprep.subr.bf16.mxu0 0
  %104 = vmatpush1.bf16.msra.mxu0 0
  %105 = vmatprep.subr.bf16.mxu0 0
  %106 = vmatpush1.bf16.msra.mxu0 0
  %107 = vmatprep.subr.bf16.mxu0 0
  %108 = vmatpush1.bf16.msra.mxu0 0
  %109 = vmatprep.subr.bf16.mxu0 0
  %110 = vmatpush1.bf16.msra.mxu0 0
  %111 = vmatprep.subr.bf16.mxu0 0
  %112 = vmatpush1.bf16.msra.mxu0 0
  %113 = vmatprep.subr.bf16.mxu0 0
  %114 = vmatpush1.bf16.msra.mxu0 0
  %115 = vmatprep.subr.bf16.mxu0 0
  %116 = vmatpush1.bf16.msra.mxu0 0
  %117 = vmatprep.subr.bf16.mxu0 0
  %118 = vmatpush1.bf16.msra.mxu0 0
  %119 = vmatprep.mubr.bf16.mxu0 0
  %120 = vmatmul.mubr.bf16.gmra.mrb[0].mxu0 %v64
  %v121 = vpop.f32.mrb[0].mxu0
  %v122 = vadd.f32 %v48, %v121
  %v123 = vpop.f32.mrb[0].mxu0
  %v124 = vpop.f32.mrb[0].mxu0
  %v125 = vadd.f32 %v48, %v124
  %v126 = vpop.f32.mrb[0].mxu0
  %127 = vmatprep.mubr.bf16.mxu0 0
  %128 = vmatmul.mubr.bf16.gmra.mrb[0].mxu0 %v67
  %v129 = vpop.f32.mrb[0].mxu0
  %v130 = vadd.f32 %v48, %v129
  %v131 = vpop.f32.mrb[0].mxu0
  %v132 = vpop.f32.mrb[0].mxu0
  %v133 = vadd.f32 %v48, %v132
  %v134 = vpop.f32.mrb[0].mxu0
  %135 = vmatprep.mubr.bf16.mxu0 0
  %136 = vmatmul.mubr.bf16.gmra.mrb[0].mxu0 %v70
  %v137 = vpop.f32.mrb[0].mxu0
  %v138 = vadd.f32 %v48, %v137
  %v139 = vpop.f32.mrb[0].mxu0
  %v140 = vpop.f32.mrb[0].mxu0
  %v141 = vadd.f32 %v48, %v140
  %v142 = vpop.f32.mrb[0].mxu0
  %143 = vmatprep.mubr.bf16.mxu0 0
  %144 = vmatmul.mubr.bf16.gmra.mrb[0].mxu0 %v73
  %v145 = vpop.f32.mrb[0].mxu0
  %v146 = vadd.f32 %v48, %v145
  %v147 = vpop.f32.mrb[0].mxu0
  %v148 = vpop.f32.mrb[0].mxu0
  %v149 = vadd.f32 %v48, %v148
  %v150 = vpop.f32.mrb[0].mxu0
  %151 = vmatprep.mubr.bf16.mxu0 0
  %152 = vmatmul.mubr.bf16.gmra.mrb[0].mxu0 %v76
  %v153 = vpop.f32.mrb[0].mxu0
  %v154 = vadd.f32 %v48, %v153
  %v155 = vpop.f32.mrb[0].mxu0
  %v156 = vpop.f32.mrb[0].mxu0
  %v157 = vadd.f32 %v48, %v156
  %v158 = vpop.f32.mrb[0].mxu0
  %159 = vmatprep.mubr.bf16.mxu0 0
  %160 = vmatmul.mubr.bf16.gmra.mrb[0].mxu0 %v79
  %v161 = vpop.f32.mrb[0].mxu0
  %v162 = vadd.f32 %v48, %v161
  %v163 = vpop.f32.mrb[0].mxu0
  %v164 = vpop.f32.mrb[0].mxu0
  %v165 = vadd.f32 %v48, %v164
  %v166 = vpop.f32.mrb[0].mxu0
  %167 = vmatprep.mubr.bf16.mxu0 0
  %168 = vmatmul.mubr.bf16.gmra.mrb[0].mxu0 %v82
  %v169 = vpop.f32.mrb[0].mxu0
  %v170 = vadd.f32 %v48, %v169
  %v171 = vpop.f32.mrb[0].mxu0
  %v172 = vpop.f32.mrb[0].mxu0
  %v173 = vadd.f32 %v48, %v172
  %v174 = vpop.f32.mrb[0].mxu0
  %175 = vmatprep.mubr.bf16.mxu0 0
  %176 = vmatmul.mubr.bf16.gmra.mrb[0].mxu0 %v85
  %v177 = vpop.f32.mrb[0].mxu0
  %v178 = vadd.f32 %v48, %v177
  %v179 = vpop.f32.mrb[0].mxu0
  %v180 = vpop.f32.mrb[0].mxu0
  %v181 = vadd.f32 %v48, %v180
  %v182 = vpop.f32.mrb[0].mxu0
  %183 = vdwg.mxu0
  %184 = vst.msk [vmem:[%s3] sm:$0xff] %vm62, %v122
  %185 = vst.msk [vmem:[%s3 + $0x8] sm:$0xff] %vm62, %v125
  %186 = vst.msk [vmem:[%s3 + $0x10] sm:$0xff] %vm62, %v130
  %187 = vst.msk [vmem:[%s3 + $0x18] sm:$0xff] %vm62, %v133
  %188 = vst.msk [vmem:[%s3 + $0x20] sm:$0xff] %vm62, %v138
  %189 = vst.msk [vmem:[%s3 + $0x28] sm:$0xff] %vm62, %v141
  %190 = vst.msk [vmem:[%s3 + $0x30] sm:$0xff] %vm62, %v146
  %191 = vst.msk [vmem:[%s3 + $0x38] sm:$0xff] %vm62, %v149
  %192 = vst.msk [vmem:[%s3 + $0x40] sm:$0xff] %vm62, %v154
  %193 = vst.msk [vmem:[%s3 + $0x48] sm:$0xff] %vm62, %v157
  %194 = vst.msk [vmem:[%s3 + $0x50] sm:$0xff] %vm62, %v162
  %195 = vst.msk [vmem:[%s3 + $0x58] sm:$0xff] %vm62, %v165
  %196 = vst.msk [vmem:[%s3 + $0x60] sm:$0xff] %vm62, %v170
  %197 = vst.msk [vmem:[%s3 + $0x68] sm:$0xff] %vm62, %v173
  %198 = vst.msk [vmem:[%s3 + $0x70] sm:$0xff] %vm62, %v178
  %199 = vst.msk [vmem:[%s3 + $0x78] sm:$0xff] %vm62, %v181
  // Predicated region
  $region14: #{block_forward.10} parent=0 // pred_check
    _
  $region15: #{block_forward.10} parent=0 // pred_check_branch
    %201 = sbr.rel (0) target = $region17
  $region16: #{block_forward.10} parent=0 // pred_region
    _
  $region17: #{block_forward.10} parent=0 // pred_fallthru
    _
  // Predicated region
  $region18: #{block_forward.10} parent=0 // pred_check
    _
  $region19: #{block_forward.10} parent=0 // pred_check_branch
    %203 = sbr.rel (0) target = $region21
  $region20: #{block_forward.10} parent=0 // pred_region
    _
  $region21: #{block_forward.10} parent=0 // pred_fallthru
    _

// kernel: block_forward.12
$region0: #{block_forward.12}
  #allocation0 [shape = 'u32[]', space=smem, size = 0x4, offset = 0x4, fixed_abs, tag = 'smem constant byte address 0x4 - core index']
  #allocation1 [shape = 'u32[144,128]{1,0:T(1,128)}', space=vmem, size = 0x12000, scoped, tag = 'internal scratch']
  %s0 = inlined_call_operand.vmem [shape: f32[32,32], index: 0, kind: input, shape index: {}]
  %s1 = inlined_call_operand.vmem [shape: f32[1,32], index: 1, kind: input, shape index: {}]
  %s2 = inlined_call_operand.vmem [shape: f32[1,32], index: 2, kind: input, shape index: {}]
  %s3 = inlined_call_operand.vmem [shape: bf16[32,128], index: 3, kind: input, shape index: {}]
  %s4 = inlined_call_operand.vmem [shape: f32[1,128], index: 4, kind: input, shape index: {}]
  %s5 = inlined_call_operand.vmem [shape: f32[32,128], index: 5, kind: output, shape index: {}]
  %s6 = sld [smem:[#allocation0]]
  $region30: #{block_forward.12} parent=0
    _
  %s8 = ssub.s32 1, %s6
  %s9 = scalar_select 0, %s8, %s6
  // Predicated region
  $region2: #{block_forward.12} parent=0 // pred_check
    _
  $region3: #{block_forward.12} parent=0 // pred_check_branch
    %11 = sbr.rel (0) target = $region5
  $region4: #{block_forward.12} parent=0 // pred_region
    _
  $region5: #{block_forward.12} parent=0 // pred_fallthru
    _
  // Predicated region
  $region6: #{block_forward.12} parent=0 // pred_check
    _
  $region7: #{block_forward.12} parent=0 // pred_check_branch
    %13 = sbr.rel (0) target = $region9
  $region8: #{block_forward.12} parent=0 // pred_region
    _
  $region9: #{block_forward.12} parent=0 // pred_fallthru
    _
  // Predicated region
  $region10: #{block_forward.12} parent=0 // pred_check
    _
  $region11: #{block_forward.12} parent=0 // pred_check_branch
    %15 = sbr.rel (0) target = $region13
  $region12: #{block_forward.12} parent=0 // pred_region
    _
  $region13: #{block_forward.12} parent=0 // pred_fallthru
    _
  // Predicated region
  $region14: #{block_forward.12} parent=0 // pred_check
    _
  $region15: #{block_forward.12} parent=0 // pred_check_branch
    %17 = sbr.rel (0) target = $region17
  $region16: #{block_forward.12} parent=0 // pred_region
    _
  $region17: #{block_forward.12} parent=0 // pred_fallthru
    _
  // Predicated region
  $region18: #{block_forward.12} parent=0 // pred_check
    _
  $region19: #{block_forward.12} parent=0 // pred_check_branch
    %19 = sbr.rel (0) target = $region21
  $region20: #{block_forward.12} parent=0 // pred_region
    _
  $region21: #{block_forward.12} parent=0 // pred_fallthru
    _
  %v21 = vld [vmem:[%s0] sm:$0xff]
  %v22 = vld [vmem:[%s0 + $0x8] sm:$0xff]
  %v23 = vld [vmem:[%s0 + $0x10] sm:$0xff]
  %v24 = vld [vmem:[%s0 + $0x18] sm:$0xff]
  %vm25 = vcmask 261120
  %v26 = vsel %vm25, %v21, 0.0
  %27 = vadd.xlane.f32.xlu0 %v26
  %v28 = vpop.xlane.xlu0 %27
  %v29 = vsel %vm25, %v22, 0.0
  %30 = vadd.xlane.f32.xlu0 %v29
  %v31 = vpop.xlane.xlu0 %30
  %v32 = vsel %vm25, %v23, 0.0
  %33 = vadd.xlane.f32.xlu0 %v32
  %v34 = vpop.xlane.xlu0 %33
  %v35 = vsel %vm25, %v24, 0.0
  %36 = vadd.xlane.f32.xlu0 %v35
  %v37 = vpop.xlane.xlu0 %36
  %v38 = vrcp.pop 32.0
  %v39 = vmul.f32 %v28, %v38
  %v40 = vmul.f32 %v31, %v38
  %v41 = vmul.f32 %v34, %v38
  %v42 = vmul.f32 %v37, %v38
  %v43 = vsub.f32 %v21, %v39
  %v44 = vsub.f32 %v22, %v40
  %v45 = vsub.f32 %v23, %v41
  %v46 = vsub.f32 %v24, %v42
  %v47 = vmul.f32 %v43, %v43
  %v48 = vmul.f32 %v44, %v44
  %v49 = vmul.f32 %v45, %v45
  %v50 = vmul.f32 %v46, %v46
  %v51 = vsel %vm25, %v47, 0.0
  %52 = vadd.xlane.f32.xlu0 %v51
  %v53 = vpop.xlane.xlu0 %52
  %v54 = vsel %vm25, %v48, 0.0
  %55 = vadd.xlane.f32.xlu0 %v54
  %v56 = vpop.xlane.xlu0 %55
  %v57 = vsel %vm25, %v49, 0.0
  %58 = vadd.xlane.f32.xlu0 %v57
  %v59 = vpop.xlane.xlu0 %58
  %v60 = vsel %vm25, %v50, 0.0
  %61 = vadd.xlane.f32.xlu0 %v60
  %v62 = vpop.xlane.xlu0 %61
  %v63 = vmul.f32 %v53, %v38
  %v64 = vmul.f32 %v56, %v38
  %v65 = vmul.f32 %v59, %v38
  %v66 = vmul.f32 %v62, %v38
  %v67 = vadd.f32 %v63, 1e-05
  %v68 = vadd.f32 %v64, 1e-05
  %v69 = vadd.f32 %v65, 1e-05
  %v70 = vadd.f32 %v66, 1e-05
  %v71 = vrsqrt.pop %v67
  %v72 = vrsqrt.pop %v68
  %v73 = vrsqrt.pop %v69
  %v74 = vrsqrt.pop %v70
  %v75 = vmul.f32 %v43, %v71
  %v76 = vmul.f32 %v44, %v72
  %v77 = vmul.f32 %v45, %v73
  %v78 = vmul.f32 %v46, %v74
  %v79 = vld [vmem:[%s1] sm:$0x1]
  %v81 = vlaneseq
  %v82 = vshrl.u32 %v81, 7
  %v83 = vsub.s32 0, %v82
  %v84 = vrot.slane %v79, %v83
  %v86 = vmul.f32 %v75, %v84
  %v87 = vmul.f32 %v76, %v84
  %v88 = vmul.f32 %v77, %v84
  %v89 = vmul.f32 %v78, %v84
  %v90 = vld [vmem:[%s2] sm:$0x1]
  %v92 = vlaneseq
  %v93 = vshrl.u32 %v92, 7
  %v94 = vsub.s32 0, %v93
  %v95 = vrot.slane %v90, %v94
  %v97 = vadd.f32 %v86, %v95
  %v98 = vadd.f32 %v87, %v95
  %v99 = vadd.f32 %v88, %v95
  %v100 = vadd.f32 %v89, %v95
  %v101 = vpack.c.bf16 %v98, %v97
  %v102 = vpack.c.bf16 %v100, %v99
  %v103 = vld [vmem:[%s3] sm:$0xf]
  %v104 = vld [vmem:[%s3 + $0x4] sm:$0xf]
  %v105 = vld [vmem:[%s3 + $0x8] sm:$0xf]
  %v106 = vld [vmem:[%s3 + $0xc] sm:$0xf]
  %v107 = vld [vmem:[%s4] sm:$0x1]
  %v109 = vlaneseq
  %v110 = vshrl.u32 %v109, 7
  %v111 = vsub.s32 0, %v110
  %v112 = vrot.slane %v107, %v111
  %v118 = vunpack.c.l.b16 %v103
  %v119 = vunpack.c.l.b16 %v104
  %v120 = vunpack.c.l.b16 %v105
  %v121 = vunpack.c.l.b16 %v106
  %v122 = vpack.c.b16 %v119, %v118
  %v123 = vpack.c.b16 %v121, %v120
  %v127 = vsel %vm25, %v101, 0
  %v130 = vsel %vm25, %v102, 0
  %132 = vmatprep.subr.bf16.mxu0 0
  %133 = vmatpush1.bf16.msra.mxu0 %v122
  %134 = vmatprep.subr.bf16.mxu0 0
  %135 = vmatpush1.bf16.msra.mxu0 %v123
  %136 = vmatprep.subr.bf16.mxu0 0
  %137 = vmatpush1.bf16.msra.mxu0 0
  %138 = vmatprep.subr.bf16.mxu0 0
  %139 = vmatpush1.bf16.msra.mxu0 0
  %140 = vmatprep.subr.bf16.mxu0 0
  %141 = vmatpush1.bf16.msra.mxu0 0
  %142 = vmatprep.subr.bf16.mxu0 0
  %143 = vmatpush1.bf16.msra.mxu0 0
  %144 = vmatprep.subr.bf16.mxu0 0
  %145 = vmatpush1.bf16.msra.mxu0 0
  %146 = vmatprep.subr.bf16.mxu0 0
  %147 = vmatpush1.bf16.msra.mxu0 0
  %148 = vmatprep.subr.bf16.mxu0 0
  %149 = vmatpush1.bf16.msra.mxu0 0
  %150 = vmatprep.subr.bf16.mxu0 0
  %151 = vmatpush1.bf16.msra.mxu0 0
  %152 = vmatprep.subr.bf16.mxu0 0
  %153 = vmatpush1.bf16.msra.mxu0 0
  %154 = vmatprep.subr.bf16.mxu0 0
  %155 = vmatpush1.bf16.msra.mxu0 0
  %156 = vmatprep.subr.bf16.mxu0 0
  %157 = vmatpush1.bf16.msra.mxu0 0
  %158 = vmatprep.subr.bf16.mxu0 0
  %159 = vmatpush1.bf16.msra.mxu0 0
  %160 = vmatprep.subr.bf16.mxu0 0
  %161 = vmatpush1.bf16.msra.mxu0 0
  %162 = vmatprep.subr.bf16.mxu0 0
  %163 = vmatpush1.bf16.msra.mxu0 0
  %164 = vmatprep.mubr.bf16.mxu0 0
  %165 = vmatmul.mubr.bf16.gmra.mrb[0].mxu0 %v127
  %v166 = vpop.f32.mrb[0].mxu0
  %v167 = vadd.f32 %v112, %v166
  %v168 = vpop.f32.mrb[0].mxu0
  %v169 = vpop.f32.mrb[0].mxu0
  %v170 = vadd.f32 %v112, %v169
  %v171 = vpop.f32.mrb[0].mxu0
  %172 = vmatprep.mubr.bf16.mxu0 0
  %173 = vmatmul.mubr.bf16.gmra.mrb[0].mxu0 %v130
  %v174 = vpop.f32.mrb[0].mxu0
  %v175 = vadd.f32 %v112, %v174
  %v176 = vpop.f32.mrb[0].mxu0
  %v177 = vpop.f32.mrb[0].mxu0
  %v178 = vadd.f32 %v112, %v177
  %v179 = vpop.f32.mrb[0].mxu0
  %180 = vdwg.mxu0
  %181 = vst [vmem:[%s5] sm:$0xff] %v167
  %182 = vst [vmem:[%s5 + $0x8] sm:$0xff] %v170
  %183 = vst [vmem:[%s5 + $0x10] sm:$0xff] %v175
  %184 = vst [vmem:[%s5 + $0x18] sm:$0xff] %v178
  // Predicated region
  $region22: #{block_forward.12} parent=0 // pred_check
    _
  $region23: #{block_forward.12} parent=0 // pred_check_branch
    %186 = sbr.rel (0) target = $region25
  $region24: #{block_forward.12} parent=0 // pred_region
    _
  $region25: #{block_forward.12} parent=0 // pred_fallthru
    _
  // Predicated region
  $region26: #{block_forward.12} parent=0 // pred_check
    _
  $region27: #{block_forward.12} parent=0 // pred_check_branch
    %188 = sbr.rel (0) target = $region29
  $region28: #{block_forward.12} parent=0 // pred_region
    _
  $region29: #{block_forward.12} parent=0 // pred_fallthru
    _

// kernel: block_forward.13
$region0: #{block_forward.13}
  #allocation0 [shape = 'u32[]', space=smem, size = 0x4, offset = 0x4, fixed_abs, tag = 'smem constant byte address 0x4 - core index']
  #allocation1 [shape = 'u32[144,128]{1,0:T(1,128)}', space=vmem, size = 0x12000, scoped, tag = 'internal scratch']
  %s0 = inlined_call_operand.vmem [shape: f32[32,128], index: 0, kind: input, shape index: {}]
  %s1 = inlined_call_operand.vmem [shape: bf16[128,32], index: 1, kind: input, shape index: {}]
  %s2 = inlined_call_operand.vmem [shape: f32[1,32], index: 2, kind: input, shape index: {}]
  %s3 = inlined_call_operand.vmem [shape: f32[32,32], index: 3, kind: output, shape index: {}]
  %s4 = sld [smem:[#allocation0]]
  $region22: #{block_forward.13} parent=0
    _
  %s6 = ssub.s32 1, %s4
  %s7 = scalar_select 0, %s6, %s4
  // Predicated region
  $region2: #{block_forward.13} parent=0 // pred_check
    _
  $region3: #{block_forward.13} parent=0 // pred_check_branch
    %9 = sbr.rel (0) target = $region5
  $region4: #{block_forward.13} parent=0 // pred_region
    _
  $region5: #{block_forward.13} parent=0 // pred_fallthru
    _
  // Predicated region
  $region6: #{block_forward.13} parent=0 // pred_check
    _
  $region7: #{block_forward.13} parent=0 // pred_check_branch
    %11 = sbr.rel (0) target = $region9
  $region8: #{block_forward.13} parent=0 // pred_region
    _
  $region9: #{block_forward.13} parent=0 // pred_fallthru
    _
  // Predicated region
  $region10: #{block_forward.13} parent=0 // pred_check
    _
  $region11: #{block_forward.13} parent=0 // pred_check_branch
    %13 = sbr.rel (0) target = $region13
  $region12: #{block_forward.13} parent=0 // pred_region
    _
  $region13: #{block_forward.13} parent=0 // pred_fallthru
    _
  %v15 = vld [vmem:[%s0] sm:$0xff]
  %v16 = vld [vmem:[%s0 + $0x8] sm:$0xff]
  %v17 = vld [vmem:[%s0 + $0x10] sm:$0xff]
  %v18 = vld [vmem:[%s0 + $0x18] sm:$0xff]
  %v19 = vpack.c.bf16 %v16, %v15
  %v20 = vpack.c.bf16 %v18, %v17
  %v21 = vld [vmem:[%s1] sm:$0xf]
  %v22 = vld [vmem:[%s1 + $0x4] sm:$0xf]
  %v23 = vld [vmem:[%s1 + $0x8] sm:$0xf]
  %v24 = vld [vmem:[%s1 + $0xc] sm:$0xf]
  %v25 = vld [vmem:[%s1 + $0x10] sm:$0xf]
  %v26 = vld [vmem:[%s1 + $0x14] sm:$0xf]
  %v27 = vld [vmem:[%s1 + $0x18] sm:$0xf]
  %v28 = vld [vmem:[%s1 + $0x1c] sm:$0xf]
  %v29 = vld [vmem:[%s1 + $0x20] sm:$0xf]
  %v30 = vld [vmem:[%s1 + $0x24] sm:$0xf]
  %v31 = vld [vmem:[%s1 + $0x28] sm:$0xf]
  %v32 = vld [vmem:[%s1 + $0x2c] sm:$0xf]
  %v33 = vld [vmem:[%s1 + $0x30] sm:$0xf]
  %v34 = vld [vmem:[%s1 + $0x34] sm:$0xf]
  %v35 = vld [vmem:[%s1 + $0x38] sm:$0xf]
  %v36 = vld [vmem:[%s1 + $0x3c] sm:$0xf]
  %v37 = vld [vmem:[%s2] sm:$0x1]
  %v39 = vlaneseq
  %v40 = vshrl.u32 %v39, 7
  %v41 = vsub.s32 0, %v40
  %v42 = vrot.slane %v37, %v41
  %v60 = vunpack.c.l.b16 %v21
  %v61 = vunpack.c.l.b16 %v22
  %v62 = vunpack.c.l.b16 %v23
  %v63 = vunpack.c.l.b16 %v24
  %v64 = vunpack.c.l.b16 %v25
  %v65 = vunpack.c.l.b16 %v26
  %v66 = vunpack.c.l.b16 %v27
  %v67 = vunpack.c.l.b16 %v28
  %v68 = vunpack.c.l.b16 %v29
  %v69 = vunpack.c.l.b16 %v30
  %v70 = vunpack.c.l.b16 %v31
  %v71 = vunpack.c.l.b16 %v32
  %v72 = vunpack.c.l.b16 %v33
  %v73 = vunpack.c.l.b16 %v34
  %v74 = vunpack.c.l.b16 %v35
  %v75 = vunpack.c.l.b16 %v36
  %v76 = vpack.c.b16 %v61, %v60
  %v77 = vpack.c.b16 %v63, %v62
  %v78 = vpack.c.b16 %v65, %v64
  %v79 = vpack.c.b16 %v67, %v66
  %v80 = vpack.c.b16 %v69, %v68
  %v81 = vpack.c.b16 %v71, %v70
  %v82 = vpack.c.b16 %v73, %v72
  %v83 = vpack.c.b16 %v75, %v74
  %92 = vmatprep.subr.bf16.mxu0 0
  %93 = vmatpush1.bf16.msra.mxu0 %v76
  %94 = vmatprep.subr.bf16.mxu0 0
  %95 = vmatpush1.bf16.msra.mxu0 %v77
  %96 = vmatprep.subr.bf16.mxu0 0
  %97 = vmatpush1.bf16.msra.mxu0 %v78
  %98 = vmatprep.subr.bf16.mxu0 0
  %99 = vmatpush1.bf16.msra.mxu0 %v79
  %100 = vmatprep.subr.bf16.mxu0 0
  %101 = vmatpush1.bf16.msra.mxu0 %v80
  %102 = vmatprep.subr.bf16.mxu0 0
  %103 = vmatpush1.bf16.msra.mxu0 %v81
  %104 = vmatprep.subr.bf16.mxu0 0
  %105 = vmatpush1.bf16.msra.mxu0 %v82
  %106 = vmatprep.subr.bf16.mxu0 0
  %107 = vmatpush1.bf16.msra.mxu0 %v83
  %108 = vmatprep.subr.bf16.mxu0 0
  %109 = vmatpush1.bf16.msra.mxu0 0
  %110 = vmatprep.subr.bf16.mxu0 0
  %111 = vmatpush1.bf16.msra.mxu0 0
  %112 = vmatprep.subr.bf16.mxu0 0
  %113 = vmatpush1.bf16.msra.mxu0 0
  %114 = vmatprep.subr.bf16.mxu0 0
  %115 = vmatpush1.bf16.msra.mxu0 0
  %116 = vmatprep.subr.bf16.mxu0 0
  %117 = vmatpush1.bf16.msra.mxu0 0
  %118 = vmatprep.subr.bf16.mxu0 0
  %119 = vmatpush1.bf16.msra.mxu0 0
  %120 = vmatprep.subr.bf16.mxu0 0
  %121 = vmatpush1.bf16.msra.mxu0 0
  %122 = vmatprep.subr.bf16.mxu0 0
  %123 = vmatpush1.bf16.msra.mxu0 0
  %124 = vmatprep.mubr.bf16.mxu0 0
  %125 = vmatmul.mubr.bf16.gmra.mrb[0].mxu0 %v19
  %v126 = vpop.f32.mrb[0].mxu0
  %v127 = vadd.f32 %v42, %v126
  %v128 = vpop.f32.mrb[0].mxu0
  %v129 = vpop.f32.mrb[0].mxu0
  %v130 = vadd.f32 %v42, %v129
  %v131 = vpop.f32.mrb[0].mxu0
  %132 = vmatprep.mubr.bf16.mxu0 0
  %133 = vmatmul.mubr.bf16.gmra.mrb[0].mxu0 %v20
  %v134 = vpop.f32.mrb[0].mxu0
  %v135 = vadd.f32 %v42, %v134
  %v136 = vpop.f32.mrb[0].mxu0
  %v137 = vpop.f32.mrb[0].mxu0
  %v138 = vadd.f32 %v42, %v137
  %v139 = vpop.f32.mrb[0].mxu0
  %140 = vdwg.mxu0
  %vm141 = vcmask 261120
  %142 = vst.msk [vmem:[%s3] sm:$0xff] %vm141, %v127
  %143 = vst.msk [vmem:[%s3 + $0x8] sm:$0xff] %vm141, %v130
  %144 = vst.msk [vmem:[%s3 + $0x10] sm:$0xff] %vm141, %v135
  %145 = vst.msk [vmem:[%s3 + $0x18] sm:$0xff] %vm141, %v138
  // Predicated region
  $region14: #{block_forward.13} parent=0 // pred_check
    _
  $region15: #{block_forward.13} parent=0 // pred_check_branch
    %147 = sbr.rel (0) target = $region17
  $region16: #{block_forward.13} parent=0 // pred_region
    _
  $region17: #{block_forward.13} parent=0 // pred_fallthru
    _
  // Predicated region
  $region18: #{block_forward.13} parent=0 // pred_check
    _
  $region19: #{block_forward.13} parent=0 // pred_check_branch
    %149 = sbr.rel (0) target = $region21
  $region20: #{block_forward.13} parent=0 // pred_region
    _
  $region21: #{block_forward.13} parent=0 // pred_fallthru
    _

// kernel: block_forward.11
$region0: #{block_forward.11}
  #allocation0 [shape = 'u32[]', space=smem, size = 0x4, offset = 0x4, fixed_abs, tag = 'smem constant byte address 0x4 - core index']
  #allocation1 [shape = 'u32[144,128]{1,0:T(1,128)}', space=vmem, size = 0x12000, scoped, tag = 'internal scratch']
  %s0 = inlined_call_operand.vmem [shape: f32[8,12,8], index: 0, kind: input, shape index: {}]
  %s1 = inlined_call_operand.vmem [shape: f32[8,4,8], index: 1, kind: input, shape index: {}]
  %s2 = inlined_call_operand.vmem [shape: f32[8,12,32], index: 2, kind: input, shape index: {}]
  %s3 = inlined_call_operand.vmem [shape: f32[8,4,32], index: 3, kind: input, shape index: {}]
  %s4 = inlined_call_operand.vmem [shape: f32[8,4,32], index: 4, kind: output, shape index: {}]
  %s5 = sld [smem:[#allocation0]]
  $region26: #{block_forward.11} parent=0
    _
  %s7 = ssub.s32 1, %s5
  %s8 = scalar_select 0, %s7, %s5
  // Predicated region
  $region2: #{block_forward.11} parent=0 // pred_check
    _
  $region3: #{block_forward.11} parent=0 // pred_check_branch
    %10 = sbr.rel (0) target = $region5
  $region4: #{block_forward.11} parent=0 // pred_region
    _
  $region5: #{block_forward.11} parent=0 // pred_fallthru
    _
  // Predicated region
  $region6: #{block_forward.11} parent=0 // pred_check
    _
  $region7: #{block_forward.11} parent=0 // pred_check_branch
    %12 = sbr.rel (0) target = $region9
  $region8: #{block_forward.11} parent=0 // pred_region
    _
  $region9: #{block_forward.11} parent=0 // pred_fallthru
    _
  // Predicated region
  $region10: #{block_forward.11} parent=0 // pred_check
    _
  $region11: #{block_forward.11} parent=0 // pred_check_branch
    %14 = sbr.rel (0) target = $region13
  $region12: #{block_forward.11} parent=0 // pred_region
    _
  $region13: #{block_forward.11} parent=0 // pred_fallthru
    _
  // Predicated region
  $region14: #{block_forward.11} parent=0 // pred_check
    _
  $region15: #{block_forward.11} parent=0 // pred_check_branch
    %16 = sbr.rel (0) target = $region17
  $region16: #{block_forward.11} parent=0 // pred_region
    _
  $region17: #{block_forward.11} parent=0 // pred_fallthru
    _
  %v18 = vld [vmem:[%s0] sm:$0xff]
  %v19 = vld [vmem:[%s0 + $0x8] sm:$0xf]
  %v20 = vld [vmem:[%s0 + $0x10] sm:$0xff]
  %v21 = vld [vmem:[%s0 + $0x18] sm:$0xf]
  %v22 = vld [vmem:[%s0 + $0x20] sm:$0xff]
  %v23 = vld [vmem:[%s0 + $0x28] sm:$0xf]
  %v24 = vld [vmem:[%s0 + $0x30] sm:$0xff]
  %v25 = vld [vmem:[%s0 + $0x38] sm:$0xf]
  %v26 = vld [vmem:[%s0 + $0x40] sm:$0xff]
  %v27 = vld [vmem:[%s0 + $0x48] sm:$0xf]
  %v28 = vld [vmem:[%s0 + $0x50] sm:$0xff]
  %v29 = vld [vmem:[%s0 + $0x58] sm:$0xf]
  %v30 = vld [vmem:[%s0 + $0x60] sm:$0xff]
  %v31 = vld [vmem:[%s0 + $0x68] sm:$0xf]
  %v32 = vld [vmem:[%s0 + $0x70] sm:$0xff]
  %v33 = vld [vmem:[%s0 + $0x78] sm:$0xf]
  %v34 = vld [vmem:[%s1] sm:$0xf]
  %v35 = vld [vmem:[%s1 + $0x4] sm:$0xf]
  %v36 = vld [vmem:[%s1 + $0x8] sm:$0xf]
  %v37 = vld [vmem:[%s1 + $0xc] sm:$0xf]
  %v38 = vld [vmem:[%s1 + $0x10] sm:$0xf]
  %v39 = vld [vmem:[%s1 + $0x14] sm:$0xf]
  %v40 = vld [vmem:[%s1 + $0x18] sm:$0xf]
  %v41 = vld [vmem:[%s1 + $0x1c] sm:$0xf]
  %v42 = vmul.f32 %v18, %v18
  %v43 = vmul.f32 %v19, %v19
  %v44 = vmul.f32 %v20, %v20
  %v45 = vmul.f32 %v21, %v21
  %v46 = vmul.f32 %v22, %v22
  %v47 = vmul.f32 %v23, %v23
  %v48 = vmul.f32 %v24, %v24
  %v49 = vmul.f32 %v25, %v25
  %v50 = vmul.f32 %v26, %v26
  %v51 = vmul.f32 %v27, %v27
  %v52 = vmul.f32 %v28, %v28
  %v53 = vmul.f32 %v29, %v29
  %v54 = vmul.f32 %v30, %v30
  %v55 = vmul.f32 %v31, %v31
  %v56 = vmul.f32 %v32, %v32
  %v57 = vmul.f32 %v33, %v33
  %vm58 = vcmask 64512
  %v59 = vsel %vm58, %v42, 0.0
  %60 = vadd.xlane.f32.xlu0 %v59
  %v61 = vpop.xlane.xlu0 %60
  %vm62 = vcmask 60416
  %v63 = vsel %vm62, %v43, 0.0
  %64 = vadd.xlane.f32.xlu0 %v63
  %v65 = vpop.xlane.xlu0 %64
  %v66 = vsel %vm58, %v44, 0.0
  %67 = vadd.xlane.f32.xlu0 %v66
  %v68 = vpop.xlane.xlu0 %67
  %v69 = vsel %vm62, %v45, 0.0
  %70 = vadd.xlane.f32.xlu0 %v69
  %v71 = vpop.xlane.xlu0 %70
  %v72 = vsel %vm58, %v46, 0.0
  %73 = vadd.xlane.f32.xlu0 %v72
  %v74 = vpop.xlane.xlu0 %73
  %v75 = vsel %vm62, %v47, 0.0
  %76 = vadd.xlane.f32.xlu0 %v75
  %v77 = vpop.xlane.xlu0 %76
  %v78 = vsel %vm58, %v48, 0.0
  %79 = vadd.xlane.f32.xlu0 %v78
  %v80 = vpop.xlane.xlu0 %79
  %v81 = vsel %vm62, %v49, 0.0
  %82 = vadd.xlane.f32.xlu0 %v81
  %v83 = vpop.xlane.xlu0 %82
  %v84 = vsel %vm58, %v50, 0.0
  %85 = vadd.xlane.f32.xlu0 %v84
  %v86 = vpop.xlane.xlu0 %85
  %v87 = vsel %vm62, %v51, 0.0
  %88 = vadd.xlane.f32.xlu0 %v87
  %v89 = vpop.xlane.xlu0 %88
  %v90 = vsel %vm58, %v52, 0.0
  %91 = vadd.xlane.f32.xlu0 %v90
  %v92 = vpop.xlane.xlu0 %91
  %v93 = vsel %vm62, %v53, 0.0
  %94 = vadd.xlane.f32.xlu0 %v93
  %v95 = vpop.xlane.xlu0 %94
  %v96 = vsel %vm58, %v54, 0.0
  %97 = vadd.xlane.f32.xlu0 %v96
  %v98 = vpop.xlane.xlu0 %97
  %v99 = vsel %vm62, %v55, 0.0
  %100 = vadd.xlane.f32.xlu0 %v99
  %v101 = vpop.xlane.xlu0 %100
  %v102 = vsel %vm58, %v56, 0.0
  %103 = vadd.xlane.f32.xlu0 %v102
  %v104 = vpop.xlane.xlu0 %103
  %v105 = vsel %vm62, %v57, 0.0
  %106 = vadd.xlane.f32.xlu0 %v105
  %v107 = vpop.xlane.xlu0 %106
  %v108 = vadd.f32 %v61, 1e-12
  %v109 = vadd.f32 %v65, 1e-12
  %v110 = vadd.f32 %v68, 1e-12
  %v111 = vadd.f32 %v71, 1e-12
  %v112 = vadd.f32 %v74, 1e-12
  %v113 = vadd.f32 %v77, 1e-12
  %v114 = vadd.f32 %v80, 1e-12
  %v115 = vadd.f32 %v83, 1e-12
  %v116 = vadd.f32 %v86, 1e-12
  %v117 = vadd.f32 %v89, 1e-12
  %v118 = vadd.f32 %v92, 1e-12
  %v119 = vadd.f32 %v95, 1e-12
  %v120 = vadd.f32 %v98, 1e-12
  %v121 = vadd.f32 %v101, 1e-12
  %v122 = vadd.f32 %v104, 1e-12
  %v123 = vadd.f32 %v107, 1e-12
  %v124 = vrsqrt.pop %v108
  %v125 = vrsqrt.pop %v109
  %v126 = vrsqrt.pop %v110
  %v127 = vrsqrt.pop %v111
  %v128 = vrsqrt.pop %v112
  %v129 = vrsqrt.pop %v113
  %v130 = vrsqrt.pop %v114
  %v131 = vrsqrt.pop %v115
  %v132 = vrsqrt.pop %v116
  %v133 = vrsqrt.pop %v117
  %v134 = vrsqrt.pop %v118
  %v135 = vrsqrt.pop %v119
  %v136 = vrsqrt.pop %v120
  %v137 = vrsqrt.pop %v121
  %v138 = vrsqrt.pop %v122
  %v139 = vrsqrt.pop %v123
  %v140 = vmul.f32 %v18, %v124
  %v141 = vmul.f32 %v19, %v125
  %v142 = vmul.f32 %v20, %v126
  %v143 = vmul.f32 %v21, %v127
  %v144 = vmul.f32 %v22, %v128
  %v145 = vmul.f32 %v23, %v129
  %v146 = vmul.f32 %v24, %v130
  %v147 = vmul.f32 %v25, %v131
  %v148 = vmul.f32 %v26, %v132
  %v149 = vmul.f32 %v27, %v133
  %v150 = vmul.f32 %v28, %v134
  %v151 = vmul.f32 %v29, %v135
  %v152 = vmul.f32 %v30, %v136
  %v153 = vmul.f32 %v31, %v137
  %v154 = vmul.f32 %v32, %v138
  %v155 = vmul.f32 %v33, %v139
  %v156 = vmul.f32 %v34, %v34
  %v157 = vmul.f32 %v35, %v35
  %v158 = vmul.f32 %v36, %v36
  %v159 = vmul.f32 %v37, %v37
  %v160 = vmul.f32 %v38, %v38
  %v161 = vmul.f32 %v39, %v39
  %v162 = vmul.f32 %v40, %v40
  %v163 = vmul.f32 %v41, %v41
  %v164 = vsel %vm62, %v156, 0.0
  %165 = vadd.xlane.f32.xlu0 %v164
  %v166 = vpop.xlane.xlu0 %165
  %v167 = vsel %vm62, %v157, 0.0
  %168 = vadd.xlane.f32.xlu0 %v167
  %v169 = vpop.xlane.xlu0 %168
  %v170 = vsel %vm62, %v158, 0.0
  %171 = vadd.xlane.f32.xlu0 %v170
  %v172 = vpop.xlane.xlu0 %171
  %v173 = vsel %vm62, %v159, 0.0
  %174 = vadd.xlane.f32.xlu0 %v173
  %v175 = vpop.xlane.xlu0 %174
  %v176 = vsel %vm62, %v160, 0.0
  %177 = vadd.xlane.f32.xlu0 %v176
  %v178 = vpop.xlane.xlu0 %177
  %v179 = vsel %vm62, %v161, 0.0
  %180 = vadd.xlane.f32.xlu0 %v179
  %v181 = vpop.xlane.xlu0 %180
  %v182 = vsel %vm62, %v162, 0.0
  %183 = vadd.xlane.f32.xlu0 %v182
  %v184 = vpop.xlane.xlu0 %183
  %v185 = vsel %vm62, %v163, 0.0
  %186 = vadd.xlane.f32.xlu0 %v185
  %v187 = vpop.xlane.xlu0 %186
  %v188 = vadd.f32 %v166, 1e-12
  %v189 = vadd.f32 %v169, 1e-12
  %v190 = vadd.f32 %v172, 1e-12
  %v191 = vadd.f32 %v175, 1e-12
  %v192 = vadd.f32 %v178, 1e-12
  %v193 = vadd.f32 %v181, 1e-12
  %v194 = vadd.f32 %v184, 1e-12
  %v195 = vadd.f32 %v187, 1e-12
  %v196 = vrsqrt.pop %v188
  %v197 = vrsqrt.pop %v189
  %v198 = vrsqrt.pop %v190
  %v199 = vrsqrt.pop %v191
  %v200 = vrsqrt.pop %v192
  %v201 = vrsqrt.pop %v193
  %v202 = vrsqrt.pop %v194
  %v203 = vrsqrt.pop %v195
  %v204 = vmul.f32 %v34, %v196
  %v205 = vmul.f32 %v35, %v197
  %v206 = vmul.f32 %v36, %v198
  %v207 = vmul.f32 %v37, %v199
  %v208 = vmul.f32 %v38, %v200
  %v209 = vmul.f32 %v39, %v201
  %v210 = vmul.f32 %v40, %v202
  %v211 = vmul.f32 %v41, %v203
  %v212 = vpack.c.bf16 %v141, %v140
  %v213 = vpack.c.bf16 %v143, %v142
  %v214 = vpack.c.bf16 %v145, %v144
  %v215 = vpack.c.bf16 %v147, %v146
  %v216 = vpack.c.bf16 %v149, %v148
  %v217 = vpack.c.bf16 %v151, %v150
  %v218 = vpack.c.bf16 %v153, %v152
  %v219 = vpack.c.bf16 %v155, %v154
  %v220 = vpack.c.bf16 %v204, %v204
  %v221 = vpack.c.bf16 %v205, %v205
  %v222 = vpack.c.bf16 %v206, %v206
  %v223 = vpack.c.bf16 %v207, %v207
  %v224 = vpack.c.bf16 %v208, %v208
  %v225 = vpack.c.bf16 %v209, %v209
  %v226 = vpack.c.bf16 %v210, %v210
  %v227 = vpack.c.bf16 %v211, %v211
  %v229 = vsel %vm58, %v212, 0
  %v232 = vsel %vm58, %v220, 0
  %234 = vmatprep.subr.bf16.mxu0 0
  %235 = vmatpush1.bf16.xpose.msra.mxu0 %v232
  %236 = vmatprep.subr.bf16.mxu0 0
  %237 = vmatpush1.bf16.xpose.msra.mxu0 0
  %238 = vmatprep.subr.bf16.mxu0 0
  %239 = vmatpush1.bf16.xpose.msra.mxu0 0
  %240 = vmatprep.subr.bf16.mxu0 0
  %241 = vmatpush1.bf16.xpose.msra.mxu0 0
  %242 = vmatprep.subr.bf16.mxu0 0
  %243 = vmatpush1.bf16.xpose.msra.mxu0 0
  %244 = vmatprep.subr.bf16.mxu0 0
  %245 = vmatpush1.bf16.xpose.msra.mxu0 0
  %246 = vmatprep.subr.bf16.mxu0 0
  %247 = vmatpush1.bf16.xpose.msra.mxu0 0
  %248 = vmatprep.subr.bf16.mxu0 0
  %249 = vmatpush1.bf16.xpose.msra.mxu0 0
  %250 = vmatprep.subr.bf16.mxu0 0
  %251 = vmatpush1.bf16.xpose.msra.mxu0 0
  %252 = vmatprep.subr.bf16.mxu0 0
  %253 = vmatpush1.bf16.xpose.msra.mxu0 0
  %254 = vmatprep.subr.bf16.mxu0 0
  %255 = vmatpush1.bf16.xpose.msra.mxu0 0
  %256 = vmatprep.subr.bf16.mxu0 0
  %257 = vmatpush1.bf16.xpose.msra.mxu0 0
  %258 = vmatprep.subr.bf16.mxu0 0
  %259 = vmatpush1.bf16.xpose.msra.mxu0 0
  %260 = vmatprep.subr.bf16.mxu0 0
  %261 = vmatpush1.bf16.xpose.msra.mxu0 0
  %262 = vmatprep.subr.bf16.mxu0 0
  %263 = vmatpush1.bf16.xpose.msra.mxu0 0
  %264 = vmatprep.subr.bf16.mxu0 0
  %265 = vmatpush1.bf16.xpose.msra.mxu0 0
  %266 = vmatprep.mubr.bf16.mxu0 0
  %267 = vmatmul.mubr.bf16.gmra.mrb[0].mxu0 %v229
  %v268 = vpop.f32.mrb[0].mxu0
  %v269 = vadd.f32 0.0, %v268
  %v270 = vpop.f32.mrb[0].mxu0
  %v271 = vpop.f32.mrb[0].mxu0
  %v272 = vadd.f32 0.0, %v271
  %v273 = vpop.f32.mrb[0].mxu0
  %274 = vdwg.mxu0
  %v276 = vsel %vm58, %v213, 0
  %v279 = vsel %vm58, %v221, 0
  %281 = vmatprep.subr.bf16.mxu0 0
  %282 = vmatpush1.bf16.xpose.msra.mxu0 %v279
  %283 = vmatprep.subr.bf16.mxu0 0
  %284 = vmatpush1.bf16.xpose.msra.mxu0 0
  %285 = vmatprep.subr.bf16.mxu0 0
  %286 = vmatpush1.bf16.xpose.msra.mxu0 0
  %287 = vmatprep.subr.bf16.mxu0 0
  %288 = vmatpush1.bf16.xpose.msra.mxu0 0
  %289 = vmatprep.subr.bf16.mxu0 0
  %290 = vmatpush1.bf16.xpose.msra.mxu0 0
  %291 = vmatprep.subr.bf16.mxu0 0
  %292 = vmatpush1.bf16.xpose.msra.mxu0 0
  %293 = vmatprep.subr.bf16.mxu0 0
  %294 = vmatpush1.bf16.xpose.msra.mxu0 0
  %295 = vmatprep.subr.bf16.mxu0 0
  %296 = vmatpush1.bf16.xpose.msra.mxu0 0
  %297 = vmatprep.subr.bf16.mxu0 0
  %298 = vmatpush1.bf16.xpose.msra.mxu0 0
  %299 = vmatprep.subr.bf16.mxu0 0
  %300 = vmatpush1.bf16.xpose.msra.mxu0 0
  %301 = vmatprep.subr.bf16.mxu0 0
  %302 = vmatpush1.bf16.xpose.msra.mxu0 0
  %303 = vmatprep.subr.bf16.mxu0 0
  %304 = vmatpush1.bf16.xpose.msra.mxu0 0
  %305 = vmatprep.subr.bf16.mxu0 0
  %306 = vmatpush1.bf16.xpose.msra.mxu0 0
  %307 = vmatprep.subr.bf16.mxu0 0
  %308 = vmatpush1.bf16.xpose.msra.mxu0 0
  %309 = vmatprep.subr.bf16.mxu0 0
  %310 = vmatpush1.bf16.xpose.msra.mxu0 0
  %311 = vmatprep.subr.bf16.mxu0 0
  %312 = vmatpush1.bf16.xpose.msra.mxu0 0
  %313 = vmatprep.mubr.bf16.mxu0 0
  %314 = vmatmul.mubr.bf16.gmra.mrb[0].mxu0 %v276
  %v315 = vpop.f32.mrb[0].mxu0
  %v316 = vadd.f32 0.0, %v315
  %v317 = vpop.f32.mrb[0].mxu0
  %v318 = vpop.f32.mrb[0].mxu0
  %v319 = vadd.f32 0.0, %v318
  %v320 = vpop.f32.mrb[0].mxu0
  %321 = vdwg.mxu0
  %v323 = vsel %vm58, %v214, 0
  %v326 = vsel %vm58, %v222, 0
  %328 = vmatprep.subr.bf16.mxu0 0
  %329 = vmatpush1.bf16.xpose.msra.mxu0 %v326
  %330 = vmatprep.subr.bf16.mxu0 0
  %331 = vmatpush1.bf16.xpose.msra.mxu0 0
  %332 = vmatprep.subr.bf16.mxu0 0
  %333 = vmatpush1.bf16.xpose.msra.mxu0 0
  %334 = vmatprep.subr.bf16.mxu0 0
  %335 = vmatpush1.bf16.xpose.msra.mxu0 0
  %336 = vmatprep.subr.bf16.mxu0 0
  %337 = vmatpush1.bf16.xpose.msra.mxu0 0
  %338 = vmatprep.subr.bf16.mxu0 0
  %339 = vmatpush1.bf16.xpose.msra.mxu0 0
  %340 = vmatprep.subr.bf16.mxu0 0
  %341 = vmatpush1.bf16.xpose.msra.mxu0 0
  %342 = vmatprep.subr.bf16.mxu0 0
  %343 = vmatpush1.bf16.xpose.msra.mxu0 0
  %344 = vmatprep.subr.bf16.mxu0 0
  %345 = vmatpush1.bf16.xpose.msra.mxu0 0
  %346 = vmatprep.subr.bf16.mxu0 0
  %347 = vmatpush1.bf16.xpose.msra.mxu0 0
  %348 = vmatprep.subr.bf16.mxu0 0
  %349 = vmatpush1.bf16.xpose.msra.mxu0 0
  %350 = vmatprep.subr.bf16.mxu0 0
  %351 = vmatpush1.bf16.xpose.msra.mxu0 0
  %352 = vmatprep.subr.bf16.mxu0 0
  %353 = vmatpush1.bf16.xpose.msra.mxu0 0
  %354 = vmatprep.subr.bf16.mxu0 0
  %355 = vmatpush1.bf16.xpose.msra.mxu0 0
  %356 = vmatprep.subr.bf16.mxu0 0
  %357 = vmatpush1.bf16.xpose.msra.mxu0 0
  %358 = vmatprep.subr.bf16.mxu0 0
  %359 = vmatpush1.bf16.xpose.msra.mxu0 0
  %360 = vmatprep.mubr.bf16.mxu0 0
  %361 = vmatmul.mubr.bf16.gmra.mrb[0].mxu0 %v323
  %v362 = vpop.f32.mrb[0].mxu0
  %v363 = vadd.f32 0.0, %v362
  %v364 = vpop.f32.mrb[0].mxu0
  %v365 = vpop.f32.mrb[0].mxu0
  %v366 = vadd.f32 0.0, %v365
  %v367 = vpop.f32.mrb[0].mxu0
  %368 = vdwg.mxu0
  %v370 = vsel %vm58, %v215, 0
  %v373 = vsel %vm58, %v223, 0
  %375 = vmatprep.subr.bf16.mxu0 0
  %376 = vmatpush1.bf16.xpose.msra.mxu0 %v373
  %377 = vmatprep.subr.bf16.mxu0 0
  %378 = vmatpush1.bf16.xpose.msra.mxu0 0
  %379 = vmatprep.subr.bf16.mxu0 0
  %380 = vmatpush1.bf16.xpose.msra.mxu0 0
  %381 = vmatprep.subr.bf16.mxu0 0
  %382 = vmatpush1.bf16.xpose.msra.mxu0 0
  %383 = vmatprep.subr.bf16.mxu0 0
  %384 = vmatpush1.bf16.xpose.msra.mxu0 0
  %385 = vmatprep.subr.bf16.mxu0 0
  %386 = vmatpush1.bf16.xpose.msra.mxu0 0
  %387 = vmatprep.subr.bf16.mxu0 0
  %388 = vmatpush1.bf16.xpose.msra.mxu0 0
  %389 = vmatprep.subr.bf16.mxu0 0
  %390 = vmatpush1.bf16.xpose.msra.mxu0 0
  %391 = vmatprep.subr.bf16.mxu0 0
  %392 = vmatpush1.bf16.xpose.msra.mxu0 0
  %393 = vmatprep.subr.bf16.mxu0 0
  %394 = vmatpush1.bf16.xpose.msra.mxu0 0
  %395 = vmatprep.subr.bf16.mxu0 0
  %396 = vmatpush1.bf16.xpose.msra.mxu0 0
  %397 = vmatprep.subr.bf16.mxu0 0
  %398 = vmatpush1.bf16.xpose.msra.mxu0 0
  %399 = vmatprep.subr.bf16.mxu0 0
  %400 = vmatpush1.bf16.xpose.msra.mxu0 0
  %401 = vmatprep.subr.bf16.mxu0 0
  %402 = vmatpush1.bf16.xpose.msra.mxu0 0
  %403 = vmatprep.subr.bf16.mxu0 0
  %404 = vmatpush1.bf16.xpose.msra.mxu0 0
  %405 = vmatprep.subr.bf16.mxu0 0
  %406 = vmatpush1.bf16.xpose.msra.mxu0 0
  %407 = vmatprep.mubr.bf16.mxu0 0
  %408 = vmatmul.mubr.bf16.gmra.mrb[0].mxu0 %v370
  %v409 = vpop.f32.mrb[0].mxu0
  %v410 = vadd.f32 0.0, %v409
  %v411 = vpop.f32.mrb[0].mxu0
  %v412 = vpop.f32.mrb[0].mxu0
  %v413 = vadd.f32 0.0, %v412
  %v414 = vpop.f32.mrb[0].mxu0
  %415 = vdwg.mxu0
  %v417 = vsel %vm58, %v216, 0
  %v420 = vsel %vm58, %v224, 0
  %422 = vmatprep.subr.bf16.mxu0 0
  %423 = vmatpush1.bf16.xpose.msra.mxu0 %v420
  %424 = vmatprep.subr.bf16.mxu0 0
  %425 = vmatpush1.bf16.xpose.msra.mxu0 0
  %426 = vmatprep.subr.bf16.mxu0 0
  %427 = vmatpush1.bf16.xpose.msra.mxu0 0
  %428 = vmatprep.subr.bf16.mxu0 0
  %429 = vmatpush1.bf16.xpose.msra.mxu0 0
  %430 = vmatprep.subr.bf16.mxu0 0
  %431 = vmatpush1.bf16.xpose.msra.mxu0 0
  %432 = vmatprep.subr.bf16.mxu0 0
  %433 = vmatpush1.bf16.xpose.msra.mxu0 0
  %434 = vmatprep.subr.bf16.mxu0 0
  %435 = vmatpush1.bf16.xpose.msra.mxu0 0
  %436 = vmatprep.subr.bf16.mxu0 0
  %437 = vmatpush1.bf16.xpose.msra.mxu0 0
  %438 = vmatprep.subr.bf16.mxu0 0
  %439 = vmatpush1.bf16.xpose.msra.mxu0 0
  %440 = vmatprep.subr.bf16.mxu0 0
  %441 = vmatpush1.bf16.xpose.msra.mxu0 0
  %442 = vmatprep.subr.bf16.mxu0 0
  %443 = vmatpush1.bf16.xpose.msra.mxu0 0
  %444 = vmatprep.subr.bf16.mxu0 0
  %445 = vmatpush1.bf16.xpose.msra.mxu0 0
  %446 = vmatprep.subr.bf16.mxu0 0
  %447 = vmatpush1.bf16.xpose.msra.mxu0 0
  %448 = vmatprep.subr.bf16.mxu0 0
  %449 = vmatpush1.bf16.xpose.msra.mxu0 0
  %450 = vmatprep.subr.bf16.mxu0 0
  %451 = vmatpush1.bf16.xpose.msra.mxu0 0
  %452 = vmatprep.subr.bf16.mxu0 0
  %453 = vmatpush1.bf16.xpose.msra.mxu0 0
  %454 = vmatprep.mubr.bf16.mxu0 0
  %455 = vmatmul.mubr.bf16.gmra.mrb[0].mxu0 %v417
  %v456 = vpop.f32.mrb[0].mxu0
  %v457 = vadd.f32 0.0, %v456
  %v458 = vpop.f32.mrb[0].mxu0
  %v459 = vpop.f32.mrb[0].mxu0
  %v460 = vadd.f32 0.0, %v459
  %v461 = vpop.f32.mrb[0].mxu0
  %462 = vdwg.mxu0
  %v464 = vsel %vm58, %v217, 0
  %v467 = vsel %vm58, %v225, 0
  %469 = vmatprep.subr.bf16.mxu0 0
  %470 = vmatpush1.bf16.xpose.msra.mxu0 %v467
  %471 = vmatprep.subr.bf16.mxu0 0
  %472 = vmatpush1.bf16.xpose.msra.mxu0 0
  %473 = vmatprep.subr.bf16.mxu0 0
  %474 = vmatpush1.bf16.xpose.msra.mxu0 0
  %475 = vmatprep.subr.bf16.mxu0 0
  %476 = vmatpush1.bf16.xpose.msra.mxu0 0
  %477 = vmatprep.subr.bf16.mxu0 0
  %478 = vmatpush1.bf16.xpose.msra.mxu0 0
  %479 = vmatprep.subr.bf16.mxu0 0
  %480 = vmatpush1.bf16.xpose.msra.mxu0 0
  %481 = vmatprep.subr.bf16.mxu0 0
  %482 = vmatpush1.bf16.xpose.msra.mxu0 0
  %483 = vmatprep.subr.bf16.mxu0 0
  %484 = vmatpush1.bf16.xpose.msra.mxu0 0
  %485 = vmatprep.subr.bf16.mxu0 0
  %486 = vmatpush1.bf16.xpose.msra.mxu0 0
  %487 = vmatprep.subr.bf16.mxu0 0
  %488 = vmatpush1.bf16.xpose.msra.mxu0 0
  %489 = vmatprep.subr.bf16.mxu0 0
  %490 = vmatpush1.bf16.xpose.msra.mxu0 0
  %491 = vmatprep.subr.bf16.mxu0 0
  %492 = vmatpush1.bf16.xpose.msra.mxu0 0
  %493 = vmatprep.subr.bf16.mxu0 0
  %494 = vmatpush1.bf16.xpose.msra.mxu0 0
  %495 = vmatprep.subr.bf16.mxu0 0
  %496 = vmatpush1.bf16.xpose.msra.mxu0 0
  %497 = vmatprep.subr.bf16.mxu0 0
  %498 = vmatpush1.bf16.xpose.msra.mxu0 0
  %499 = vmatprep.subr.bf16.mxu0 0
  %500 = vmatpush1.bf16.xpose.msra.mxu0 0
  %501 = vmatprep.mubr.bf16.mxu0 0
  %502 = vmatmul.mubr.bf16.gmra.mrb[0].mxu0 %v464
  %v503 = vpop.f32.mrb[0].mxu0
  %v504 = vadd.f32 0.0, %v503
  %v505 = vpop.f32.mrb[0].mxu0
  %v506 = vpop.f32.mrb[0].mxu0
  %v507 = vadd.f32 0.0, %v506
  %v508 = vpop.f32.mrb[0].mxu0
  %509 = vdwg.mxu0
  %v511 = vsel %vm58, %v218, 0
  %v514 = vsel %vm58, %v226, 0
  %516 = vmatprep.subr.bf16.mxu0 0
  %517 = vmatpush1.bf16.xpose.msra.mxu0 %v514
  %518 = vmatprep.subr.bf16.mxu0 0
  %519 = vmatpush1.bf16.xpose.msra.mxu0 0
  %520 = vmatprep.subr.bf16.mxu0 0
  %521 = vmatpush1.bf16.xpose.msra.mxu0 0
  %522 = vmatprep.subr.bf16.mxu0 0
  %523 = vmatpush1.bf16.xpose.msra.mxu0 0
  %524 = vmatprep.subr.bf16.mxu0 0
  %525 = vmatpush1.bf16.xpose.msra.mxu0 0
  %526 = vmatprep.subr.bf16.mxu0 0
  %527 = vmatpush1.bf16.xpose.msra.mxu0 0
  %528 = vmatprep.subr.bf16.mxu0 0
  %529 = vmatpush1.bf16.xpose.msra.mxu0 0
  %530 = vmatprep.subr.bf16.mxu0 0
  %531 = vmatpush1.bf16.xpose.msra.mxu0 0
  %532 = vmatprep.subr.bf16.mxu0 0
  %533 = vmatpush1.bf16.xpose.msra.mxu0 0
  %534 = vmatprep.subr.bf16.mxu0 0
  %535 = vmatpush1.bf16.xpose.msra.mxu0 0
  %536 = vmatprep.subr.bf16.mxu0 0
  %537 = vmatpush1.bf16.xpose.msra.mxu0 0
  %538 = vmatprep.subr.bf16.mxu0 0
  %539 = vmatpush1.bf16.xpose.msra.mxu0 0
  %540 = vmatprep.subr.bf16.mxu0 0
  %541 = vmatpush1.bf16.xpose.msra.mxu0 0
  %542 = vmatprep.subr.bf16.mxu0 0
  %543 = vmatpush1.bf16.xpose.msra.mxu0 0
  %544 = vmatprep.subr.bf16.mxu0 0
  %545 = vmatpush1.bf16.xpose.msra.mxu0 0
  %546 = vmatprep.subr.bf16.mxu0 0
  %547 = vmatpush1.bf16.xpose.msra.mxu0 0
  %548 = vmatprep.mubr.bf16.mxu0 0
  %549 = vmatmul.mubr.bf16.gmra.mrb[0].mxu0 %v511
  %v550 = vpop.f32.mrb[0].mxu0
  %v551 = vadd.f32 0.0, %v550
  %v552 = vpop.f32.mrb[0].mxu0
  %v553 = vpop.f32.mrb[0].mxu0
  %v554 = vadd.f32 0.0, %v553
  %v555 = vpop.f32.mrb[0].mxu0
  %556 = vdwg.mxu0
  %v558 = vsel %vm58, %v219, 0
  %v561 = vsel %vm58, %v227, 0
  %563 = vmatprep.subr.bf16.mxu0 0
  %564 = vmatpush1.bf16.xpose.msra.mxu0 %v561
  %565 = vmatprep.subr.bf16.mxu0 0
  %566 = vmatpush1.bf16.xpose.msra.mxu0 0
  %567 = vmatprep.subr.bf16.mxu0 0
  %568 = vmatpush1.bf16.xpose.msra.mxu0 0
  %569 = vmatprep.subr.bf16.mxu0 0
  %570 = vmatpush1.bf16.xpose.msra.mxu0 0
  %571 = vmatprep.subr.bf16.mxu0 0
  %572 = vmatpush1.bf16.xpose.msra.mxu0 0
  %573 = vmatprep.subr.bf16.mxu0 0
  %574 = vmatpush1.bf16.xpose.msra.mxu0 0
  %575 = vmatprep.subr.bf16.mxu0 0
  %576 = vmatpush1.bf16.xpose.msra.mxu0 0
  %577 = vmatprep.subr.bf16.mxu0 0
  %578 = vmatpush1.bf16.xpose.msra.mxu0 0
  %579 = vmatprep.subr.bf16.mxu0 0
  %580 = vmatpush1.bf16.xpose.msra.mxu0 0
  %581 = vmatprep.subr.bf16.mxu0 0
  %582 = vmatpush1.bf16.xpose.msra.mxu0 0
  %583 = vmatprep.subr.bf16.mxu0 0
  %584 = vmatpush1.bf16.xpose.msra.mxu0 0
  %585 = vmatprep.subr.bf16.mxu0 0
  %586 = vmatpush1.bf16.xpose.msra.mxu0 0
  %587 = vmatprep.subr.bf16.mxu0 0
  %588 = vmatpush1.bf16.xpose.msra.mxu0 0
  %589 = vmatprep.subr.bf16.mxu0 0
  %590 = vmatpush1.bf16.xpose.msra.mxu0 0
  %591 = vmatprep.subr.bf16.mxu0 0
  %592 = vmatpush1.bf16.xpose.msra.mxu0 0
  %593 = vmatprep.subr.bf16.mxu0 0
  %594 = vmatpush1.bf16.xpose.msra.mxu0 0
  %595 = vmatprep.mubr.bf16.mxu0 0
  %596 = vmatmul.mubr.bf16.gmra.mrb[0].mxu0 %v558
  %v597 = vpop.f32.mrb[0].mxu0
  %v598 = vadd.f32 0.0, %v597
  %v599 = vpop.f32.mrb[0].mxu0
  %v600 = vpop.f32.mrb[0].mxu0
  %v601 = vadd.f32 0.0, %v600
  %v602 = vpop.f32.mrb[0].mxu0
  %603 = vdwg.mxu0
  %v604 = vlaneseq
  %v605 = vand.u32 %v604, 127
  %vm606 = vcmask 31744
  %v607 = vsel %vm606, %v269, -inf
  %608 = vmax.xlane.f32.xlu0 %v607
  %v609 = vpop.xlane.xlu0 %608
  %vm610 = vcmask 27648
  %v611 = vsel %vm610, %v272, -inf
  %612 = vmax.xlane.f32.xlu0 %v611
  %v613 = vpop.xlane.xlu0 %612
  %v614 = vsel %vm606, %v316, -inf
  %615 = vmax.xlane.f32.xlu0 %v614
  %v616 = vpop.xlane.xlu0 %615
  %v617 = vsel %vm610, %v319, -inf
  %618 = vmax.xlane.f32.xlu0 %v617
  %v619 = vpop.xlane.xlu0 %618
  %v620 = vsel %vm606, %v363, -inf
  %621 = vmax.xlane.f32.xlu0 %v620
  %v622 = vpop.xlane.xlu0 %621
  %v623 = vsel %vm610, %v366, -inf
  %624 = vmax.xlane.f32.xlu0 %v623
  %v625 = vpop.xlane.xlu0 %624
  %v626 = vsel %vm606, %v410, -inf
  %627 = vmax.xlane.f32.xlu0 %v626
  %v628 = vpop.xlane.xlu0 %627
  %v629 = vsel %vm610, %v413, -inf
  %630 = vmax.xlane.f32.xlu0 %v629
  %v631 = vpop.xlane.xlu0 %630
  %v632 = vsel %vm606, %v457, -inf
  %633 = vmax.xlane.f32.xlu0 %v632
  %v634 = vpop.xlane.xlu0 %633
  %v635 = vsel %vm610, %v460, -inf
  %636 = vmax.xlane.f32.xlu0 %v635
  %v637 = vpop.xlane.xlu0 %636
  %v638 = vsel %vm606, %v504, -inf
  %639 = vmax.xlane.f32.xlu0 %v638
  %v640 = vpop.xlane.xlu0 %639
  %v641 = vsel %vm610, %v507, -inf
  %642 = vmax.xlane.f32.xlu0 %v641
  %v643 = vpop.xlane.xlu0 %642
  %v644 = vsel %vm606, %v551, -inf
  %645 = vmax.xlane.f32.xlu0 %v644
  %v646 = vpop.xlane.xlu0 %645
  %v647 = vsel %vm610, %v554, -inf
  %648 = vmax.xlane.f32.xlu0 %v647
  %v649 = vpop.xlane.xlu0 %648
  %v650 = vsel %vm606, %v598, -inf
  %651 = vmax.xlane.f32.xlu0 %v650
  %v652 = vpop.xlane.xlu0 %651
  %v653 = vsel %vm610, %v601, -inf
  %654 = vmax.xlane.f32.xlu0 %v653
  %v655 = vpop.xlane.xlu0 %654
  %vm656 = vcmp.ge.f32.partialorder %v269, %v609
  %vm657 = vcmp.ge.f32.partialorder %v272, %v613
  %vm658 = vcmp.ge.f32.partialorder %v316, %v616
  %vm659 = vcmp.ge.f32.partialorder %v319, %v619
  %vm660 = vcmp.ge.f32.partialorder %v363, %v622
  %vm661 = vcmp.ge.f32.partialorder %v366, %v625
  %vm662 = vcmp.ge.f32.partialorder %v410, %v628
  %vm663 = vcmp.ge.f32.partialorder %v413, %v631
  %vm664 = vcmp.ge.f32.partialorder %v457, %v634
  %vm665 = vcmp.ge.f32.partialorder %v460, %v637
  %vm666 = vcmp.ge.f32.partialorder %v504, %v640
  %vm667 = vcmp.ge.f32.partialorder %v507, %v643
  %vm668 = vcmp.ge.f32.partialorder %v551, %v646
  %vm669 = vcmp.ge.f32.partialorder %v554, %v649
  %vm670 = vcmp.ge.f32.partialorder %v598, %v652
  %vm671 = vcmp.ge.f32.partialorder %v601, %v655
  %v672 = vsel %vm656, %v605, 4
  %v673 = vsel %vm657, %v605, 4
  %v674 = vsel %vm658, %v605, 4
  %v675 = vsel %vm659, %v605, 4
  %v676 = vsel %vm660, %v605, 4
  %v677 = vsel %vm661, %v605, 4
  %v678 = vsel %vm662, %v605, 4
  %v679 = vsel %vm663, %v605, 4
  %v680 = vsel %vm664, %v605, 4
  %v681 = vsel %vm665, %v605, 4
  %v682 = vsel %vm666, %v605, 4
  %v683 = vsel %vm667, %v605, 4
  %v684 = vsel %vm668, %v605, 4
  %v685 = vsel %vm669, %v605, 4
  %v686 = vsel %vm670, %v605, 4
  %v687 = vsel %vm671, %v605, 4
  %v688 = vsel %vm606, %v672, 2147483647
  %v689 = vand.u32 %v688, 65535
  %v690 = vshra.s32 %v688, 16
  %v691 = vcvt.s32.f32 %v689
  %v692 = vcvt.s32.f32 %v690
  %693 = vmin.xlane.f32.xlu0 %v692
  %v694 = vpop.xlane.xlu0 %693
  %vm695 = vcmp.eq.f32.partialorder %v692, %v694
  %v696 = vsel %vm695, %v691, inf
  %697 = vmin.xlane.f32.xlu0 %v696
  %v698 = vpop.xlane.xlu0 %697
  %v699 = vcvt.f32.s32 %v698
  %v700 = vcvt.f32.s32 %v694
  %v701 = vshll.u32 %v700, 16
  %v702 = vadd.s32 %v701, %v699
  %v703 = vsel %vm610, %v673, 2147483647
  %v704 = vand.u32 %v703, 65535
  %v705 = vshra.s32 %v703, 16
  %v706 = vcvt.s32.f32 %v704
  %v707 = vcvt.s32.f32 %v705
  %708 = vmin.xlane.f32.xlu0 %v707
  %v709 = vpop.xlane.xlu0 %708
  %vm710 = vcmp.eq.f32.partialorder %v707, %v709
  %v711 = vsel %vm710, %v706, inf
  %712 = vmin.xlane.f32.xlu0 %v711
  %v713 = vpop.xlane.xlu0 %712
  %v714 = vcvt.f32.s32 %v713
  %v715 = vcvt.f32.s32 %v709
  %v716 = vshll.u32 %v715, 16
  %v717 = vadd.s32 %v716, %v714
  %v718 = vsel %vm606, %v674, 2147483647
  %v719 = vand.u32 %v718, 65535
  %v720 = vshra.s32 %v718, 16
  %v721 = vcvt.s32.f32 %v719
  %v722 = vcvt.s32.f32 %v720
  %723 = vmin.xlane.f32.xlu0 %v722
  %v724 = vpop.xlane.xlu0 %723
  %vm725 = vcmp.eq.f32.partialorder %v722, %v724
  %v726 = vsel %vm725, %v721, inf
  %727 = vmin.xlane.f32.xlu0 %v726
  %v728 = vpop.xlane.xlu0 %727
  %v729 = vcvt.f32.s32 %v728
  %v730 = vcvt.f32.s32 %v724
  %v731 = vshll.u32 %v730, 16
  %v732 = vadd.s32 %v731, %v729
  %v733 = vsel %vm610, %v675, 2147483647
  %v734 = vand.u32 %v733, 65535
  %v735 = vshra.s32 %v733, 16
  %v736 = vcvt.s32.f32 %v734
  %v737 = vcvt.s32.f32 %v735
  %738 = vmin.xlane.f32.xlu0 %v737
  %v739 = vpop.xlane.xlu0 %738
  %vm740 = vcmp.eq.f32.partialorder %v737, %v739
  %v741 = vsel %vm740, %v736, inf
  %742 = vmin.xlane.f32.xlu0 %v741
  %v743 = vpop.xlane.xlu0 %742
  %v744 = vcvt.f32.s32 %v743
  %v745 = vcvt.f32.s32 %v739
  %v746 = vshll.u32 %v745, 16
  %v747 = vadd.s32 %v746, %v744
  %v748 = vsel %vm606, %v676, 2147483647
  %v749 = vand.u32 %v748, 65535
  %v750 = vshra.s32 %v748, 16
  %v751 = vcvt.s32.f32 %v749
  %v752 = vcvt.s32.f32 %v750
  %753 = vmin.xlane.f32.xlu0 %v752
  %v754 = vpop.xlane.xlu0 %753
  %vm755 = vcmp.eq.f32.partialorder %v752, %v754
  %v756 = vsel %vm755, %v751, inf
  %757 = vmin.xlane.f32.xlu0 %v756
  %v758 = vpop.xlane.xlu0 %757
  %v759 = vcvt.f32.s32 %v758
  %v760 = vcvt.f32.s32 %v754
  %v761 = vshll.u32 %v760, 16
  %v762 = vadd.s32 %v761, %v759
  %v763 = vsel %vm610, %v677, 2147483647
  %v764 = vand.u32 %v763, 65535
  %v765 = vshra.s32 %v763, 16
  %v766 = vcvt.s32.f32 %v764
  %v767 = vcvt.s32.f32 %v765
  %768 = vmin.xlane.f32.xlu0 %v767
  %v769 = vpop.xlane.xlu0 %768
  %vm770 = vcmp.eq.f32.partialorder %v767, %v769
  %v771 = vsel %vm770, %v766, inf
  %772 = vmin.xlane.f32.xlu0 %v771
  %v773 = vpop.xlane.xlu0 %772
  %v774 = vcvt.f32.s32 %v773
  %v775 = vcvt.f32.s32 %v769
  %v776 = vshll.u32 %v775, 16
  %v777 = vadd.s32 %v776, %v774
  %v778 = vsel %vm606, %v678, 2147483647
  %v779 = vand.u32 %v778, 65535
  %v780 = vshra.s32 %v778, 16
  %v781 = vcvt.s32.f32 %v779
  %v782 = vcvt.s32.f32 %v780
  %783 = vmin.xlane.f32.xlu0 %v782
  %v784 = vpop.xlane.xlu0 %783
  %vm785 = vcmp.eq.f32.partialorder %v782, %v784
  %v786 = vsel %vm785, %v781, inf
  %787 = vmin.xlane.f32.xlu0 %v786
  %v788 = vpop.xlane.xlu0 %787
  %v789 = vcvt.f32.s32 %v788
  %v790 = vcvt.f32.s32 %v784
  %v791 = vshll.u32 %v790, 16
  %v792 = vadd.s32 %v791, %v789
  %v793 = vsel %vm610, %v679, 2147483647
  %v794 = vand.u32 %v793, 65535
  %v795 = vshra.s32 %v793, 16
  %v796 = vcvt.s32.f32 %v794
  %v797 = vcvt.s32.f32 %v795
  %798 = vmin.xlane.f32.xlu0 %v797
  %v799 = vpop.xlane.xlu0 %798
  %vm800 = vcmp.eq.f32.partialorder %v797, %v799
  %v801 = vsel %vm800, %v796, inf
  %802 = vmin.xlane.f32.xlu0 %v801
  %v803 = vpop.xlane.xlu0 %802
  %v804 = vcvt.f32.s32 %v803
  %v805 = vcvt.f32.s32 %v799
  %v806 = vshll.u32 %v805, 16
  %v807 = vadd.s32 %v806, %v804
  %v808 = vsel %vm606, %v680, 2147483647
  %v809 = vand.u32 %v808, 65535
  %v810 = vshra.s32 %v808, 16
  %v811 = vcvt.s32.f32 %v809
  %v812 = vcvt.s32.f32 %v810
  %813 = vmin.xlane.f32.xlu0 %v812
  %v814 = vpop.xlane.xlu0 %813
  %vm815 = vcmp.eq.f32.partialorder %v812, %v814
  %v816 = vsel %vm815, %v811, inf
  %817 = vmin.xlane.f32.xlu0 %v816
  %v818 = vpop.xlane.xlu0 %817
  %v819 = vcvt.f32.s32 %v818
  %v820 = vcvt.f32.s32 %v814
  %v821 = vshll.u32 %v820, 16
  %v822 = vadd.s32 %v821, %v819
  %v823 = vsel %vm610, %v681, 2147483647
  %v824 = vand.u32 %v823, 65535
  %v825 = vshra.s32 %v823, 16
  %v826 = vcvt.s32.f32 %v824
  %v827 = vcvt.s32.f32 %v825
  %828 = vmin.xlane.f32.xlu0 %v827
  %v829 = vpop.xlane.xlu0 %828
  %vm830 = vcmp.eq.f32.partialorder %v827, %v829
  %v831 = vsel %vm830, %v826, inf
  %832 = vmin.xlane.f32.xlu0 %v831
  %v833 = vpop.xlane.xlu0 %832
  %v834 = vcvt.f32.s32 %v833
  %v835 = vcvt.f32.s32 %v829
  %v836 = vshll.u32 %v835, 16
  %v837 = vadd.s32 %v836, %v834
  %v838 = vsel %vm606, %v682, 2147483647
  %v839 = vand.u32 %v838, 65535
  %v840 = vshra.s32 %v838, 16
  %v841 = vcvt.s32.f32 %v839
  %v842 = vcvt.s32.f32 %v840
  %843 = vmin.xlane.f32.xlu0 %v842
  %v844 = vpop.xlane.xlu0 %843
  %vm845 = vcmp.eq.f32.partialorder %v842, %v844
  %v846 = vsel %vm845, %v841, inf
  %847 = vmin.xlane.f32.xlu0 %v846
  %v848 = vpop.xlane.xlu0 %847
  %v849 = vcvt.f32.s32 %v848
  %v850 = vcvt.f32.s32 %v844
  %v851 = vshll.u32 %v850, 16
  %v852 = vadd.s32 %v851, %v849
  %v853 = vsel %vm610, %v683, 2147483647
  %v854 = vand.u32 %v853, 65535
  %v855 = vshra.s32 %v853, 16
  %v856 = vcvt.s32.f32 %v854
  %v857 = vcvt.s32.f32 %v855
  %858 = vmin.xlane.f32.xlu0 %v857
  %v859 = vpop.xlane.xlu0 %858
  %vm860 = vcmp.eq.f32.partialorder %v857, %v859
  %v861 = vsel %vm860, %v856, inf
  %862 = vmin.xlane.f32.xlu0 %v861
  %v863 = vpop.xlane.xlu0 %862
  %v864 = vcvt.f32.s32 %v863
  %v865 = vcvt.f32.s32 %v859
  %v866 = vshll.u32 %v865, 16
  %v867 = vadd.s32 %v866, %v864
  %v868 = vsel %vm606, %v684, 2147483647
  %v869 = vand.u32 %v868, 65535
  %v870 = vshra.s32 %v868, 16
  %v871 = vcvt.s32.f32 %v869
  %v872 = vcvt.s32.f32 %v870
  %873 = vmin.xlane.f32.xlu0 %v872
  %v874 = vpop.xlane.xlu0 %873
  %vm875 = vcmp.eq.f32.partialorder %v872, %v874
  %v876 = vsel %vm875, %v871, inf
  %877 = vmin.xlane.f32.xlu0 %v876
  %v878 = vpop.xlane.xlu0 %877
  %v879 = vcvt.f32.s32 %v878
  %v880 = vcvt.f32.s32 %v874
  %v881 = vshll.u32 %v880, 16
  %v882 = vadd.s32 %v881, %v879
  %v883 = vsel %vm610, %v685, 2147483647
  %v884 = vand.u32 %v883, 65535
  %v885 = vshra.s32 %v883, 16
  %v886 = vcvt.s32.f32 %v884
  %v887 = vcvt.s32.f32 %v885
  %888 = vmin.xlane.f32.xlu0 %v887
  %v889 = vpop.xlane.xlu0 %888
  %vm890 = vcmp.eq.f32.partialorder %v887, %v889
  %v891 = vsel %vm890, %v886, inf
  %892 = vmin.xlane.f32.xlu0 %v891
  %v893 = vpop.xlane.xlu0 %892
  %v894 = vcvt.f32.s32 %v893
  %v895 = vcvt.f32.s32 %v889
  %v896 = vshll.u32 %v895, 16
  %v897 = vadd.s32 %v896, %v894
  %v898 = vsel %vm606, %v686, 2147483647
  %v899 = vand.u32 %v898, 65535
  %v900 = vshra.s32 %v898, 16
  %v901 = vcvt.s32.f32 %v899
  %v902 = vcvt.s32.f32 %v900
  %903 = vmin.xlane.f32.xlu0 %v902
  %v904 = vpop.xlane.xlu0 %903
  %vm905 = vcmp.eq.f32.partialorder %v902, %v904
  %v906 = vsel %vm905, %v901, inf
  %907 = vmin.xlane.f32.xlu0 %v906
  %v908 = vpop.xlane.xlu0 %907
  %v909 = vcvt.f32.s32 %v908
  %v910 = vcvt.f32.s32 %v904
  %v911 = vshll.u32 %v910, 16
  %v912 = vadd.s32 %v911, %v909
  %v913 = vsel %vm610, %v687, 2147483647
  %v914 = vand.u32 %v913, 65535
  %v915 = vshra.s32 %v913, 16
  %v916 = vcvt.s32.f32 %v914
  %v917 = vcvt.s32.f32 %v915
  %918 = vmin.xlane.f32.xlu0 %v917
  %v919 = vpop.xlane.xlu0 %918
  %vm920 = vcmp.eq.f32.partialorder %v917, %v919
  %v921 = vsel %vm920, %v916, inf
  %922 = vmin.xlane.f32.xlu0 %v921
  %v923 = vpop.xlane.xlu0 %922
  %v924 = vcvt.f32.s32 %v923
  %v925 = vcvt.f32.s32 %v919
  %v926 = vshll.u32 %v925, 16
  %v927 = vadd.s32 %v926, %v924
  %vm928 = vcmp.eq.s32.totalorder %v605, %v702
  %vm929 = vcmp.eq.s32.totalorder %v605, %v717
  %vm930 = vcmp.eq.s32.totalorder %v605, %v732
  %vm931 = vcmp.eq.s32.totalorder %v605, %v747
  %vm932 = vcmp.eq.s32.totalorder %v605, %v762
  %vm933 = vcmp.eq.s32.totalorder %v605, %v777
  %vm934 = vcmp.eq.s32.totalorder %v605, %v792
  %vm935 = vcmp.eq.s32.totalorder %v605, %v807
  %vm936 = vcmp.eq.s32.totalorder %v605, %v822
  %vm937 = vcmp.eq.s32.totalorder %v605, %v837
  %vm938 = vcmp.eq.s32.totalorder %v605, %v852
  %vm939 = vcmp.eq.s32.totalorder %v605, %v867
  %vm940 = vcmp.eq.s32.totalorder %v605, %v882
  %vm941 = vcmp.eq.s32.totalorder %v605, %v897
  %vm942 = vcmp.eq.s32.totalorder %v605, %v912
  %vm943 = vcmp.eq.s32.totalorder %v605, %v927
  %v944 = vsel %vm928, 1, 0
  %v945 = vsel %vm929, 1, 0
  %v946 = vsel %vm930, 1, 0
  %v947 = vsel %vm931, 1, 0
  %v948 = vsel %vm932, 1, 0
  %v949 = vsel %vm933, 1, 0
  %v950 = vsel %vm934, 1, 0
  %v951 = vsel %vm935, 1, 0
  %v952 = vsel %vm936, 1, 0
  %v953 = vsel %vm937, 1, 0
  %v954 = vsel %vm938, 1, 0
  %v955 = vsel %vm939, 1, 0
  %v956 = vsel %vm940, 1, 0
  %v957 = vsel %vm941, 1, 0
  %v958 = vsel %vm942, 1, 0
  %v959 = vsel %vm943, 1, 0
  %v960 = vcvt.s32.f32 %v944
  %v961 = vcvt.s32.f32 %v945
  %v962 = vcvt.s32.f32 %v946
  %v963 = vcvt.s32.f32 %v947
  %v964 = vcvt.s32.f32 %v948
  %v965 = vcvt.s32.f32 %v949
  %v966 = vcvt.s32.f32 %v950
  %v967 = vcvt.s32.f32 %v951
  %v968 = vcvt.s32.f32 %v952
  %v969 = vcvt.s32.f32 %v953
  %v970 = vcvt.s32.f32 %v954
  %v971 = vcvt.s32.f32 %v955
  %v972 = vcvt.s32.f32 %v956
  %v973 = vcvt.s32.f32 %v957
  %v974 = vcvt.s32.f32 %v958
  %v975 = vcvt.s32.f32 %v959
  %v976 = vld [vmem:[%s2] sm:$0xff]
  %v977 = vld [vmem:[%s2 + $0x8] sm:$0xf]
  %v978 = vld [vmem:[%s2 + $0x10] sm:$0xff]
  %v979 = vld [vmem:[%s2 + $0x18] sm:$0xf]
  %v980 = vld [vmem:[%s2 + $0x20] sm:$0xff]
  %v981 = vld [vmem:[%s2 + $0x28] sm:$0xf]
  %v982 = vld [vmem:[%s2 + $0x30] sm:$0xff]
  %v983 = vld [vmem:[%s2 + $0x38] sm:$0xf]
  %v984 = vld [vmem:[%s2 + $0x40] sm:$0xff]
  %v985 = vld [vmem:[%s2 + $0x48] sm:$0xf]
  %v986 = vld [vmem:[%s2 + $0x50] sm:$0xff]
  %v987 = vld [vmem:[%s2 + $0x58] sm:$0xf]
  %v988 = vld [vmem:[%s2 + $0x60] sm:$0xff]
  %v989 = vld [vmem:[%s2 + $0x68] sm:$0xf]
  %v990 = vld [vmem:[%s2 + $0x70] sm:$0xff]
  %v991 = vld [vmem:[%s2 + $0x78] sm:$0xf]
  %v992 = vld [vmem:[%s3] sm:$0xf]
  %v993 = vld [vmem:[%s3 + $0x4] sm:$0xf]
  %v994 = vld [vmem:[%s3 + $0x8] sm:$0xf]
  %v995 = vld [vmem:[%s3 + $0xc] sm:$0xf]
  %v996 = vld [vmem:[%s3 + $0x10] sm:$0xf]
  %v997 = vld [vmem:[%s3 + $0x14] sm:$0xf]
  %v998 = vld [vmem:[%s3 + $0x18] sm:$0xf]
  %v999 = vld [vmem:[%s3 + $0x1c] sm:$0xf]
  %v1000 = vpack.c.bf16 %v961, %v960
  %v1001 = vpack.c.bf16 %v963, %v962
  %v1002 = vpack.c.bf16 %v965, %v964
  %v1003 = vpack.c.bf16 %v967, %v966
  %v1004 = vpack.c.bf16 %v969, %v968
  %v1005 = vpack.c.bf16 %v971, %v970
  %v1006 = vpack.c.bf16 %v973, %v972
  %v1007 = vpack.c.bf16 %v975, %v974
  %v1008 = vpack.c.bf16 %v977, %v976
  %v1009 = vpack.c.bf16 %v979, %v978
  %v1010 = vpack.c.bf16 %v981, %v980
  %v1011 = vpack.c.bf16 %v983, %v982
  %v1012 = vpack.c.bf16 %v985, %v984
  %v1013 = vpack.c.bf16 %v987, %v986
  %v1014 = vpack.c.bf16 %v989, %v988
  %v1015 = vpack.c.bf16 %v991, %v990
  %1016 = vxpose.xlu0.c.b16.start [1/8] %v1000, 128
  %1017 = vxpose.xlu0.c.b16.cont [2/8] 0, 128
  %1018 = vxpose.xlu0.c.b16.cont [3/8] 0, 128
  %1019 = vxpose.xlu0.c.b16.cont [4/8] 0, 128
  %1020 = vxpose.xlu0.c.b16.cont [5/8] 0, 128
  %1021 = vxpose.xlu0.c.b16.cont [6/8] 0, 128
  %1022 = vxpose.xlu0.c.b16.cont [7/8] 0, 128
  %1023 = vxpose.xlu0.c.b16.end [8/8] 0, 128
  %v1024 = vpop.trf.xlu0
  %v1025 = vpop.trf.xlu0
  %v1026 = vpop.trf.xlu0
  %v1027 = vpop.trf.xlu0
  %v1028 = vpop.trf.xlu0
  %v1029 = vpop.trf.xlu0
  %v1030 = vpop.trf.xlu0
  %v1031 = vpop.trf.xlu0
  %vm1032 = vcmask 97280
  %v1034 = vsel %vm1032, %v1024, 0
  %vm1036 = vcmask 1045504
  %v1038 = vsel %vm1036, %v1008, 0
  %1040 = vmatprep.subr.bf16.mxu0 0
  %1041 = vmatpush1.bf16.msra.mxu0 %v1038
  %1042 = vmatprep.subr.bf16.mxu0 0
  %1043 = vmatpush1.bf16.msra.mxu0 0
  %1044 = vmatprep.subr.bf16.mxu0 0
  %1045 = vmatpush1.bf16.msra.mxu0 0
  %1046 = vmatprep.subr.bf16.mxu0 0
  %1047 = vmatpush1.bf16.msra.mxu0 0
  %1048 = vmatprep.subr.bf16.mxu0 0
  %1049 = vmatpush1.bf16.msra.mxu0 0
  %1050 = vmatprep.subr.bf16.mxu0 0
  %1051 = vmatpush1.bf16.msra.mxu0 0
  %1052 = vmatprep.subr.bf16.mxu0 0
  %1053 = vmatpush1.bf16.msra.mxu0 0
  %1054 = vmatprep.subr.bf16.mxu0 0
  %1055 = vmatpush1.bf16.msra.mxu0 0
  %1056 = vmatprep.subr.bf16.mxu0 0
  %1057 = vmatpush1.bf16.msra.mxu0 0
  %1058 = vmatprep.subr.bf16.mxu0 0
  %1059 = vmatpush1.bf16.msra.mxu0 0
  %1060 = vmatprep.subr.bf16.mxu0 0
  %1061 = vmatpush1.bf16.msra.mxu0 0
  %1062 = vmatprep.subr.bf16.mxu0 0
  %1063 = vmatpush1.bf16.msra.mxu0 0
  %1064 = vmatprep.subr.bf16.mxu0 0
  %1065 = vmatpush1.bf16.msra.mxu0 0
  %1066 = vmatprep.subr.bf16.mxu0 0
  %1067 = vmatpush1.bf16.msra.mxu0 0
  %1068 = vmatprep.subr.bf16.mxu0 0
  %1069 = vmatpush1.bf16.msra.mxu0 0
  %1070 = vmatprep.subr.bf16.mxu0 0
  %1071 = vmatpush1.bf16.msra.mxu0 0
  %1072 = vmatprep.mubr.bf16.mxu0 0
  %1073 = vmatmul.mubr.bf16.gmra.mrb[0].mxu0 %v1034
  %v1074 = vpop.f32.mrb[0].mxu0
  %v1075 = vadd.f32 0.0, %v1074
  %v1076 = vpop.f32.mrb[0].mxu0
  %v1077 = vpop.f32.mrb[0].mxu0
  %v1078 = vpop.f32.mrb[0].mxu0
  %1079 = vdwg.mxu0
  %1080 = vxpose.xlu0.c.b16.start [1/8] %v1001, 128
  %1081 = vxpose.xlu0.c.b16.cont [2/8] 0, 128
  %1082 = vxpose.xlu0.c.b16.cont [3/8] 0, 128
  %1083 = vxpose.xlu0.c.b16.cont [4/8] 0, 128
  %1084 = vxpose.xlu0.c.b16.cont [5/8] 0, 128
  %1085 = vxpose.xlu0.c.b16.cont [6/8] 0, 128
  %1086 = vxpose.xlu0.c.b16.cont [7/8] 0, 128
  %1087 = vxpose.xlu0.c.b16.end [8/8] 0, 128
  %v1088 = vpop.trf.xlu0
  %v1089 = vpop.trf.xlu0
  %v1090 = vpop.trf.xlu0
  %v1091 = vpop.trf.xlu0
  %v1092 = vpop.trf.xlu0
  %v1093 = vpop.trf.xlu0
  %v1094 = vpop.trf.xlu0
  %v1095 = vpop.trf.xlu0
  %v1097 = vsel %vm1032, %v1088, 0
  %v1100 = vsel %vm1036, %v1009, 0
  %1102 = vmatprep.subr.bf16.mxu0 0
  %1103 = vmatpush1.bf16.msra.mxu0 %v1100
  %1104 = vmatprep.subr.bf16.mxu0 0
  %1105 = vmatpush1.bf16.msra.mxu0 0
  %1106 = vmatprep.subr.bf16.mxu0 0
  %1107 = vmatpush1.bf16.msra.mxu0 0
  %1108 = vmatprep.subr.bf16.mxu0 0
  %1109 = vmatpush1.bf16.msra.mxu0 0
  %1110 = vmatprep.subr.bf16.mxu0 0
  %1111 = vmatpush1.bf16.msra.mxu0 0
  %1112 = vmatprep.subr.bf16.mxu0 0
  %1113 = vmatpush1.bf16.msra.mxu0 0
  %1114 = vmatprep.subr.bf16.mxu0 0
  %1115 = vmatpush1.bf16.msra.mxu0 0
  %1116 = vmatprep.subr.bf16.mxu0 0
  %1117 = vmatpush1.bf16.msra.mxu0 0
  %1118 = vmatprep.subr.bf16.mxu0 0
  %1119 = vmatpush1.bf16.msra.mxu0 0
  %1120 = vmatprep.subr.bf16.mxu0 0
  %1121 = vmatpush1.bf16.msra.mxu0 0
  %1122 = vmatprep.subr.bf16.mxu0 0
  %1123 = vmatpush1.bf16.msra.mxu0 0
  %1124 = vmatprep.subr.bf16.mxu0 0
  %1125 = vmatpush1.bf16.msra.mxu0 0
  %1126 = vmatprep.subr.bf16.mxu0 0
  %1127 = vmatpush1.bf16.msra.mxu0 0
  %1128 = vmatprep.subr.bf16.mxu0 0
  %1129 = vmatpush1.bf16.msra.mxu0 0
  %1130 = vmatprep.subr.bf16.mxu0 0
  %1131 = vmatpush1.bf16.msra.mxu0 0
  %1132 = vmatprep.subr.bf16.mxu0 0
  %1133 = vmatpush1.bf16.msra.mxu0 0
  %1134 = vmatprep.mubr.bf16.mxu0 0
  %1135 = vmatmul.mubr.bf16.gmra.mrb[0].mxu0 %v1097
  %v1136 = vpop.f32.mrb[0].mxu0
  %v1137 = vadd.f32 0.0, %v1136
  %v1138 = vpop.f32.mrb[0].mxu0
  %v1139 = vpop.f32.mrb[0].mxu0
  %v1140 = vpop.f32.mrb[0].mxu0
  %1141 = vdwg.mxu0
  %1142 = vxpose.xlu0.c.b16.start [1/8] %v1002, 128
  %1143 = vxpose.xlu0.c.b16.cont [2/8] 0, 128
  %1144 = vxpose.xlu0.c.b16.cont [3/8] 0, 128
  %1145 = vxpose.xlu0.c.b16.cont [4/8] 0, 128
  %1146 = vxpose.xlu0.c.b16.cont [5/8] 0, 128
  %1147 = vxpose.xlu0.c.b16.cont [6/8] 0, 128
  %1148 = vxpose.xlu0.c.b16.cont [7/8] 0, 128
  %1149 = vxpose.xlu0.c.b16.end [8/8] 0, 128
  %v1150 = vpop.trf.xlu0
  %v1151 = vpop.trf.xlu0
  %v1152 = vpop.trf.xlu0
  %v1153 = vpop.trf.xlu0
  %v1154 = vpop.trf.xlu0
  %v1155 = vpop.trf.xlu0
  %v1156 = vpop.trf.xlu0
  %v1157 = vpop.trf.xlu0
  %v1159 = vsel %vm1032, %v1150, 0
  %v1162 = vsel %vm1036, %v1010, 0
  %1164 = vmatprep.subr.bf16.mxu0 0
  %1165 = vmatpush1.bf16.msra.mxu0 %v1162
  %1166 = vmatprep.subr.bf16.mxu0 0
  %1167 = vmatpush1.bf16.msra.mxu0 0
  %1168 = vmatprep.subr.bf16.mxu0 0
  %1169 = vmatpush1.bf16.msra.mxu0 0
  %1170 = vmatprep.subr.bf16.mxu0 0
  %1171 = vmatpush1.bf16.msra.mxu0 0
  %1172 = vmatprep.subr.bf16.mxu0 0
  %1173 = vmatpush1.bf16.msra.mxu0 0
  %1174 = vmatprep.subr.bf16.mxu0 0
  %1175 = vmatpush1.bf16.msra.mxu0 0
  %1176 = vmatprep.subr.bf16.mxu0 0
  %1177 = vmatpush1.bf16.msra.mxu0 0
  %1178 = vmatprep.subr.bf16.mxu0 0
  %1179 = vmatpush1.bf16.msra.mxu0 0
  %1180 = vmatprep.subr.bf16.mxu0 0
  %1181 = vmatpush1.bf16.msra.mxu0 0
  %1182 = vmatprep.subr.bf16.mxu0 0
  %1183 = vmatpush1.bf16.msra.mxu0 0
  %1184 = vmatprep.subr.bf16.mxu0 0
  %1185 = vmatpush1.bf16.msra.mxu0 0
  %1186 = vmatprep.subr.bf16.mxu0 0
  %1187 = vmatpush1.bf16.msra.mxu0 0
  %1188 = vmatprep.subr.bf16.mxu0 0
  %1189 = vmatpush1.bf16.msra.mxu0 0
  %1190 = vmatprep.subr.bf16.mxu0 0
  %1191 = vmatpush1.bf16.msra.mxu0 0
  %1192 = vmatprep.subr.bf16.mxu0 0
  %1193 = vmatpush1.bf16.msra.mxu0 0
  %1194 = vmatprep.subr.bf16.mxu0 0
  %1195 = vmatpush1.bf16.msra.mxu0 0
  %1196 = vmatprep.mubr.bf16.mxu0 0
  %1197 = vmatmul.mubr.bf16.gmra.mrb[0].mxu0 %v1159
  %v1198 = vpop.f32.mrb[0].mxu0
  %v1199 = vadd.f32 0.0, %v1198
  %v1200 = vpop.f32.mrb[0].mxu0
  %v1201 = vpop.f32.mrb[0].mxu0
  %v1202 = vpop.f32.mrb[0].mxu0
  %1203 = vdwg.mxu0
  %1204 = vxpose.xlu0.c.b16.start [1/8] %v1003, 128
  %1205 = vxpose.xlu0.c.b16.cont [2/8] 0, 128
  %1206 = vxpose.xlu0.c.b16.cont [3/8] 0, 128
  %1207 = vxpose.xlu0.c.b16.cont [4/8] 0, 128
  %1208 = vxpose.xlu0.c.b16.cont [5/8] 0, 128
  %1209 = vxpose.xlu0.c.b16.cont [6/8] 0, 128
  %1210 = vxpose.xlu0.c.b16.cont [7/8] 0, 128
  %1211 = vxpose.xlu0.c.b16.end [8/8] 0, 128
  %v1212 = vpop.trf.xlu0
  %v1213 = vpop.trf.xlu0
  %v1214 = vpop.trf.xlu0
  %v1215 = vpop.trf.xlu0
  %v1216 = vpop.trf.xlu0
  %v1217 = vpop.trf.xlu0
  %v1218 = vpop.trf.xlu0
  %v1219 = vpop.trf.xlu0
  %v1221 = vsel %vm1032, %v1212, 0
  %v1224 = vsel %vm1036, %v1011, 0
  %1226 = vmatprep.subr.bf16.mxu0 0
  %1227 = vmatpush1.bf16.msra.mxu0 %v1224
  %1228 = vmatprep.subr.bf16.mxu0 0
  %1229 = vmatpush1.bf16.msra.mxu0 0
  %1230 = vmatprep.subr.bf16.mxu0 0
  %1231 = vmatpush1.bf16.msra.mxu0 0
  %1232 = vmatprep.subr.bf16.mxu0 0
  %1233 = vmatpush1.bf16.msra.mxu0 0
  %1234 = vmatprep.subr.bf16.mxu0 0
  %1235 = vmatpush1.bf16.msra.mxu0 0
  %1236 = vmatprep.subr.bf16.mxu0 0
  %1237 = vmatpush1.bf16.msra.mxu0 0
  %1238 = vmatprep.subr.bf16.mxu0 0
  %1239 = vmatpush1.bf16.msra.mxu0 0
  %1240 = vmatprep.subr.bf16.mxu0 0
  %1241 = vmatpush1.bf16.msra.mxu0 0
  %1242 = vmatprep.subr.bf16.mxu0 0
  %1243 = vmatpush1.bf16.msra.mxu0 0
  %1244 = vmatprep.subr.bf16.mxu0 0
  %1245 = vmatpush1.bf16.msra.mxu0 0
  %1246 = vmatprep.subr.bf16.mxu0 0
  %1247 = vmatpush1.bf16.msra.mxu0 0
  %1248 = vmatprep.subr.bf16.mxu0 0
  %1249 = vmatpush1.bf16.msra.mxu0 0
  %1250 = vmatprep.subr.bf16.mxu0 0
  %1251 = vmatpush1.bf16.msra.mxu0 0
  %1252 = vmatprep.subr.bf16.mxu0 0
  %1253 = vmatpush1.bf16.msra.mxu0 0
  %1254 = vmatprep.subr.bf16.mxu0 0
  %1255 = vmatpush1.bf16.msra.mxu0 0
  %1256 = vmatprep.subr.bf16.mxu0 0
  %1257 = vmatpush1.bf16.msra.mxu0 0
  %1258 = vmatprep.mubr.bf16.mxu0 0
  %1259 = vmatmul.mubr.bf16.gmra.mrb[0].mxu0 %v1221
  %v1260 = vpop.f32.mrb[0].mxu0
  %v1261 = vadd.f32 0.0, %v1260
  %v1262 = vpop.f32.mrb[0].mxu0
  %v1263 = vpop.f32.mrb[0].mxu0
  %v1264 = vpop.f32.mrb[0].mxu0
  %1265 = vdwg.mxu0
  %1266 = vxpose.xlu0.c.b16.start [1/8] %v1004, 128
  %1267 = vxpose.xlu0.c.b16.cont [2/8] 0, 128
  %1268 = vxpose.xlu0.c.b16.cont [3/8] 0, 128
  %1269 = vxpose.xlu0.c.b16.cont [4/8] 0, 128
  %1270 = vxpose.xlu0.c.b16.cont [5/8] 0, 128
  %1271 = vxpose.xlu0.c.b16.cont [6/8] 0, 128
  %1272 = vxpose.xlu0.c.b16.cont [7/8] 0, 128
  %1273 = vxpose.xlu0.c.b16.end [8/8] 0, 128
  %v1274 = vpop.trf.xlu0
  %v1275 = vpop.trf.xlu0
  %v1276 = vpop.trf.xlu0
  %v1277 = vpop.trf.xlu0
  %v1278 = vpop.trf.xlu0
  %v1279 = vpop.trf.xlu0
  %v1280 = vpop.trf.xlu0
  %v1281 = vpop.trf.xlu0
  %v1283 = vsel %vm1032, %v1274, 0
  %v1286 = vsel %vm1036, %v1012, 0
  %1288 = vmatprep.subr.bf16.mxu0 0
  %1289 = vmatpush1.bf16.msra.mxu0 %v1286
  %1290 = vmatprep.subr.bf16.mxu0 0
  %1291 = vmatpush1.bf16.msra.mxu0 0
  %1292 = vmatprep.subr.bf16.mxu0 0
  %1293 = vmatpush1.bf16.msra.mxu0 0
  %1294 = vmatprep.subr.bf16.mxu0 0
  %1295 = vmatpush1.bf16.msra.mxu0 0
  %1296 = vmatprep.subr.bf16.mxu0 0
  %1297 = vmatpush1.bf16.msra.mxu0 0
  %1298 = vmatprep.subr.bf16.mxu0 0
  %1299 = vmatpush1.bf16.msra.mxu0 0
  %1300 = vmatprep.subr.bf16.mxu0 0
  %1301 = vmatpush1.bf16.msra.mxu0 0
  %1302 = vmatprep.subr.bf16.mxu0 0
  %1303 = vmatpush1.bf16.msra.mxu0 0
  %1304 = vmatprep.subr.bf16.mxu0 0
  %1305 = vmatpush1.bf16.msra.mxu0 0
  %1306 = vmatprep.subr.bf16.mxu0 0
  %1307 = vmatpush1.bf16.msra.mxu0 0
  %1308 = vmatprep.subr.bf16.mxu0 0
  %1309 = vmatpush1.bf16.msra.mxu0 0
  %1310 = vmatprep.subr.bf16.mxu0 0
  %1311 = vmatpush1.bf16.msra.mxu0 0
  %1312 = vmatprep.subr.bf16.mxu0 0
  %1313 = vmatpush1.bf16.msra.mxu0 0
  %1314 = vmatprep.subr.bf16.mxu0 0
  %1315 = vmatpush1.bf16.msra.mxu0 0
  %1316 = vmatprep.subr.bf16.mxu0 0
  %1317 = vmatpush1.bf16.msra.mxu0 0
  %1318 = vmatprep.subr.bf16.mxu0 0
  %1319 = vmatpush1.bf16.msra.mxu0 0
  %1320 = vmatprep.mubr.bf16.mxu0 0
  %1321 = vmatmul.mubr.bf16.gmra.mrb[0].mxu0 %v1283
  %v1322 = vpop.f32.mrb[0].mxu0
  %v1323 = vadd.f32 0.0, %v1322
  %v1324 = vpop.f32.mrb[0].mxu0
  %v1325 = vpop.f32.mrb[0].mxu0
  %v1326 = vpop.f32.mrb[0].mxu0
  %1327 = vdwg.mxu0
  %1328 = vxpose.xlu0.c.b16.start [1/8] %v1005, 128
  %1329 = vxpose.xlu0.c.b16.cont [2/8] 0, 128
  %1330 = vxpose.xlu0.c.b16.cont [3/8] 0, 128
  %1331 = vxpose.xlu0.c.b16.cont [4/8] 0, 128
  %1332 = vxpose.xlu0.c.b16.cont [5/8] 0, 128
  %1333 = vxpose.xlu0.c.b16.cont [6/8] 0, 128
  %1334 = vxpose.xlu0.c.b16.cont [7/8] 0, 128
  %1335 = vxpose.xlu0.c.b16.end [8/8] 0, 128
  %v1336 = vpop.trf.xlu0
  %v1337 = vpop.trf.xlu0
  %v1338 = vpop.trf.xlu0
  %v1339 = vpop.trf.xlu0
  %v1340 = vpop.trf.xlu0
  %v1341 = vpop.trf.xlu0
  %v1342 = vpop.trf.xlu0
  %v1343 = vpop.trf.xlu0
  %v1345 = vsel %vm1032, %v1336, 0
  %v1348 = vsel %vm1036, %v1013, 0
  %1350 = vmatprep.subr.bf16.mxu0 0
  %1351 = vmatpush1.bf16.msra.mxu0 %v1348
  %1352 = vmatprep.subr.bf16.mxu0 0
  %1353 = vmatpush1.bf16.msra.mxu0 0
  %1354 = vmatprep.subr.bf16.mxu0 0
  %1355 = vmatpush1.bf16.msra.mxu0 0
  %1356 = vmatprep.subr.bf16.mxu0 0
  %1357 = vmatpush1.bf16.msra.mxu0 0
  %1358 = vmatprep.subr.bf16.mxu0 0
  %1359 = vmatpush1.bf16.msra.mxu0 0
  %1360 = vmatprep.subr.bf16.mxu0 0
  %1361 = vmatpush1.bf16.msra.mxu0 0
  %1362 = vmatprep.subr.bf16.mxu0 0
  %1363 = vmatpush1.bf16.msra.mxu0 0
  %1364 = vmatprep.subr.bf16.mxu0 0
  %1365 = vmatpush1.bf16.msra.mxu0 0
  %1366 = vmatprep.subr.bf16.mxu0 0
  %1367 = vmatpush1.bf16.msra.mxu0 0
  %1368 = vmatprep.subr.bf16.mxu0 0
  %1369 = vmatpush1.bf16.msra.mxu0 0
  %1370 = vmatprep.subr.bf16.mxu0 0
  %1371 = vmatpush1.bf16.msra.mxu0 0
  %1372 = vmatprep.subr.bf16.mxu0 0
  %1373 = vmatpush1.bf16.msra.mxu0 0
  %1374 = vmatprep.subr.bf16.mxu0 0
  %1375 = vmatpush1.bf16.msra.mxu0 0
  %1376 = vmatprep.subr.bf16.mxu0 0
  %1377 = vmatpush1.bf16.msra.mxu0 0
  %1378 = vmatprep.subr.bf16.mxu0 0
  %1379 = vmatpush1.bf16.msra.mxu0 0
  %1380 = vmatprep.subr.bf16.mxu0 0
  %1381 = vmatpush1.bf16.msra.mxu0 0
  %1382 = vmatprep.mubr.bf16.mxu0 0
  %1383 = vmatmul.mubr.bf16.gmra.mrb[0].mxu0 %v1345
  %v1384 = vpop.f32.mrb[0].mxu0
  %v1385 = vadd.f32 0.0, %v1384
  %v1386 = vpop.f32.mrb[0].mxu0
  %v1387 = vpop.f32.mrb[0].mxu0
  %v1388 = vpop.f32.mrb[0].mxu0
  %1389 = vdwg.mxu0
  %1390 = vxpose.xlu0.c.b16.start [1/8] %v1006, 128
  %1391 = vxpose.xlu0.c.b16.cont [2/8] 0, 128
  %1392 = vxpose.xlu0.c.b16.cont [3/8] 0, 128
  %1393 = vxpose.xlu0.c.b16.cont [4/8] 0, 128
  %1394 = vxpose.xlu0.c.b16.cont [5/8] 0, 128
  %1395 = vxpose.xlu0.c.b16.cont [6/8] 0, 128
  %1396 = vxpose.xlu0.c.b16.cont [7/8] 0, 128
  %1397 = vxpose.xlu0.c.b16.end [8/8] 0, 128
  %v1398 = vpop.trf.xlu0
  %v1399 = vpop.trf.xlu0
  %v1400 = vpop.trf.xlu0
  %v1401 = vpop.trf.xlu0
  %v1402 = vpop.trf.xlu0
  %v1403 = vpop.trf.xlu0
  %v1404 = vpop.trf.xlu0
  %v1405 = vpop.trf.xlu0
  %v1407 = vsel %vm1032, %v1398, 0
  %v1410 = vsel %vm1036, %v1014, 0
  %1412 = vmatprep.subr.bf16.mxu0 0
  %1413 = vmatpush1.bf16.msra.mxu0 %v1410
  %1414 = vmatprep.subr.bf16.mxu0 0
  %1415 = vmatpush1.bf16.msra.mxu0 0
  %1416 = vmatprep.subr.bf16.mxu0 0
  %1417 = vmatpush1.bf16.msra.mxu0 0
  %1418 = vmatprep.subr.bf16.mxu0 0
  %1419 = vmatpush1.bf16.msra.mxu0 0
  %1420 = vmatprep.subr.bf16.mxu0 0
  %1421 = vmatpush1.bf16.msra.mxu0 0
  %1422 = vmatprep.subr.bf16.mxu0 0
  %1423 = vmatpush1.bf16.msra.mxu0 0
  %1424 = vmatprep.subr.bf16.mxu0 0
  %1425 = vmatpush1.bf16.msra.mxu0 0
  %1426 = vmatprep.subr.bf16.mxu0 0
  %1427 = vmatpush1.bf16.msra.mxu0 0
  %1428 = vmatprep.subr.bf16.mxu0 0
  %1429 = vmatpush1.bf16.msra.mxu0 0
  %1430 = vmatprep.subr.bf16.mxu0 0
  %1431 = vmatpush1.bf16.msra.mxu0 0
  %1432 = vmatprep.subr.bf16.mxu0 0
  %1433 = vmatpush1.bf16.msra.mxu0 0
  %1434 = vmatprep.subr.bf16.mxu0 0
  %1435 = vmatpush1.bf16.msra.mxu0 0
  %1436 = vmatprep.subr.bf16.mxu0 0
  %1437 = vmatpush1.bf16.msra.mxu0 0
  %1438 = vmatprep.subr.bf16.mxu0 0
  %1439 = vmatpush1.bf16.msra.mxu0 0
  %1440 = vmatprep.subr.bf16.mxu0 0
  %1441 = vmatpush1.bf16.msra.mxu0 0
  %1442 = vmatprep.subr.bf16.mxu0 0
  %1443 = vmatpush1.bf16.msra.mxu0 0
  %1444 = vmatprep.mubr.bf16.mxu0 0
  %1445 = vmatmul.mubr.bf16.gmra.mrb[0].mxu0 %v1407
  %v1446 = vpop.f32.mrb[0].mxu0
  %v1447 = vadd.f32 0.0, %v1446
  %v1448 = vpop.f32.mrb[0].mxu0
  %v1449 = vpop.f32.mrb[0].mxu0
  %v1450 = vpop.f32.mrb[0].mxu0
  %1451 = vdwg.mxu0
  %1452 = vxpose.xlu0.c.b16.start [1/8] %v1007, 128
  %1453 = vxpose.xlu0.c.b16.cont [2/8] 0, 128
  %1454 = vxpose.xlu0.c.b16.cont [3/8] 0, 128
  %1455 = vxpose.xlu0.c.b16.cont [4/8] 0, 128
  %1456 = vxpose.xlu0.c.b16.cont [5/8] 0, 128
  %1457 = vxpose.xlu0.c.b16.cont [6/8] 0, 128
  %1458 = vxpose.xlu0.c.b16.cont [7/8] 0, 128
  %1459 = vxpose.xlu0.c.b16.end [8/8] 0, 128
  %v1460 = vpop.trf.xlu0
  %v1461 = vpop.trf.xlu0
  %v1462 = vpop.trf.xlu0
  %v1463 = vpop.trf.xlu0
  %v1464 = vpop.trf.xlu0
  %v1465 = vpop.trf.xlu0
  %v1466 = vpop.trf.xlu0
  %v1467 = vpop.trf.xlu0
  %v1469 = vsel %vm1032, %v1460, 0
  %v1472 = vsel %vm1036, %v1015, 0
  %1474 = vmatprep.subr.bf16.mxu0 0
  %1475 = vmatpush1.bf16.msra.mxu0 %v1472
  %1476 = vmatprep.subr.bf16.mxu0 0
  %1477 = vmatpush1.bf16.msra.mxu0 0
  %1478 = vmatprep.subr.bf16.mxu0 0
  %1479 = vmatpush1.bf16.msra.mxu0 0
  %1480 = vmatprep.subr.bf16.mxu0 0
  %1481 = vmatpush1.bf16.msra.mxu0 0
  %1482 = vmatprep.subr.bf16.mxu0 0
  %1483 = vmatpush1.bf16.msra.mxu0 0
  %1484 = vmatprep.subr.bf16.mxu0 0
  %1485 = vmatpush1.bf16.msra.mxu0 0
  %1486 = vmatprep.subr.bf16.mxu0 0
  %1487 = vmatpush1.bf16.msra.mxu0 0
  %1488 = vmatprep.subr.bf16.mxu0 0
  %1489 = vmatpush1.bf16.msra.mxu0 0
  %1490 = vmatprep.subr.bf16.mxu0 0
  %1491 = vmatpush1.bf16.msra.mxu0 0
  %1492 = vmatprep.subr.bf16.mxu0 0
  %1493 = vmatpush1.bf16.msra.mxu0 0
  %1494 = vmatprep.subr.bf16.mxu0 0
  %1495 = vmatpush1.bf16.msra.mxu0 0
  %1496 = vmatprep.subr.bf16.mxu0 0
  %1497 = vmatpush1.bf16.msra.mxu0 0
  %1498 = vmatprep.subr.bf16.mxu0 0
  %1499 = vmatpush1.bf16.msra.mxu0 0
  %1500 = vmatprep.subr.bf16.mxu0 0
  %1501 = vmatpush1.bf16.msra.mxu0 0
  %1502 = vmatprep.subr.bf16.mxu0 0
  %1503 = vmatpush1.bf16.msra.mxu0 0
  %1504 = vmatprep.subr.bf16.mxu0 0
  %1505 = vmatpush1.bf16.msra.mxu0 0
  %1506 = vmatprep.mubr.bf16.mxu0 0
  %1507 = vmatmul.mubr.bf16.gmra.mrb[0].mxu0 %v1469
  %v1508 = vpop.f32.mrb[0].mxu0
  %v1509 = vadd.f32 0.0, %v1508
  %v1510 = vpop.f32.mrb[0].mxu0
  %v1511 = vpop.f32.mrb[0].mxu0
  %v1512 = vpop.f32.mrb[0].mxu0
  %1513 = vdwg.mxu0
  %v1514 = vsel %vm606, %v960, 0.0
  %v1515 = vsel %vm610, %v961, 0.0
  %v1516 = vadd.f32 %v1514, %v1515
  %v1517 = vrot.slane %v1516, 4
  %v1518 = vadd.f32 %v1516, %v1517
  %v1519 = vrot.slane %v1518, 2
  %v1520 = vadd.f32 %v1518, %v1519
  %v1521 = vrot.slane %v1520, 1
  %v1522 = vadd.f32 %v1520, %v1521
  %v1523 = vsel %vm606, %v962, 0.0
  %v1524 = vsel %vm610, %v963, 0.0
  %v1525 = vadd.f32 %v1523, %v1524
  %v1526 = vrot.slane %v1525, 4
  %v1527 = vadd.f32 %v1525, %v1526
  %v1528 = vrot.slane %v1527, 2
  %v1529 = vadd.f32 %v1527, %v1528
  %v1530 = vrot.slane %v1529, 1
  %v1531 = vadd.f32 %v1529, %v1530
  %v1532 = vsel %vm606, %v964, 0.0
  %v1533 = vsel %vm610, %v965, 0.0
  %v1534 = vadd.f32 %v1532, %v1533
  %v1535 = vrot.slane %v1534, 4
  %v1536 = vadd.f32 %v1534, %v1535
  %v1537 = vrot.slane %v1536, 2
  %v1538 = vadd.f32 %v1536, %v1537
  %v1539 = vrot.slane %v1538, 1
  %v1540 = vadd.f32 %v1538, %v1539
  %v1541 = vsel %vm606, %v966, 0.0
  %v1542 = vsel %vm610, %v967, 0.0
  %v1543 = vadd.f32 %v1541, %v1542
  %v1544 = vrot.slane %v1543, 4
  %v1545 = vadd.f32 %v1543, %v1544
  %v1546 = vrot.slane %v1545, 2
  %v1547 = vadd.f32 %v1545, %v1546
  %v1548 = vrot.slane %v1547, 1
  %v1549 = vadd.f32 %v1547, %v1548
  %v1550 = vsel %vm606, %v968, 0.0
  %v1551 = vsel %vm610, %v969, 0.0
  %v1552 = vadd.f32 %v1550, %v1551
  %v1553 = vrot.slane %v1552, 4
  %v1554 = vadd.f32 %v1552, %v1553
  %v1555 = vrot.slane %v1554, 2
  %v1556 = vadd.f32 %v1554, %v1555
  %v1557 = vrot.slane %v1556, 1
  %v1558 = vadd.f32 %v1556, %v1557
  %v1559 = vsel %vm606, %v970, 0.0
  %v1560 = vsel %vm610, %v971, 0.0
  %v1561 = vadd.f32 %v1559, %v1560
  %v1562 = vrot.slane %v1561, 4
  %v1563 = vadd.f32 %v1561, %v1562
  %v1564 = vrot.slane %v1563, 2
  %v1565 = vadd.f32 %v1563, %v1564
  %v1566 = vrot.slane %v1565, 1
  %v1567 = vadd.f32 %v1565, %v1566
  %v1568 = vsel %vm606, %v972, 0.0
  %v1569 = vsel %vm610, %v973, 0.0
  %v1570 = vadd.f32 %v1568, %v1569
  %v1571 = vrot.slane %v1570, 4
  %v1572 = vadd.f32 %v1570, %v1571
  %v1573 = vrot.slane %v1572, 2
  %v1574 = vadd.f32 %v1572, %v1573
  %v1575 = vrot.slane %v1574, 1
  %v1576 = vadd.f32 %v1574, %v1575
  %v1577 = vsel %vm606, %v974, 0.0
  %v1578 = vsel %vm610, %v975, 0.0
  %v1579 = vadd.f32 %v1577, %v1578
  %v1580 = vrot.slane %v1579, 4
  %v1581 = vadd.f32 %v1579, %v1580
  %v1582 = vrot.slane %v1581, 2
  %v1583 = vadd.f32 %v1581, %v1582
  %v1584 = vrot.slane %v1583, 1
  %v1585 = vadd.f32 %v1583, %v1584
  %1587 = vbcast.lane.b32.xlu0 %v1522, 256
  %v1588 = vpop.permute.xlu0 %1587
  %1590 = vbcast.lane.b32.xlu0 %v1531, 256
  %v1591 = vpop.permute.xlu0 %1590
  %1593 = vbcast.lane.b32.xlu0 %v1540, 256
  %v1594 = vpop.permute.xlu0 %1593
  %1596 = vbcast.lane.b32.xlu0 %v1549, 256
  %v1597 = vpop.permute.xlu0 %1596
  %1599 = vbcast.lane.b32.xlu0 %v1558, 256
  %v1600 = vpop.permute.xlu0 %1599
  %1602 = vbcast.lane.b32.xlu0 %v1567, 256
  %v1603 = vpop.permute.xlu0 %1602
  %1605 = vbcast.lane.b32.xlu0 %v1576, 256
  %v1606 = vpop.permute.xlu0 %1605
  %1608 = vbcast.lane.b32.xlu0 %v1585, 256
  %v1609 = vpop.permute.xlu0 %1608
  %v1610 = vadd.f32 %v992, %v1075
  %v1611 = vadd.f32 %v993, %v1137
  %v1612 = vadd.f32 %v994, %v1199
  %v1613 = vadd.f32 %v995, %v1261
  %v1614 = vadd.f32 %v996, %v1323
  %v1615 = vadd.f32 %v997, %v1385
  %v1616 = vadd.f32 %v998, %v1447
  %v1617 = vadd.f32 %v999, %v1509
  %v1618 = vadd.f32 %v1588, 1.0
  %v1619 = vadd.f32 %v1591, 1.0
  %v1620 = vadd.f32 %v1594, 1.0
  %v1621 = vadd.f32 %v1597, 1.0
  %v1622 = vadd.f32 %v1600, 1.0
  %v1623 = vadd.f32 %v1603, 1.0
  %v1624 = vadd.f32 %v1606, 1.0
  %v1625 = vadd.f32 %v1609, 1.0
  %v1626 = vrcp.pop %v1618
  %v1627 = vmul.f32 %v1610, %v1626
  %v1628 = vrcp.pop %v1619
  %v1629 = vmul.f32 %v1611, %v1628
  %v1630 = vrcp.pop %v1620
  %v1631 = vmul.f32 %v1612, %v1630
  %v1632 = vrcp.pop %v1621
  %v1633 = vmul.f32 %v1613, %v1632
  %v1634 = vrcp.pop %v1622
  %v1635 = vmul.f32 %v1614, %v1634
  %v1636 = vrcp.pop %v1623
  %v1637 = vmul.f32 %v1615, %v1636
  %v1638 = vrcp.pop %v1624
  %v1639 = vmul.f32 %v1616, %v1638
  %v1640 = vrcp.pop %v1625
  %v1641 = vmul.f32 %v1617, %v1640
  %vm1642 = vcmask 257024
  %1643 = vst.msk [vmem:[%s4] sm:$0xf] %vm1642, %v1627
  %1644 = vst.msk [vmem:[%s4 + $0x4] sm:$0xf] %vm1642, %v1629
  %1645 = vst.msk [vmem:[%s4 + $0x8] sm:$0xf] %vm1642, %v1631
  %1646 = vst.msk [vmem:[%s4 + $0xc] sm:$0xf] %vm1642, %v1633
  %1647 = vst.msk [vmem:[%s4 + $0x10] sm:$0xf] %vm1642, %v1635
  %1648 = vst.msk [vmem:[%s4 + $0x14] sm:$0xf] %vm1642, %v1637
  %1649 = vst.msk [vmem:[%s4 + $0x18] sm:$0xf] %vm1642, %v1639
  %1650 = vst.msk [vmem:[%s4 + $0x1c] sm:$0xf] %vm1642, %v1641
  // Predicated region
  $region18: #{block_forward.11} parent=0 // pred_check
    _
  $region19: #{block_forward.11} parent=0 // pred_check_branch
    %1652 = sbr.rel (0) target = $region21
  $region20: #{block_forward.11} parent=0 // pred_region
    _
  $region21: #{block_forward.11} parent=0 // pred_fallthru
    _
  // Predicated region
  $region22: #{block_forward.11} parent=0 // pred_check
    _
  $region23: #{block_forward.11} parent=0 // pred_check_branch
    %1654 = sbr.rel (0) target = $region25
  $region24: #{block_forward.11} parent=0 // pred_region
    _
  $region25: #{block_forward.11} parent=0 // pred_fallthru
    _

// kernel: block_forward.14
$region0: #{block_forward.14}
  #allocation0 [shape = 'u32[]', space=smem, size = 0x4, offset = 0x4, fixed_abs, tag = 'smem constant byte address 0x4 - core index']
  #allocation1 [shape = 'u32[144,128]{1,0:T(1,128)}', space=vmem, size = 0x12000, scoped, tag = 'internal scratch']
  %s0 = inlined_call_operand.vmem [shape: f32[32,32], index: 0, kind: input, shape index: {}]
  %s1 = inlined_call_operand.vmem [shape: bf16[32,128], index: 1, kind: input, shape index: {}]
  %s2 = inlined_call_operand.vmem [shape: f32[1,128], index: 2, kind: input, shape index: {}]
  %s3 = inlined_call_operand.vmem [shape: f32[32,128], index: 3, kind: output, shape index: {}]
  %s4 = sld [smem:[#allocation0]]
  $region22: #{block_forward.14} parent=0
    _
  %s6 = ssub.s32 1, %s4
  %s7 = scalar_select 0, %s6, %s4
  // Predicated region
  $region2: #{block_forward.14} parent=0 // pred_check
    _
  $region3: #{block_forward.14} parent=0 // pred_check_branch
    %9 = sbr.rel (0) target = $region5
  $region4: #{block_forward.14} parent=0 // pred_region
    _
  $region5: #{block_forward.14} parent=0 // pred_fallthru
    _
  // Predicated region
  $region6: #{block_forward.14} parent=0 // pred_check
    _
  $region7: #{block_forward.14} parent=0 // pred_check_branch
    %11 = sbr.rel (0) target = $region9
  $region8: #{block_forward.14} parent=0 // pred_region
    _
  $region9: #{block_forward.14} parent=0 // pred_fallthru
    _
  // Predicated region
  $region10: #{block_forward.14} parent=0 // pred_check
    _
  $region11: #{block_forward.14} parent=0 // pred_check_branch
    %13 = sbr.rel (0) target = $region13
  $region12: #{block_forward.14} parent=0 // pred_region
    _
  $region13: #{block_forward.14} parent=0 // pred_fallthru
    _
  %v15 = vld [vmem:[%s0] sm:$0xff]
  %v16 = vld [vmem:[%s0 + $0x8] sm:$0xff]
  %v17 = vld [vmem:[%s0 + $0x10] sm:$0xff]
  %v18 = vld [vmem:[%s0 + $0x18] sm:$0xff]
  %v19 = vpack.c.bf16 %v16, %v15
  %v20 = vpack.c.bf16 %v18, %v17
  %v21 = vld [vmem:[%s1] sm:$0xf]
  %v22 = vld [vmem:[%s1 + $0x4] sm:$0xf]
  %v23 = vld [vmem:[%s1 + $0x8] sm:$0xf]
  %v24 = vld [vmem:[%s1 + $0xc] sm:$0xf]
  %v25 = vld [vmem:[%s2] sm:$0x1]
  %v27 = vlaneseq
  %v28 = vshrl.u32 %v27, 7
  %v29 = vsub.s32 0, %v28
  %v30 = vrot.slane %v25, %v29
  %v36 = vunpack.c.l.b16 %v21
  %v37 = vunpack.c.l.b16 %v22
  %v38 = vunpack.c.l.b16 %v23
  %v39 = vunpack.c.l.b16 %v24
  %v40 = vpack.c.b16 %v37, %v36
  %v41 = vpack.c.b16 %v39, %v38
  %vm44 = vcmask 261120
  %v46 = vsel %vm44, %v19, 0
  %v49 = vsel %vm44, %v20, 0
  %51 = vmatprep.subr.bf16.mxu0 0
  %52 = vmatpush1.bf16.msra.mxu0 %v40
  %53 = vmatprep.subr.bf16.mxu0 0
  %54 = vmatpush1.bf16.msra.mxu0 %v41
  %55 = vmatprep.subr.bf16.mxu0 0
  %56 = vmatpush1.bf16.msra.mxu0 0
  %57 = vmatprep.subr.bf16.mxu0 0
  %58 = vmatpush1.bf16.msra.mxu0 0
  %59 = vmatprep.subr.bf16.mxu0 0
  %60 = vmatpush1.bf16.msra.mxu0 0
  %61 = vmatprep.subr.bf16.mxu0 0
  %62 = vmatpush1.bf16.msra.mxu0 0
  %63 = vmatprep.subr.bf16.mxu0 0
  %64 = vmatpush1.bf16.msra.mxu0 0
  %65 = vmatprep.subr.bf16.mxu0 0
  %66 = vmatpush1.bf16.msra.mxu0 0
  %67 = vmatprep.subr.bf16.mxu0 0
  %68 = vmatpush1.bf16.msra.mxu0 0
  %69 = vmatprep.subr.bf16.mxu0 0
  %70 = vmatpush1.bf16.msra.mxu0 0
  %71 = vmatprep.subr.bf16.mxu0 0
  %72 = vmatpush1.bf16.msra.mxu0 0
  %73 = vmatprep.subr.bf16.mxu0 0
  %74 = vmatpush1.bf16.msra.mxu0 0
  %75 = vmatprep.subr.bf16.mxu0 0
  %76 = vmatpush1.bf16.msra.mxu0 0
  %77 = vmatprep.subr.bf16.mxu0 0
  %78 = vmatpush1.bf16.msra.mxu0 0
  %79 = vmatprep.subr.bf16.mxu0 0
  %80 = vmatpush1.bf16.msra.mxu0 0
  %81 = vmatprep.subr.bf16.mxu0 0
  %82 = vmatpush1.bf16.msra.mxu0 0
  %83 = vmatprep.mubr.bf16.mxu0 0
  %84 = vmatmul.mubr.bf16.gmra.mrb[0].mxu0 %v46
  %v85 = vpop.f32.mrb[0].mxu0
  %v86 = vadd.f32 %v30, %v85
  %v87 = vpop.f32.mrb[0].mxu0
  %v88 = vpop.f32.mrb[0].mxu0
  %v89 = vadd.f32 %v30, %v88
  %v90 = vpop.f32.mrb[0].mxu0
  %91 = vmatprep.mubr.bf16.mxu0 0
  %92 = vmatmul.mubr.bf16.gmra.mrb[0].mxu0 %v49
  %v93 = vpop.f32.mrb[0].mxu0
  %v94 = vadd.f32 %v30, %v93
  %v95 = vpop.f32.mrb[0].mxu0
  %v96 = vpop.f32.mrb[0].mxu0
  %v97 = vadd.f32 %v30, %v96
  %v98 = vpop.f32.mrb[0].mxu0
  %99 = vdwg.mxu0
  %100 = vst [vmem:[%s3] sm:$0xff] %v86
  %101 = vst [vmem:[%s3 + $0x8] sm:$0xff] %v89
  %102 = vst [vmem:[%s3 + $0x10] sm:$0xff] %v94
  %103 = vst [vmem:[%s3 + $0x18] sm:$0xff] %v97
  // Predicated region
  $region14: #{block_forward.14} parent=0 // pred_check
    _
  $region15: #{block_forward.14} parent=0 // pred_check_branch
    %105 = sbr.rel (0) target = $region17
  $region16: #{block_forward.14} parent=0 // pred_region
    _
  $region17: #{block_forward.14} parent=0 // pred_fallthru
    _
  // Predicated region
  $region18: #{block_forward.14} parent=0 // pred_check
    _
  $region19: #{block_forward.14} parent=0 // pred_check_branch
    %107 = sbr.rel (0) target = $region21
  $region20: #{block_forward.14} parent=0 // pred_region
    _
  $region21: #{block_forward.14} parent=0 // pred_fallthru
    _

// kernel: block_forward.15
$region0: #{block_forward.15}
  #allocation0 [shape = 'u32[]', space=smem, size = 0x4, offset = 0x4, fixed_abs, tag = 'smem constant byte address 0x4 - core index']
  #allocation1 [shape = 'u32[144,128]{1,0:T(1,128)}', space=vmem, size = 0x12000, scoped, tag = 'internal scratch']
  %s0 = inlined_call_operand.vmem [shape: f32[32,128], index: 0, kind: input, shape index: {}]
  %s1 = inlined_call_operand.vmem [shape: bf16[128,64], index: 1, kind: input, shape index: {}]
  %s2 = inlined_call_operand.vmem [shape: f32[1,64], index: 2, kind: input, shape index: {}]
  %s3 = inlined_call_operand.hbm [shape: f32[32,64], index: 3, kind: output, shape index: {}]
  %s4 = sld [smem:[#allocation0]]
  $region22: #{block_forward.15} parent=0
    _
  %s6 = ssub.s32 1, %s4
  %s7 = scalar_select 0, %s6, %s4
  $region1: #{block_forward.15} parent=0
    #allocation2 [shape = 'u8[16384]{0}', space=vmem, size = 0x4000, scoped, tag = 'output window, operand 0, single buffered']
    #allocation3 [shape = 's32[1]{0}', space=sflag, size = 0x4, scoped, tag = 'scoped memory for block_forward.15']
    %8 = vsyncpa [#allocation3], 0
    // Predicated region
    $region2: #{block_forward.15} parent=1 // pred_check
      _
    $region3: #{block_forward.15} parent=1 // pred_check_branch
      %10 = sbr.rel (0) target = $region5
    $region4: #{block_forward.15} parent=1 // pred_region
      _
    $region5: #{block_forward.15} parent=1 // pred_fallthru
      _
    // Predicated region
    $region6: #{block_forward.15} parent=1 // pred_check
      _
    $region7: #{block_forward.15} parent=1 // pred_check_branch
      %12 = sbr.rel (0) target = $region9
    $region8: #{block_forward.15} parent=1 // pred_region
      _
    $region9: #{block_forward.15} parent=1 // pred_fallthru
      _
    // Predicated region
    $region10: #{block_forward.15} parent=1 // pred_check
      _
    $region11: #{block_forward.15} parent=1 // pred_check_branch
      %14 = sbr.rel (0) target = $region13
    $region12: #{block_forward.15} parent=1 // pred_region
      _
    $region13: #{block_forward.15} parent=1 // pred_fallthru
      _
    %v16 = vld [vmem:[%s0] sm:$0xff]
    %v17 = vld [vmem:[%s0 + $0x8] sm:$0xff]
    %v18 = vld [vmem:[%s0 + $0x10] sm:$0xff]
    %v19 = vld [vmem:[%s0 + $0x18] sm:$0xff]
    %v20 = vpack.c.bf16 %v17, %v16
    %v21 = vpack.c.bf16 %v19, %v18
    %v22 = vld [vmem:[%s1] sm:$0xf]
    %v23 = vld [vmem:[%s1 + $0x4] sm:$0xf]
    %v24 = vld [vmem:[%s1 + $0x8] sm:$0xf]
    %v25 = vld [vmem:[%s1 + $0xc] sm:$0xf]
    %v26 = vld [vmem:[%s1 + $0x10] sm:$0xf]
    %v27 = vld [vmem:[%s1 + $0x14] sm:$0xf]
    %v28 = vld [vmem:[%s1 + $0x18] sm:$0xf]
    %v29 = vld [vmem:[%s1 + $0x1c] sm:$0xf]
    %v30 = vld [vmem:[%s1 + $0x20] sm:$0xf]
    %v31 = vld [vmem:[%s1 + $0x24] sm:$0xf]
    %v32 = vld [vmem:[%s1 + $0x28] sm:$0xf]
    %v33 = vld [vmem:[%s1 + $0x2c] sm:$0xf]
    %v34 = vld [vmem:[%s1 + $0x30] sm:$0xf]
    %v35 = vld [vmem:[%s1 + $0x34] sm:$0xf]
    %v36 = vld [vmem:[%s1 + $0x38] sm:$0xf]
    %v37 = vld [vmem:[%s1 + $0x3c] sm:$0xf]
    %v38 = vld [vmem:[%s2] sm:$0x1]
    %v40 = vlaneseq
    %v41 = vshrl.u32 %v40, 7
    %v42 = vsub.s32 0, %v41
    %v43 = vrot.slane %v38, %v42
    %v61 = vunpack.c.l.b16 %v22
    %v62 = vunpack.c.l.b16 %v23
    %v63 = vunpack.c.l.b16 %v24
    %v64 = vunpack.c.l.b16 %v25
    %v65 = vunpack.c.l.b16 %v26
    %v66 = vunpack.c.l.b16 %v27
    %v67 = vunpack.c.l.b16 %v28
    %v68 = vunpack.c.l.b16 %v29
    %v69 = vunpack.c.l.b16 %v30
    %v70 = vunpack.c.l.b16 %v31
    %v71 = vunpack.c.l.b16 %v32
    %v72 = vunpack.c.l.b16 %v33
    %v73 = vunpack.c.l.b16 %v34
    %v74 = vunpack.c.l.b16 %v35
    %v75 = vunpack.c.l.b16 %v36
    %v76 = vunpack.c.l.b16 %v37
    %v77 = vpack.c.b16 %v62, %v61
    %v78 = vpack.c.b16 %v64, %v63
    %v79 = vpack.c.b16 %v66, %v65
    %v80 = vpack.c.b16 %v68, %v67
    %v81 = vpack.c.b16 %v70, %v69
    %v82 = vpack.c.b16 %v72, %v71
    %v83 = vpack.c.b16 %v74, %v73
    %v84 = vpack.c.b16 %v76, %v75
    %93 = vmatprep.subr.bf16.mxu0 0
    %94 = vmatpush1.bf16.msra.mxu0 %v77
    %95 = vmatprep.subr.bf16.mxu0 0
    %96 = vmatpush1.bf16.msra.mxu0 %v78
    %97 = vmatprep.subr.bf16.mxu0 0
    %98 = vmatpush1.bf16.msra.mxu0 %v79
    %99 = vmatprep.subr.bf16.mxu0 0
    %100 = vmatpush1.bf16.msra.mxu0 %v80
    %101 = vmatprep.subr.bf16.mxu0 0
    %102 = vmatpush1.bf16.msra.mxu0 %v81
    %103 = vmatprep.subr.bf16.mxu0 0
    %104 = vmatpush1.bf16.msra.mxu0 %v82
    %105 = vmatprep.subr.bf16.mxu0 0
    %106 = vmatpush1.bf16.msra.mxu0 %v83
    %107 = vmatprep.subr.bf16.mxu0 0
    %108 = vmatpush1.bf16.msra.mxu0 %v84
    %109 = vmatprep.subr.bf16.mxu0 0
    %110 = vmatpush1.bf16.msra.mxu0 0
    %111 = vmatprep.subr.bf16.mxu0 0
    %112 = vmatpush1.bf16.msra.mxu0 0
    %113 = vmatprep.subr.bf16.mxu0 0
    %114 = vmatpush1.bf16.msra.mxu0 0
    %115 = vmatprep.subr.bf16.mxu0 0
    %116 = vmatpush1.bf16.msra.mxu0 0
    %117 = vmatprep.subr.bf16.mxu0 0
    %118 = vmatpush1.bf16.msra.mxu0 0
    %119 = vmatprep.subr.bf16.mxu0 0
    %120 = vmatpush1.bf16.msra.mxu0 0
    %121 = vmatprep.subr.bf16.mxu0 0
    %122 = vmatpush1.bf16.msra.mxu0 0
    %123 = vmatprep.subr.bf16.mxu0 0
    %124 = vmatpush1.bf16.msra.mxu0 0
    %125 = vmatprep.mubr.bf16.mxu0 0
    %126 = vmatmul.mubr.bf16.gmra.mrb[0].mxu0 %v20
    %v127 = vpop.f32.mrb[0].mxu0
    %v128 = vadd.f32 %v43, %v127
    %v129 = vpop.f32.mrb[0].mxu0
    %v130 = vpop.f32.mrb[0].mxu0
    %v131 = vadd.f32 %v43, %v130
    %v132 = vpop.f32.mrb[0].mxu0
    %133 = vmatprep.mubr.bf16.mxu0 0
    %134 = vmatmul.mubr.bf16.gmra.mrb[0].mxu0 %v21
    %v135 = vpop.f32.mrb[0].mxu0
    %v136 = vadd.f32 %v43, %v135
    %v137 = vpop.f32.mrb[0].mxu0
    %v138 = vpop.f32.mrb[0].mxu0
    %v139 = vadd.f32 %v43, %v138
    %v140 = vpop.f32.mrb[0].mxu0
    %141 = vdwg.mxu0
    %vm142 = vcmask 523264
    %143 = vst.msk [vmem:[#allocation2] sm:$0xff] %vm142, %v128
    %144 = vst.msk [vmem:[#allocation2 + $0x8] sm:$0xff] %vm142, %v131
    %145 = vst.msk [vmem:[#allocation2 + $0x10] sm:$0xff] %vm142, %v136
    %146 = vst.msk [vmem:[#allocation2 + $0x18] sm:$0xff] %vm142, %v139
    // Predicated region
    $region14: #{block_forward.15} parent=1 // pred_check
      _
    $region15: #{block_forward.15} parent=1 // pred_check_branch
      %148 = sbr.rel (0) target = $region17
    $region16: #{block_forward.15} parent=1 // pred_region
      %s150 = ssub.s32 512, 512
      %151 = vsyncadd [#allocation3], %s150
      %s152 = sshll.u32 [#allocation2], 4
      %s153 = int_to_ptr.vmem [resolvable:$true] %s152
      %158 = dma.vmem_to_hbm [thread:$0]  %s153, 512, %s3, [#allocation3], 128, 128, 8
    $region17: #{block_forward.15} parent=1 // pred_fallthru
      _
    // Predicated region
    $region18: #{block_forward.15} parent=1 // pred_check
      _
    $region19: #{block_forward.15} parent=1 // pred_check_branch
      %160 = sbr.rel (0) target = $region21
    $region20: #{block_forward.15} parent=1 // pred_region
      %161 = dma.done [#allocation3], 512
    $region21: #{block_forward.15} parent=1 // pred_fallthru
      _
    %162 = vsyncpa [#allocation3], 1

</llo_original>
